<compile_context>
chip_gen: v7x
topology: tpu7x:2x2x1
jax: 0.10.0
libtpu: 0.0.40
codegen_flags: <defaults>
</compile_context>

<pallas_src>
import jax
import jax.numpy as jnp
from jax import lax
from jax.experimental import pallas as pl
from jax.experimental.pallas import tpu as pltpu


# ------------------------ in-kernel helpers (values) ------------------------

def _pool_selectors(n):
    """0/1 matrices for 2x2/stride-2 max pooling via matmuls.

    S_even_T @ A keeps even rows, A @ S_even keeps even columns (n -> n//2).
    Built with 2-D broadcasted_iota (TPU-safe), no reshapes/transposes.
    """
    m = n // 2
    i = lax.broadcasted_iota(jnp.int32, (n, m), 0)
    j = lax.broadcasted_iota(jnp.int32, (n, m), 1)
    s_even = (i == 2 * j).astype(jnp.float32)            # (n, m)
    s_odd = (i == 2 * j + 1).astype(jnp.float32)
    it = lax.broadcasted_iota(jnp.int32, (m, n), 0)
    jt = lax.broadcasted_iota(jnp.int32, (m, n), 1)
    s_even_t = (jt == 2 * it).astype(jnp.float32)         # (m, n)
    s_odd_t = (jt == 2 * it + 1).astype(jnp.float32)
    return s_even, s_odd, s_even_t, s_odd_t


def _maxpool2x2(a, sels):
    """2x2/stride-2 max pool of a 2-D (n, n) tile using selection matmuls."""
    s_even, s_odd, s_even_t, s_odd_t = sels
    hp = jnp.maximum(
        jnp.dot(s_even_t, a, preferred_element_type=jnp.float32),
        jnp.dot(s_odd_t, a, preferred_element_type=jnp.float32))     # (n/2, n)
    return jnp.maximum(
        jnp.dot(hp, s_even, preferred_element_type=jnp.float32),
        jnp.dot(hp, s_odd, preferred_element_type=jnp.float32))      # (n/2, n/2)


# ------------------------- fused conv-stack kernel --------------------------

def _conv_stack_kernel(x_ref, w1_ref, b1_ref, w2_ref, b2_ref, feat_ref, x2_ref):
    """Per-image: conv1(3x3,p1)+bias+maxpool2x2+ReLU -> conv2(...)+pool+ReLU.

    x_ref   : (1, Cin, H+2, W+2) padded NCHW image block (VMEM)
    w1_ref  : (O1*Cin*9,) OIHW-flattened conv1 weights   (SMEM)
    b1_ref  : (O1,)                                       (SMEM)
    w2_ref  : (O2*O1*9,) OIHW-flattened conv2 weights    (SMEM)
    b2_ref  : (O2,)                                       (SMEM)
    feat_ref: (1, O2, H/4, W/4) pooled conv2 output       (VMEM)
    x2_ref  : (O1, H/2+2, W/2+2) scratch = padded conv2 input (VMEM)
    """
    cin = x_ref.shape[1]
    H = x_ref.shape[2] - 2          # 28
    H1 = H // 2                     # 14
    o1 = b1_ref.shape[0]            # 8
    o2 = b2_ref.shape[0]            # 8

    sels1 = _pool_selectors(H)      # 28 -> 14
    sels2 = _pool_selectors(H1)     # 14 -> 7

    # Zero the conv2 input buffer: gives the padding ring; interior is
    # overwritten below (re-done every grid step, so "parallel" grid is safe).
    x2_ref[...] = jnp.zeros_like(x2_ref)

    # ---- conv1: 3x3 taps as scalar-broadcast FMAs, then pool + bias + ReLU ----
    def conv1_body(o, carry):
        acc = jnp.zeros((H, H), jnp.float32)
        for c in range(cin):                      # static unroll (Cin*9 taps)
            for ky in range(3):
                for kx in range(3):
                    w = w1_ref[o * (cin * 9) + c * 9 + ky * 3 + kx]
                    acc = acc + w * x_ref[0, c, ky:ky + H, kx:kx + H]
        pooled = jnp.maximum(_maxpool2x2(acc, sels1) + b1_ref[o], 0.0)
        x2_ref[o, 1:1 + H1, 1:1 + H1] = pooled    # write into padded buffer
        return carry

    lax.fori_loop(0, o1, conv1_body, 0)

    # ---- conv2: same structure, reading the padded VMEM scratch ----
    def conv2_body(o, carry):
        acc = jnp.zeros((H1, H1), jnp.float32)
        for c in range(o1):
            for ky in range(3):
                for kx in range(3):
                    w = w2_ref[o * (o1 * 9) + c * 9 + ky * 3 + kx]
                    acc = acc + w * x2_ref[c, ky:ky + H1, kx:kx + H1]
        pooled = jnp.maximum(_maxpool2x2(acc, sels2) + b2_ref[o], 0.0)
        feat_ref[0, o, :, :] = pooled
        return carry

    lax.fori_loop(0, o2, conv2_body, 0)


# ----------------------------- fused FC kernel ------------------------------

def _fc_kernel(x_ref, w1_ref, b1_ref, w2_ref, b2_ref, w3_ref, b3_ref,
               logits_ref, latent_ref):
    """latent = relu(x@W1+b1); out3 = relu(latent@W2+b2); logits = out3@W3+b3."""
    h1 = jnp.dot(x_ref[...], w1_ref[...],
                 preferred_element_type=jnp.float32) + b1_ref[...]
    h1 = jnp.maximum(h1, 0.0)
    latent_ref[...] = h1.astype(latent_ref.dtype)

    h2 = jnp.dot(h1, w2_ref[...],
                 preferred_element_type=jnp.float32) + b2_ref[...]
    h2 = jnp.maximum(h2, 0.0)

    logits_ref[...] = (jnp.dot(h2, w3_ref[...],
                               preferred_element_type=jnp.float32)
                       + b3_ref[...]).astype(logits_ref.dtype)


# ------------------------------- forward pass -------------------------------

def mnist_conv_forward(x_nchw, p):
    """Matches MNIST_Conv.forward: returns (fc3(out3), latent).

    `p` must come from prepare_params() (weights pre-arranged once at init).
    """
    x = x_nchw.astype(jnp.float32)
    B, cin, H, W = x.shape
    assert H == W and H % 4 == 0
    H2 = H // 4
    o1 = p["b1"].shape[0]
    o2 = p["b2"].shape[0]

    xp = jnp.pad(x, ((0, 0), (0, 0), (1, 1), (1, 1)))      # conv padding=1

    feat = pl.pallas_call(
        _conv_stack_kernel,
        out_shape=jax.ShapeDtypeStruct((B, o2, H2, H2), jnp.float32),
        grid=(B,),
        in_specs=[
            pl.BlockSpec((1, cin, H + 2, W + 2), lambda b: (b, 0, 0, 0)),
            pl.BlockSpec(memory_space=pltpu.MemorySpace.SMEM),   # conv1 w
            pl.BlockSpec(memory_space=pltpu.MemorySpace.SMEM),   # conv1 b
            pl.BlockSpec(memory_space=pltpu.MemorySpace.SMEM),   # conv2 w
            pl.BlockSpec(memory_space=pltpu.MemorySpace.SMEM),   # conv2 b
        ],
        out_specs=pl.BlockSpec((1, o2, H2, H2), lambda b: (b, 0, 0, 0)),
        scratch_shapes=[pltpu.VMEM((o1, H // 2 + 2, W // 2 + 2), jnp.float32)],
        compiler_params=pltpu.CompilerParams(
            dimension_semantics=("parallel",)),
    )(xp, p["w1"], p["b1"], p["w2"], p["b2"])

    # NCHW-contiguous flatten == PyTorch's out2.reshape(B, -1); free reshape.
    K = o2 * H2 * H2
    flat = feat.reshape(B, K)

    latent_dim = p["fc1_w"].shape[1]
    hid = p["fc2_w"].shape[1]
    out_dim = p["fc3_w"].shape[1]

    TB = B if B <= 128 else 128                      # batch-row tiling
    logits, latent = pl.pallas_call(
        _fc_kernel,
        out_shape=(jax.ShapeDtypeStruct((B, out_dim), jnp.float32),
                   jax.ShapeDtypeStruct((B, latent_dim), jnp.float32)),
        grid=(pl.cdiv(B, TB),),
        in_specs=[
            pl.BlockSpec((TB, K), lambda i: (i, 0)),
            pl.BlockSpec((K, latent_dim), lambda i: (0, 0)),
            pl.BlockSpec((1, latent_dim), lambda i: (0, 0)),
            pl.BlockSpec((latent_dim, hid), lambda i: (0, 0)),
            pl.BlockSpec((1, hid), lambda i: (0, 0)),
            pl.BlockSpec((hid, out_dim), lambda i: (0, 0)),
            pl.BlockSpec((1, out_dim), lambda i: (0, 0)),
        ],
        out_specs=(pl.BlockSpec((TB, out_dim), lambda i: (i, 0)),
                   pl.BlockSpec((TB, latent_dim), lambda i: (i, 0))),
        compiler_params=pltpu.CompilerParams(
            dimension_semantics=("parallel",)),
    )(flat, p["fc1_w"], p["fc1_b"], p["fc2_w"], p["fc2_b"],
      p["fc3_w"], p["fc3_b"])

    return logits, latent


# ---------------------- parameter init / preparation ------------------------

def init_params(key, input_channels=3, output_dim=10, latent_dim=32):
    """PyTorch-style uniform(-1/sqrt(fan_in), 1/sqrt(fan_in)) init (raw layout)."""
    ks = jax.random.split(key, 10)

    def u(k, shape, fan_in):
        bound = 1.0 / jnp.sqrt(fan_in)
        return jax.random.uniform(k, shape, jnp.float32, -bound, bound)

    p = {}
    p["conv1_w"] = u(ks[0], (8, input_channels, 3, 3), input_channels * 9)
    p["conv1_b"] = u(ks[1], (8,), input_channels * 9)
    p["conv2_w"] = u(ks[2], (8, 8, 3, 3), 8 * 9)
    p["conv2_b"] = u(ks[3], (8,), 8 * 9)
    p["fc1_w"] = u(ks[4], (latent_dim, 8 * 7 * 7), 8 * 7 * 7)
    p["fc1_b"] = u(ks[5], (latent_dim,), 8 * 7 * 7)
    p["fc2_w"] = u(ks[6], (64, latent_dim), latent_dim)
    p["fc2_b"] = u(ks[7], (64,), latent_dim)
    p["fc3_w"] = u(ks[8], (output_dim, 64), 64)
    p["fc3_b"] = u(ks[9], (output_dim,), 64)
    return p


def prepare_params(p):
    """One-time weight re-arrangement (done at init, not per forward call)."""
    return {
        # conv weights flattened in OIHW order for SMEM scalar indexing
        "w1": p["conv1_w"].reshape(-1).astype(jnp.float32),
        "b1": p["conv1_b"].astype(jnp.float32),
        "w2": p["conv2_w"].reshape(-1).astype(jnp.float32),
        "b2": p["conv2_b"].astype(jnp.float32),
        # fc weights pre-transposed to (K, N); biases as (1, N)
        "fc1_w": jnp.transpose(p["fc1_w"]).astype(jnp.float32),
        "fc1_b": p["fc1_b"].reshape(1, -1).astype(jnp.float32),
        "fc2_w": jnp.transpose(p["fc2_w"]).astype(jnp.float32),
        "fc2_b": p["fc2_b"].reshape(1, -1).astype(jnp.float32),
        "fc3_w": jnp.transpose(p["fc3_w"]).astype(jnp.float32),
        "fc3_b": p["fc3_b"].reshape(1, -1).astype(jnp.float32),
    }


# ------------------------- pure-JAX reference check -------------------------

def reference_forward(x, p):
    dn = ("NCHW", "OIHW", "NCHW")
    y = lax.conv_general_dilated(x, p["conv1_w"], (1, 1), ((1, 1), (1, 1)),
                                 dimension_numbers=dn)
    y = y + p["conv1_b"].reshape(1, -1, 1, 1)
    y = lax.reduce_window(y, -jnp.inf, lax.max, (1, 1, 2, 2), (1, 1, 2, 2),
                          "VALID")
    y = jnp.maximum(y, 0.0)
    y = lax.conv_general_dilated(y, p["conv2_w"], (1, 1), ((1, 1), (1, 1)),
                                 dimension_numbers=dn)
    y = y + p["conv2_b"].reshape(1, -1, 1, 1)
    y = lax.reduce_window(y, -jnp.inf, lax.max, (1, 1, 2, 2), (1, 1, 2, 2),
                          "VALID")
    y = jnp.maximum(y, 0.0)
    flat = y.reshape(y.shape[0], -1)
    latent = jnp.maximum(flat @ p["fc1_w"].T + p["fc1_b"], 0.0)
    out3 = jnp.maximum(latent @ p["fc2_w"].T + p["fc2_b"], 0.0)
    logits = out3 @ p["fc3_w"].T + p["fc3_b"]
    return logits, latent


# ----------------------------------- main ------------------------------------

if __name__ == "__main__":
    key = jax.random.PRNGKey(0)
    k_x, k_p = jax.random.split(key)

    # fc1 expects 8*7*7 features => input spatial must be 28x28 (two 2x2 pools).
    x = jax.random.normal(k_x, (2, 3, 28, 28), dtype=jnp.float32)
    raw_params = init_params(k_p)
    params = prepare_params(raw_params)

    fwd = jax.jit(mnist_conv_forward)
    logits, latent = fwd(x, params)
    jax.block_until_ready((logits, latent))

    assert logits.shape == (2, 10) and latent.shape == (2, 32)

    # self-check against a pure-JAX reference (loose tol: MXU f32 precision)
    ref_logits, ref_latent = reference_forward(x, raw_params)
    assert jnp.allclose(logits, ref_logits, rtol=5e-2, atol=1e-2), (
        float(jnp.max(jnp.abs(logits - ref_logits))))
    assert jnp.allclose(latent, ref_latent, rtol=5e-2, atol=1e-2), (
        float(jnp.max(jnp.abs(latent - ref_latent))))

    print("KERNEL_OK")
</pallas_src>

<mosaic_0001>
module attributes {stable_mosaic.version = 11 : i64} {
  func.func @_conv_stack_kernel(%arg0: i32, %arg1: memref<1x3x30x30xf32, #tpu.memory_space<vmem>>, %arg2: memref<216xf32, #tpu.memory_space<smem>>, %arg3: memref<8xf32, #tpu.memory_space<smem>>, %arg4: memref<576xf32, #tpu.memory_space<smem>>, %arg5: memref<8xf32, #tpu.memory_space<smem>>, %arg6: memref<1x8x7x7xf32, #tpu.memory_space<vmem>>, %arg7: memref<8x16x16xf32, #tpu.memory_space<vmem>>) attributes {dimension_semantics = [#tpu.dimension_semantics<parallel>], iteration_bounds = array<i64: 2>, scalar_prefetch = 0 : i64, scratch_operands = 1 : i64, tpu.core_type = #tpu.core_type<tc>, window_params = [{transform_indices = @transform_0, window_bounds = array<i64: 1, 3, 30, 30>}, {transform_indices = @transform_1, window_bounds = array<i64: 216>}, {transform_indices = @transform_2, window_bounds = array<i64: 8>}, {transform_indices = @transform_3, window_bounds = array<i64: 576>}, {transform_indices = @transform_4, window_bounds = array<i64: 8>}, {transform_indices = @transform_5, window_bounds = array<i64: 1, 8, 7, 7>}]} {
    %0 = tpu.iota {dimensions = array<i32: 0>} : vector<28x14xi32>
    %1 = tpu.iota {dimensions = array<i32: 1>} : vector<28x14xi32>
    %c2_i32 = arith.constant 2 : i32
    %2 = vector.broadcast %c2_i32 : i32 to vector<28x14xi32>
    %3 = arith.muli %2, %1 : vector<28x14xi32>
    %4 = arith.cmpi eq, %0, %3 : vector<28x14xi32>
    %5 = arith.extui %4 : vector<28x14xi1> to vector<28x14xi32>
    %6 = arith.sitofp %5 : vector<28x14xi32> to vector<28x14xf32>
    %c2_i32_0 = arith.constant 2 : i32
    %7 = vector.broadcast %c2_i32_0 : i32 to vector<28x14xi32>
    %8 = arith.muli %7, %1 : vector<28x14xi32>
    %c1_i32 = arith.constant 1 : i32
    %9 = vector.broadcast %c1_i32 : i32 to vector<28x14xi32>
    %10 = arith.addi %8, %9 : vector<28x14xi32>
    %11 = arith.cmpi eq, %0, %10 : vector<28x14xi32>
    %12 = arith.extui %11 : vector<28x14xi1> to vector<28x14xi32>
    %13 = arith.sitofp %12 : vector<28x14xi32> to vector<28x14xf32>
    %14 = tpu.iota {dimensions = array<i32: 0>} : vector<14x28xi32>
    %15 = tpu.iota {dimensions = array<i32: 1>} : vector<14x28xi32>
    %c2_i32_1 = arith.constant 2 : i32
    %16 = vector.broadcast %c2_i32_1 : i32 to vector<14x28xi32>
    %17 = arith.muli %16, %14 : vector<14x28xi32>
    %18 = arith.cmpi eq, %15, %17 : vector<14x28xi32>
    %19 = arith.extui %18 : vector<14x28xi1> to vector<14x28xi32>
    %20 = arith.sitofp %19 : vector<14x28xi32> to vector<14x28xf32>
    %c2_i32_2 = arith.constant 2 : i32
    %21 = vector.broadcast %c2_i32_2 : i32 to vector<14x28xi32>
    %22 = arith.muli %21, %14 : vector<14x28xi32>
    %c1_i32_3 = arith.constant 1 : i32
    %23 = vector.broadcast %c1_i32_3 : i32 to vector<14x28xi32>
    %24 = arith.addi %22, %23 : vector<14x28xi32>
    %25 = arith.cmpi eq, %15, %24 : vector<14x28xi32>
    %26 = arith.extui %25 : vector<14x28xi1> to vector<14x28xi32>
    %27 = arith.sitofp %26 : vector<14x28xi32> to vector<14x28xf32>
    %28 = tpu.iota {dimensions = array<i32: 0>} : vector<14x7xi32>
    %29 = tpu.iota {dimensions = array<i32: 1>} : vector<14x7xi32>
    %c2_i32_4 = arith.constant 2 : i32
    %30 = vector.broadcast %c2_i32_4 : i32 to vector<14x7xi32>
    %31 = arith.muli %30, %29 : vector<14x7xi32>
    %32 = arith.cmpi eq, %28, %31 : vector<14x7xi32>
    %33 = arith.extui %32 : vector<14x7xi1> to vector<14x7xi32>
    %34 = arith.sitofp %33 : vector<14x7xi32> to vector<14x7xf32>
    %c2_i32_5 = arith.constant 2 : i32
    %35 = vector.broadcast %c2_i32_5 : i32 to vector<14x7xi32>
    %36 = arith.muli %35, %29 : vector<14x7xi32>
    %c1_i32_6 = arith.constant 1 : i32
    %37 = vector.broadcast %c1_i32_6 : i32 to vector<14x7xi32>
    %38 = arith.addi %36, %37 : vector<14x7xi32>
    %39 = arith.cmpi eq, %28, %38 : vector<14x7xi32>
    %40 = arith.extui %39 : vector<14x7xi1> to vector<14x7xi32>
    %41 = arith.sitofp %40 : vector<14x7xi32> to vector<14x7xf32>
    %42 = tpu.iota {dimensions = array<i32: 0>} : vector<7x14xi32>
    %43 = tpu.iota {dimensions = array<i32: 1>} : vector<7x14xi32>
    %c2_i32_7 = arith.constant 2 : i32
    %44 = vector.broadcast %c2_i32_7 : i32 to vector<7x14xi32>
    %45 = arith.muli %44, %42 : vector<7x14xi32>
    %46 = arith.cmpi eq, %43, %45 : vector<7x14xi32>
    %47 = arith.extui %46 : vector<7x14xi1> to vector<7x14xi32>
    %48 = arith.sitofp %47 : vector<7x14xi32> to vector<7x14xf32>
    %c2_i32_8 = arith.constant 2 : i32
    %49 = vector.broadcast %c2_i32_8 : i32 to vector<7x14xi32>
    %50 = arith.muli %49, %42 : vector<7x14xi32>
    %c1_i32_9 = arith.constant 1 : i32
    %51 = vector.broadcast %c1_i32_9 : i32 to vector<7x14xi32>
    %52 = arith.addi %50, %51 : vector<7x14xi32>
    %53 = arith.cmpi eq, %43, %52 : vector<7x14xi32>
    %54 = arith.extui %53 : vector<7x14xi1> to vector<7x14xi32>
    %55 = arith.sitofp %54 : vector<7x14xi32> to vector<7x14xf32>
    %cst = arith.constant 0.000000e+00 : f32
    %56 = vector.broadcast %cst : f32 to vector<8x16x16xf32>
    %c0 = arith.constant 0 : index
    %c0_10 = arith.constant 0 : index
    %c0_11 = arith.constant 0 : index
    %57 = vector.load %arg7[%c0, %c0_10, %c0_11] : memref<8x16x16xf32, #tpu.memory_space<vmem>>, vector<8x16x16xf32>
    tpu.vector_store %arg7[%c0, %c0_10, %c0_11], %56 {strides = array<i32>} : memref<8x16x16xf32, #tpu.memory_space<vmem>>, vector<8x16x16xf32>,
    %c0_i32 = arith.constant 0 : i32
    %c8_i32 = arith.constant 8 : i32
    %58 = arith.addi %c0_i32, %c8_i32 : i32
    %c1_i32_12 = arith.constant 1 : i32
    scf.for %arg8 = %c0_i32 to %58 step %c1_i32_12  : i32 {
      %cst_18 = arith.constant 0.000000e+00 : f32
      %60 = vector.broadcast %cst_18 : f32 to vector<28x28xf32>
      %c27_i32 = arith.constant 27 : i32
      %61 = arith.muli %arg8, %c27_i32 : i32
      %c0_i32_19 = arith.constant 0 : i32
      %62 = arith.addi %61, %c0_i32_19 : i32
      %c0_i32_20 = arith.constant 0 : i32
      %63 = arith.addi %62, %c0_i32_20 : i32
      %c0_i32_21 = arith.constant 0 : i32
      %64 = arith.addi %63, %c0_i32_21 : i32
      %65 = arith.index_cast %64 : i32 to index
      %66 = memref.load %arg2[%65] : memref<216xf32, #tpu.memory_space<smem>>
      %c0_22 = arith.constant 0 : index
      %c0_23 = arith.constant 0 : index
      %c0_24 = arith.constant 0 : index
      %c0_25 = arith.constant 0 : index
      %67 = vector.load %arg1[%c0_22, %c0_23, %c0_24, %c0_25] : memref<1x3x30x30xf32, #tpu.memory_space<vmem>>, vector<1x1x28x28xf32>
      %68 = vector.shape_cast %67 : vector<1x1x28x28xf32> to vector<28x28xf32>
      %69 = vector.broadcast %66 : f32 to vector<28x28xf32>
      %70 = arith.mulf %69, %68 : vector<28x28xf32>
      %71 = arith.addf %60, %70 : vector<28x28xf32>
      %c27_i32_26 = arith.constant 27 : i32
      %72 = arith.muli %arg8, %c27_i32_26 : i32
      %c0_i32_27 = arith.constant 0 : i32
      %73 = arith.addi %72, %c0_i32_27 : i32
      %c0_i32_28 = arith.constant 0 : i32
      %74 = arith.addi %73, %c0_i32_28 : i32
      %c1_i32_29 = arith.constant 1 : i32
      %75 = arith.addi %74, %c1_i32_29 : i32
      %76 = arith.index_cast %75 : i32 to index
      %77 = memref.load %arg2[%76] : memref<216xf32, #tpu.memory_space<smem>>
      %c0_30 = arith.constant 0 : index
      %c0_31 = arith.constant 0 : index
      %c0_32 = arith.constant 0 : index
      %c1 = arith.constant 1 : index
      %78 = vector.load %arg1[%c0_30, %c0_31, %c0_32, %c1] : memref<1x3x30x30xf32, #tpu.memory_space<vmem>>, vector<1x1x28x28xf32>
      %79 = vector.shape_cast %78 : vector<1x1x28x28xf32> to vector<28x28xf32>
      %80 = vector.broadcast %77 : f32 to vector<28x28xf32>
      %81 = arith.mulf %80, %79 : vector<28x28xf32>
      %82 = arith.addf %71, %81 : vector<28x28xf32>
      %c27_i32_33 = arith.constant 27 : i32
      %83 = arith.muli %arg8, %c27_i32_33 : i32
      %c0_i32_34 = arith.constant 0 : i32
      %84 = arith.addi %83, %c0_i32_34 : i32
      %c0_i32_35 = arith.constant 0 : i32
      %85 = arith.addi %84, %c0_i32_35 : i32
      %c2_i32_36 = arith.constant 2 : i32
      %86 = arith.addi %85, %c2_i32_36 : i32
      %87 = arith.index_cast %86 : i32 to index
      %88 = memref.load %arg2[%87] : memref<216xf32, #tpu.memory_space<smem>>
      %c0_37 = arith.constant 0 : index
      %c0_38 = arith.constant 0 : index
      %c0_39 = arith.constant 0 : index
      %c2 = arith.constant 2 : index
      %89 = vector.load %arg1[%c0_37, %c0_38, %c0_39, %c2] : memref<1x3x30x30xf32, #tpu.memory_space<vmem>>, vector<1x1x28x28xf32>
      %90 = vector.shape_cast %89 : vector<1x1x28x28xf32> to vector<28x28xf32>
      %91 = vector.broadcast %88 : f32 to vector<28x28xf32>
      %92 = arith.mulf %91, %90 : vector<28x28xf32>
      %93 = arith.addf %82, %92 : vector<28x28xf32>
      %c27_i32_40 = arith.constant 27 : i32
      %94 = arith.muli %arg8, %c27_i32_40 : i32
      %c0_i32_41 = arith.constant 0 : i32
      %95 = arith.addi %94, %c0_i32_41 : i32
      %c3_i32 = arith.constant 3 : i32
      %96 = arith.addi %95, %c3_i32 : i32
      %c0_i32_42 = arith.constant 0 : i32
      %97 = arith.addi %96, %c0_i32_42 : i32
      %98 = arith.index_cast %97 : i32 to index
      %99 = memref.load %arg2[%98] : memref<216xf32, #tpu.memory_space<smem>>
      %c0_43 = arith.constant 0 : index
      %c0_44 = arith.constant 0 : index
      %c1_45 = arith.constant 1 : index
      %c0_46 = arith.constant 0 : index
      %100 = vector.load %arg1[%c0_43, %c0_44, %c1_45, %c0_46] : memref<1x3x30x30xf32, #tpu.memory_space<vmem>>, vector<1x1x28x28xf32>
      %101 = vector.shape_cast %100 : vector<1x1x28x28xf32> to vector<28x28xf32>
      %102 = vector.broadcast %99 : f32 to vector<28x28xf32>
      %103 = arith.mulf %102, %101 : vector<28x28xf32>
      %104 = arith.addf %93, %103 : vector<28x28xf32>
      %c27_i32_47 = arith.constant 27 : i32
      %105 = arith.muli %arg8, %c27_i32_47 : i32
      %c0_i32_48 = arith.constant 0 : i32
      %106 = arith.addi %105, %c0_i32_48 : i32
      %c3_i32_49 = arith.constant 3 : i32
      %107 = arith.addi %106, %c3_i32_49 : i32
      %c1_i32_50 = arith.constant 1 : i32
      %108 = arith.addi %107, %c1_i32_50 : i32
      %109 = arith.index_cast %108 : i32 to index
      %110 = memref.load %arg2[%109] : memref<216xf32, #tpu.memory_space<smem>>
      %c0_51 = arith.constant 0 : index
      %c0_52 = arith.constant 0 : index
      %c1_53 = arith.constant 1 : index
      %c1_54 = arith.constant 1 : index
      %111 = vector.load %arg1[%c0_51, %c0_52, %c1_53, %c1_54] : memref<1x3x30x30xf32, #tpu.memory_space<vmem>>, vector<1x1x28x28xf32>
      %112 = vector.shape_cast %111 : vector<1x1x28x28xf32> to vector<28x28xf32>
      %113 = vector.broadcast %110 : f32 to vector<28x28xf32>
      %114 = arith.mulf %113, %112 : vector<28x28xf32>
      %115 = arith.addf %104, %114 : vector<28x28xf32>
      %c27_i32_55 = arith.constant 27 : i32
      %116 = arith.muli %arg8, %c27_i32_55 : i32
      %c0_i32_56 = arith.constant 0 : i32
      %117 = arith.addi %116, %c0_i32_56 : i32
      %c3_i32_57 = arith.constant 3 : i32
      %118 = arith.addi %117, %c3_i32_57 : i32
      %c2_i32_58 = arith.constant 2 : i32
      %119 = arith.addi %118, %c2_i32_58 : i32
      %120 = arith.index_cast %119 : i32 to index
      %121 = memref.load %arg2[%120] : memref<216xf32, #tpu.memory_space<smem>>
      %c0_59 = arith.constant 0 : index
      %c0_60 = arith.constant 0 : index
      %c1_61 = arith.constant 1 : index
      %c2_62 = arith.constant 2 : index
      %122 = vector.load %arg1[%c0_59, %c0_60, %c1_61, %c2_62] : memref<1x3x30x30xf32, #tpu.memory_space<vmem>>, vector<1x1x28x28xf32>
      %123 = vector.shape_cast %122 : vector<1x1x28x28xf32> to vector<28x28xf32>
      %124 = vector.broadcast %121 : f32 to vector<28x28xf32>
      %125 = arith.mulf %124, %123 : vector<28x28xf32>
      %126 = arith.addf %115, %125 : vector<28x28xf32>
      %c27_i32_63 = arith.constant 27 : i32
      %127 = arith.muli %arg8, %c27_i32_63 : i32
      %c0_i32_64 = arith.constant 0 : i32
      %128 = arith.addi %127, %c0_i32_64 : i32
      %c6_i32 = arith.constant 6 : i32
      %129 = arith.addi %128, %c6_i32 : i32
      %c0_i32_65 = arith.constant 0 : i32
      %130 = arith.addi %129, %c0_i32_65 : i32
      %131 = arith.index_cast %130 : i32 to index
      %132 = memref.load %arg2[%131] : memref<216xf32, #tpu.memory_space<smem>>
      %c0_66 = arith.constant 0 : index
      %c0_67 = arith.constant 0 : index
      %c2_68 = arith.constant 2 : index
      %c0_69 = arith.constant 0 : index
      %133 = vector.load %arg1[%c0_66, %c0_67, %c2_68, %c0_69] : memref<1x3x30x30xf32, #tpu.memory_space<vmem>>, vector<1x1x28x28xf32>
      %134 = vector.shape_cast %133 : vector<1x1x28x28xf32> to vector<28x28xf32>
      %135 = vector.broadcast %132 : f32 to vector<28x28xf32>
      %136 = arith.mulf %135, %134 : vector<28x28xf32>
      %137 = arith.addf %126, %136 : vector<28x28xf32>
      %c27_i32_70 = arith.constant 27 : i32
      %138 = arith.muli %arg8, %c27_i32_70 : i32
      %c0_i32_71 = arith.constant 0 : i32
      %139 = arith.addi %138, %c0_i32_71 : i32
      %c6_i32_72 = arith.constant 6 : i32
      %140 = arith.addi %139, %c6_i32_72 : i32
      %c1_i32_73 = arith.constant 1 : i32
      %141 = arith.addi %140, %c1_i32_73 : i32
      %142 = arith.index_cast %141 : i32 to index
      %143 = memref.load %arg2[%142] : memref<216xf32, #tpu.memory_space<smem>>
      %c0_74 = arith.constant 0 : index
      %c0_75 = arith.constant 0 : index
      %c2_76 = arith.constant 2 : index
      %c1_77 = arith.constant 1 : index
      %144 = vector.load %arg1[%c0_74, %c0_75, %c2_76, %c1_77] : memref<1x3x30x30xf32, #tpu.memory_space<vmem>>, vector<1x1x28x28xf32>
      %145 = vector.shape_cast %144 : vector<1x1x28x28xf32> to vector<28x28xf32>
      %146 = vector.broadcast %143 : f32 to vector<28x28xf32>
      %147 = arith.mulf %146, %145 : vector<28x28xf32>
      %148 = arith.addf %137, %147 : vector<28x28xf32>
      %c27_i32_78 = arith.constant 27 : i32
      %149 = arith.muli %arg8, %c27_i32_78 : i32
      %c0_i32_79 = arith.constant 0 : i32
      %150 = arith.addi %149, %c0_i32_79 : i32
      %c6_i32_80 = arith.constant 6 : i32
      %151 = arith.addi %150, %c6_i32_80 : i32
      %c2_i32_81 = arith.constant 2 : i32
      %152 = arith.addi %151, %c2_i32_81 : i32
      %153 = arith.index_cast %152 : i32 to index
      %154 = memref.load %arg2[%153] : memref<216xf32, #tpu.memory_space<smem>>
      %c0_82 = arith.constant 0 : index
      %c0_83 = arith.constant 0 : index
      %c2_84 = arith.constant 2 : index
      %c2_85 = arith.constant 2 : index
      %155 = vector.load %arg1[%c0_82, %c0_83, %c2_84, %c2_85] : memref<1x3x30x30xf32, #tpu.memory_space<vmem>>, vector<1x1x28x28xf32>
      %156 = vector.shape_cast %155 : vector<1x1x28x28xf32> to vector<28x28xf32>
      %157 = vector.broadcast %154 : f32 to vector<28x28xf32>
      %158 = arith.mulf %157, %156 : vector<28x28xf32>
      %159 = arith.addf %148, %158 : vector<28x28xf32>
      %c27_i32_86 = arith.constant 27 : i32
      %160 = arith.muli %arg8, %c27_i32_86 : i32
      %c9_i32 = arith.constant 9 : i32
      %161 = arith.addi %160, %c9_i32 : i32
      %c0_i32_87 = arith.constant 0 : i32
      %162 = arith.addi %161, %c0_i32_87 : i32
      %c0_i32_88 = arith.constant 0 : i32
      %163 = arith.addi %162, %c0_i32_88 : i32
      %164 = arith.index_cast %163 : i32 to index
      %165 = memref.load %arg2[%164] : memref<216xf32, #tpu.memory_space<smem>>
      %c0_89 = arith.constant 0 : index
      %c1_90 = arith.constant 1 : index
      %c0_91 = arith.constant 0 : index
      %c0_92 = arith.constant 0 : index
      %166 = vector.load %arg1[%c0_89, %c1_90, %c0_91, %c0_92] : memref<1x3x30x30xf32, #tpu.memory_space<vmem>>, vector<1x1x28x28xf32>
      %167 = vector.shape_cast %166 : vector<1x1x28x28xf32> to vector<28x28xf32>
      %168 = vector.broadcast %165 : f32 to vector<28x28xf32>
      %169 = arith.mulf %168, %167 : vector<28x28xf32>
      %170 = arith.addf %159, %169 : vector<28x28xf32>
      %c27_i32_93 = arith.constant 27 : i32
      %171 = arith.muli %arg8, %c27_i32_93 : i32
      %c9_i32_94 = arith.constant 9 : i32
      %172 = arith.addi %171, %c9_i32_94 : i32
      %c0_i32_95 = arith.constant 0 : i32
      %173 = arith.addi %172, %c0_i32_95 : i32
      %c1_i32_96 = arith.constant 1 : i32
      %174 = arith.addi %173, %c1_i32_96 : i32
      %175 = arith.index_cast %174 : i32 to index
      %176 = memref.load %arg2[%175] : memref<216xf32, #tpu.memory_space<smem>>
      %c0_97 = arith.constant 0 : index
      %c1_98 = arith.constant 1 : index
      %c0_99 = arith.constant 0 : index
      %c1_100 = arith.constant 1 : index
      %177 = vector.load %arg1[%c0_97, %c1_98, %c0_99, %c1_100] : memref<1x3x30x30xf32, #tpu.memory_space<vmem>>, vector<1x1x28x28xf32>
      %178 = vector.shape_cast %177 : vector<1x1x28x28xf32> to vector<28x28xf32>
      %179 = vector.broadcast %176 : f32 to vector<28x28xf32>
      %180 = arith.mulf %179, %178 : vector<28x28xf32>
      %181 = arith.addf %170, %180 : vector<28x28xf32>
      %c27_i32_101 = arith.constant 27 : i32
      %182 = arith.muli %arg8, %c27_i32_101 : i32
      %c9_i32_102 = arith.constant 9 : i32
      %183 = arith.addi %182, %c9_i32_102 : i32
      %c0_i32_103 = arith.constant 0 : i32
      %184 = arith.addi %183, %c0_i32_103 : i32
      %c2_i32_104 = arith.constant 2 : i32
      %185 = arith.addi %184, %c2_i32_104 : i32
      %186 = arith.index_cast %185 : i32 to index
      %187 = memref.load %arg2[%186] : memref<216xf32, #tpu.memory_space<smem>>
      %c0_105 = arith.constant 0 : index
      %c1_106 = arith.constant 1 : index
      %c0_107 = arith.constant 0 : index
      %c2_108 = arith.constant 2 : index
      %188 = vector.load %arg1[%c0_105, %c1_106, %c0_107, %c2_108] : memref<1x3x30x30xf32, #tpu.memory_space<vmem>>, vector<1x1x28x28xf32>
      %189 = vector.shape_cast %188 : vector<1x1x28x28xf32> to vector<28x28xf32>
      %190 = vector.broadcast %187 : f32 to vector<28x28xf32>
      %191 = arith.mulf %190, %189 : vector<28x28xf32>
      %192 = arith.addf %181, %191 : vector<28x28xf32>
      %c27_i32_109 = arith.constant 27 : i32
      %193 = arith.muli %arg8, %c27_i32_109 : i32
      %c9_i32_110 = arith.constant 9 : i32
      %194 = arith.addi %193, %c9_i32_110 : i32
      %c3_i32_111 = arith.constant 3 : i32
      %195 = arith.addi %194, %c3_i32_111 : i32
      %c0_i32_112 = arith.constant 0 : i32
      %196 = arith.addi %195, %c0_i32_112 : i32
      %197 = arith.index_cast %196 : i32 to index
      %198 = memref.load %arg2[%197] : memref<216xf32, #tpu.memory_space<smem>>
      %c0_113 = arith.constant 0 : index
      %c1_114 = arith.constant 1 : index
      %c1_115 = arith.constant 1 : index
      %c0_116 = arith.constant 0 : index
      %199 = vector.load %arg1[%c0_113, %c1_114, %c1_115, %c0_116] : memref<1x3x30x30xf32, #tpu.memory_space<vmem>>, vector<1x1x28x28xf32>
      %200 = vector.shape_cast %199 : vector<1x1x28x28xf32> to vector<28x28xf32>
      %201 = vector.broadcast %198 : f32 to vector<28x28xf32>
      %202 = arith.mulf %201, %200 : vector<28x28xf32>
      %203 = arith.addf %192, %202 : vector<28x28xf32>
      %c27_i32_117 = arith.constant 27 : i32
      %204 = arith.muli %arg8, %c27_i32_117 : i32
      %c9_i32_118 = arith.constant 9 : i32
      %205 = arith.addi %204, %c9_i32_118 : i32
      %c3_i32_119 = arith.constant 3 : i32
      %206 = arith.addi %205, %c3_i32_119 : i32
      %c1_i32_120 = arith.constant 1 : i32
      %207 = arith.addi %206, %c1_i32_120 : i32
      %208 = arith.index_cast %207 : i32 to index
      %209 = memref.load %arg2[%208] : memref<216xf32, #tpu.memory_space<smem>>
      %c0_121 = arith.constant 0 : index
      %c1_122 = arith.constant 1 : index
      %c1_123 = arith.constant 1 : index
      %c1_124 = arith.constant 1 : index
      %210 = vector.load %arg1[%c0_121, %c1_122, %c1_123, %c1_124] : memref<1x3x30x30xf32, #tpu.memory_space<vmem>>, vector<1x1x28x28xf32>
      %211 = vector.shape_cast %210 : vector<1x1x28x28xf32> to vector<28x28xf32>
      %212 = vector.broadcast %209 : f32 to vector<28x28xf32>
      %213 = arith.mulf %212, %211 : vector<28x28xf32>
      %214 = arith.addf %203, %213 : vector<28x28xf32>
      %c27_i32_125 = arith.constant 27 : i32
      %215 = arith.muli %arg8, %c27_i32_125 : i32
      %c9_i32_126 = arith.constant 9 : i32
      %216 = arith.addi %215, %c9_i32_126 : i32
      %c3_i32_127 = arith.constant 3 : i32
      %217 = arith.addi %216, %c3_i32_127 : i32
      %c2_i32_128 = arith.constant 2 : i32
      %218 = arith.addi %217, %c2_i32_128 : i32
      %219 = arith.index_cast %218 : i32 to index
      %220 = memref.load %arg2[%219] : memref<216xf32, #tpu.memory_space<smem>>
      %c0_129 = arith.constant 0 : index
      %c1_130 = arith.constant 1 : index
      %c1_131 = arith.constant 1 : index
      %c2_132 = arith.constant 2 : index
      %221 = vector.load %arg1[%c0_129, %c1_130, %c1_131, %c2_132] : memref<1x3x30x30xf32, #tpu.memory_space<vmem>>, vector<1x1x28x28xf32>
      %222 = vector.shape_cast %221 : vector<1x1x28x28xf32> to vector<28x28xf32>
      %223 = vector.broadcast %220 : f32 to vector<28x28xf32>
      %224 = arith.mulf %223, %222 : vector<28x28xf32>
      %225 = arith.addf %214, %224 : vector<28x28xf32>
      %c27_i32_133 = arith.constant 27 : i32
      %226 = arith.muli %arg8, %c27_i32_133 : i32
      %c9_i32_134 = arith.constant 9 : i32
      %227 = arith.addi %226, %c9_i32_134 : i32
      %c6_i32_135 = arith.constant 6 : i32
      %228 = arith.addi %227, %c6_i32_135 : i32
      %c0_i32_136 = arith.constant 0 : i32
      %229 = arith.addi %228, %c0_i32_136 : i32
      %230 = arith.index_cast %229 : i32 to index
      %231 = memref.load %arg2[%230] : memref<216xf32, #tpu.memory_space<smem>>
      %c0_137 = arith.constant 0 : index
      %c1_138 = arith.constant 1 : index
      %c2_139 = arith.constant 2 : index
      %c0_140 = arith.constant 0 : index
      %232 = vector.load %arg1[%c0_137, %c1_138, %c2_139, %c0_140] : memref<1x3x30x30xf32, #tpu.memory_space<vmem>>, vector<1x1x28x28xf32>
      %233 = vector.shape_cast %232 : vector<1x1x28x28xf32> to vector<28x28xf32>
      %234 = vector.broadcast %231 : f32 to vector<28x28xf32>
      %235 = arith.mulf %234, %233 : vector<28x28xf32>
      %236 = arith.addf %225, %235 : vector<28x28xf32>
      %c27_i32_141 = arith.constant 27 : i32
      %237 = arith.muli %arg8, %c27_i32_141 : i32
      %c9_i32_142 = arith.constant 9 : i32
      %238 = arith.addi %237, %c9_i32_142 : i32
      %c6_i32_143 = arith.constant 6 : i32
      %239 = arith.addi %238, %c6_i32_143 : i32
      %c1_i32_144 = arith.constant 1 : i32
      %240 = arith.addi %239, %c1_i32_144 : i32
      %241 = arith.index_cast %240 : i32 to index
      %242 = memref.load %arg2[%241] : memref<216xf32, #tpu.memory_space<smem>>
      %c0_145 = arith.constant 0 : index
      %c1_146 = arith.constant 1 : index
      %c2_147 = arith.constant 2 : index
      %c1_148 = arith.constant 1 : index
      %243 = vector.load %arg1[%c0_145, %c1_146, %c2_147, %c1_148] : memref<1x3x30x30xf32, #tpu.memory_space<vmem>>, vector<1x1x28x28xf32>
      %244 = vector.shape_cast %243 : vector<1x1x28x28xf32> to vector<28x28xf32>
      %245 = vector.broadcast %242 : f32 to vector<28x28xf32>
      %246 = arith.mulf %245, %244 : vector<28x28xf32>
      %247 = arith.addf %236, %246 : vector<28x28xf32>
      %c27_i32_149 = arith.constant 27 : i32
      %248 = arith.muli %arg8, %c27_i32_149 : i32
      %c9_i32_150 = arith.constant 9 : i32
      %249 = arith.addi %248, %c9_i32_150 : i32
      %c6_i32_151 = arith.constant 6 : i32
      %250 = arith.addi %249, %c6_i32_151 : i32
      %c2_i32_152 = arith.constant 2 : i32
      %251 = arith.addi %250, %c2_i32_152 : i32
      %252 = arith.index_cast %251 : i32 to index
      %253 = memref.load %arg2[%252] : memref<216xf32, #tpu.memory_space<smem>>
      %c0_153 = arith.constant 0 : index
      %c1_154 = arith.constant 1 : index
      %c2_155 = arith.constant 2 : index
      %c2_156 = arith.constant 2 : index
      %254 = vector.load %arg1[%c0_153, %c1_154, %c2_155, %c2_156] : memref<1x3x30x30xf32, #tpu.memory_space<vmem>>, vector<1x1x28x28xf32>
      %255 = vector.shape_cast %254 : vector<1x1x28x28xf32> to vector<28x28xf32>
      %256 = vector.broadcast %253 : f32 to vector<28x28xf32>
      %257 = arith.mulf %256, %255 : vector<28x28xf32>
      %258 = arith.addf %247, %257 : vector<28x28xf32>
      %c27_i32_157 = arith.constant 27 : i32
      %259 = arith.muli %arg8, %c27_i32_157 : i32
      %c18_i32 = arith.constant 18 : i32
      %260 = arith.addi %259, %c18_i32 : i32
      %c0_i32_158 = arith.constant 0 : i32
      %261 = arith.addi %260, %c0_i32_158 : i32
      %c0_i32_159 = arith.constant 0 : i32
      %262 = arith.addi %261, %c0_i32_159 : i32
      %263 = arith.index_cast %262 : i32 to index
      %264 = memref.load %arg2[%263] : memref<216xf32, #tpu.memory_space<smem>>
      %c0_160 = arith.constant 0 : index
      %c2_161 = arith.constant 2 : index
      %c0_162 = arith.constant 0 : index
      %c0_163 = arith.constant 0 : index
      %265 = vector.load %arg1[%c0_160, %c2_161, %c0_162, %c0_163] : memref<1x3x30x30xf32, #tpu.memory_space<vmem>>, vector<1x1x28x28xf32>
      %266 = vector.shape_cast %265 : vector<1x1x28x28xf32> to vector<28x28xf32>
      %267 = vector.broadcast %264 : f32 to vector<28x28xf32>
      %268 = arith.mulf %267, %266 : vector<28x28xf32>
      %269 = arith.addf %258, %268 : vector<28x28xf32>
      %c27_i32_164 = arith.constant 27 : i32
      %270 = arith.muli %arg8, %c27_i32_164 : i32
      %c18_i32_165 = arith.constant 18 : i32
      %271 = arith.addi %270, %c18_i32_165 : i32
      %c0_i32_166 = arith.constant 0 : i32
      %272 = arith.addi %271, %c0_i32_166 : i32
      %c1_i32_167 = arith.constant 1 : i32
      %273 = arith.addi %272, %c1_i32_167 : i32
      %274 = arith.index_cast %273 : i32 to index
      %275 = memref.load %arg2[%274] : memref<216xf32, #tpu.memory_space<smem>>
      %c0_168 = arith.constant 0 : index
      %c2_169 = arith.constant 2 : index
      %c0_170 = arith.constant 0 : index
      %c1_171 = arith.constant 1 : index
      %276 = vector.load %arg1[%c0_168, %c2_169, %c0_170, %c1_171] : memref<1x3x30x30xf32, #tpu.memory_space<vmem>>, vector<1x1x28x28xf32>
      %277 = vector.shape_cast %276 : vector<1x1x28x28xf32> to vector<28x28xf32>
      %278 = vector.broadcast %275 : f32 to vector<28x28xf32>
      %279 = arith.mulf %278, %277 : vector<28x28xf32>
      %280 = arith.addf %269, %279 : vector<28x28xf32>
      %c27_i32_172 = arith.constant 27 : i32
      %281 = arith.muli %arg8, %c27_i32_172 : i32
      %c18_i32_173 = arith.constant 18 : i32
      %282 = arith.addi %281, %c18_i32_173 : i32
      %c0_i32_174 = arith.constant 0 : i32
      %283 = arith.addi %282, %c0_i32_174 : i32
      %c2_i32_175 = arith.constant 2 : i32
      %284 = arith.addi %283, %c2_i32_175 : i32
      %285 = arith.index_cast %284 : i32 to index
      %286 = memref.load %arg2[%285] : memref<216xf32, #tpu.memory_space<smem>>
      %c0_176 = arith.constant 0 : index
      %c2_177 = arith.constant 2 : index
      %c0_178 = arith.constant 0 : index
      %c2_179 = arith.constant 2 : index
      %287 = vector.load %arg1[%c0_176, %c2_177, %c0_178, %c2_179] : memref<1x3x30x30xf32, #tpu.memory_space<vmem>>, vector<1x1x28x28xf32>
      %288 = vector.shape_cast %287 : vector<1x1x28x28xf32> to vector<28x28xf32>
      %289 = vector.broadcast %286 : f32 to vector<28x28xf32>
      %290 = arith.mulf %289, %288 : vector<28x28xf32>
      %291 = arith.addf %280, %290 : vector<28x28xf32>
      %c27_i32_180 = arith.constant 27 : i32
      %292 = arith.muli %arg8, %c27_i32_180 : i32
      %c18_i32_181 = arith.constant 18 : i32
      %293 = arith.addi %292, %c18_i32_181 : i32
      %c3_i32_182 = arith.constant 3 : i32
      %294 = arith.addi %293, %c3_i32_182 : i32
      %c0_i32_183 = arith.constant 0 : i32
      %295 = arith.addi %294, %c0_i32_183 : i32
      %296 = arith.index_cast %295 : i32 to index
      %297 = memref.load %arg2[%296] : memref<216xf32, #tpu.memory_space<smem>>
      %c0_184 = arith.constant 0 : index
      %c2_185 = arith.constant 2 : index
      %c1_186 = arith.constant 1 : index
      %c0_187 = arith.constant 0 : index
      %298 = vector.load %arg1[%c0_184, %c2_185, %c1_186, %c0_187] : memref<1x3x30x30xf32, #tpu.memory_space<vmem>>, vector<1x1x28x28xf32>
      %299 = vector.shape_cast %298 : vector<1x1x28x28xf32> to vector<28x28xf32>
      %300 = vector.broadcast %297 : f32 to vector<28x28xf32>
      %301 = arith.mulf %300, %299 : vector<28x28xf32>
      %302 = arith.addf %291, %301 : vector<28x28xf32>
      %c27_i32_188 = arith.constant 27 : i32
      %303 = arith.muli %arg8, %c27_i32_188 : i32
      %c18_i32_189 = arith.constant 18 : i32
      %304 = arith.addi %303, %c18_i32_189 : i32
      %c3_i32_190 = arith.constant 3 : i32
      %305 = arith.addi %304, %c3_i32_190 : i32
      %c1_i32_191 = arith.constant 1 : i32
      %306 = arith.addi %305, %c1_i32_191 : i32
      %307 = arith.index_cast %306 : i32 to index
      %308 = memref.load %arg2[%307] : memref<216xf32, #tpu.memory_space<smem>>
      %c0_192 = arith.constant 0 : index
      %c2_193 = arith.constant 2 : index
      %c1_194 = arith.constant 1 : index
      %c1_195 = arith.constant 1 : index
      %309 = vector.load %arg1[%c0_192, %c2_193, %c1_194, %c1_195] : memref<1x3x30x30xf32, #tpu.memory_space<vmem>>, vector<1x1x28x28xf32>
      %310 = vector.shape_cast %309 : vector<1x1x28x28xf32> to vector<28x28xf32>
      %311 = vector.broadcast %308 : f32 to vector<28x28xf32>
      %312 = arith.mulf %311, %310 : vector<28x28xf32>
      %313 = arith.addf %302, %312 : vector<28x28xf32>
      %c27_i32_196 = arith.constant 27 : i32
      %314 = arith.muli %arg8, %c27_i32_196 : i32
      %c18_i32_197 = arith.constant 18 : i32
      %315 = arith.addi %314, %c18_i32_197 : i32
      %c3_i32_198 = arith.constant 3 : i32
      %316 = arith.addi %315, %c3_i32_198 : i32
      %c2_i32_199 = arith.constant 2 : i32
      %317 = arith.addi %316, %c2_i32_199 : i32
      %318 = arith.index_cast %317 : i32 to index
      %319 = memref.load %arg2[%318] : memref<216xf32, #tpu.memory_space<smem>>
      %c0_200 = arith.constant 0 : index
      %c2_201 = arith.constant 2 : index
      %c1_202 = arith.constant 1 : index
      %c2_203 = arith.constant 2 : index
      %320 = vector.load %arg1[%c0_200, %c2_201, %c1_202, %c2_203] : memref<1x3x30x30xf32, #tpu.memory_space<vmem>>, vector<1x1x28x28xf32>
      %321 = vector.shape_cast %320 : vector<1x1x28x28xf32> to vector<28x28xf32>
      %322 = vector.broadcast %319 : f32 to vector<28x28xf32>
      %323 = arith.mulf %322, %321 : vector<28x28xf32>
      %324 = arith.addf %313, %323 : vector<28x28xf32>
      %c27_i32_204 = arith.constant 27 : i32
      %325 = arith.muli %arg8, %c27_i32_204 : i32
      %c18_i32_205 = arith.constant 18 : i32
      %326 = arith.addi %325, %c18_i32_205 : i32
      %c6_i32_206 = arith.constant 6 : i32
      %327 = arith.addi %326, %c6_i32_206 : i32
      %c0_i32_207 = arith.constant 0 : i32
      %328 = arith.addi %327, %c0_i32_207 : i32
      %329 = arith.index_cast %328 : i32 to index
      %330 = memref.load %arg2[%329] : memref<216xf32, #tpu.memory_space<smem>>
      %c0_208 = arith.constant 0 : index
      %c2_209 = arith.constant 2 : index
      %c2_210 = arith.constant 2 : index
      %c0_211 = arith.constant 0 : index
      %331 = vector.load %arg1[%c0_208, %c2_209, %c2_210, %c0_211] : memref<1x3x30x30xf32, #tpu.memory_space<vmem>>, vector<1x1x28x28xf32>
      %332 = vector.shape_cast %331 : vector<1x1x28x28xf32> to vector<28x28xf32>
      %333 = vector.broadcast %330 : f32 to vector<28x28xf32>
      %334 = arith.mulf %333, %332 : vector<28x28xf32>
      %335 = arith.addf %324, %334 : vector<28x28xf32>
      %c27_i32_212 = arith.constant 27 : i32
      %336 = arith.muli %arg8, %c27_i32_212 : i32
      %c18_i32_213 = arith.constant 18 : i32
      %337 = arith.addi %336, %c18_i32_213 : i32
      %c6_i32_214 = arith.constant 6 : i32
      %338 = arith.addi %337, %c6_i32_214 : i32
      %c1_i32_215 = arith.constant 1 : i32
      %339 = arith.addi %338, %c1_i32_215 : i32
      %340 = arith.index_cast %339 : i32 to index
      %341 = memref.load %arg2[%340] : memref<216xf32, #tpu.memory_space<smem>>
      %c0_216 = arith.constant 0 : index
      %c2_217 = arith.constant 2 : index
      %c2_218 = arith.constant 2 : index
      %c1_219 = arith.constant 1 : index
      %342 = vector.load %arg1[%c0_216, %c2_217, %c2_218, %c1_219] : memref<1x3x30x30xf32, #tpu.memory_space<vmem>>, vector<1x1x28x28xf32>
      %343 = vector.shape_cast %342 : vector<1x1x28x28xf32> to vector<28x28xf32>
      %344 = vector.broadcast %341 : f32 to vector<28x28xf32>
      %345 = arith.mulf %344, %343 : vector<28x28xf32>
      %346 = arith.addf %335, %345 : vector<28x28xf32>
      %c27_i32_220 = arith.constant 27 : i32
      %347 = arith.muli %arg8, %c27_i32_220 : i32
      %c18_i32_221 = arith.constant 18 : i32
      %348 = arith.addi %347, %c18_i32_221 : i32
      %c6_i32_222 = arith.constant 6 : i32
      %349 = arith.addi %348, %c6_i32_222 : i32
      %c2_i32_223 = arith.constant 2 : i32
      %350 = arith.addi %349, %c2_i32_223 : i32
      %351 = arith.index_cast %350 : i32 to index
      %352 = memref.load %arg2[%351] : memref<216xf32, #tpu.memory_space<smem>>
      %c0_224 = arith.constant 0 : index
      %c2_225 = arith.constant 2 : index
      %c2_226 = arith.constant 2 : index
      %c2_227 = arith.constant 2 : index
      %353 = vector.load %arg1[%c0_224, %c2_225, %c2_226, %c2_227] : memref<1x3x30x30xf32, #tpu.memory_space<vmem>>, vector<1x1x28x28xf32>
      %354 = vector.shape_cast %353 : vector<1x1x28x28xf32> to vector<28x28xf32>
      %355 = vector.broadcast %352 : f32 to vector<28x28xf32>
      %356 = arith.mulf %355, %354 : vector<28x28xf32>
      %357 = arith.addf %346, %356 : vector<28x28xf32>
      %cst_228 = arith.constant dense<0.000000e+00> : vector<14x28xf32>
      %358 = tpu.matmul %20, %357, %cst_228 {dimension_numbers = #tpu.dot_dimension_numbers<[1], [0], [0], [1], [0, 0, 1, 1], [], []>} : vector<14x28xf32>, vector<28x28xf32>, vector<14x28xf32> -> vector<14x28xf32>
      %cst_229 = arith.constant dense<0.000000e+00> : vector<14x28xf32>
      %359 = tpu.matmul %27, %357, %cst_229 {dimension_numbers = #tpu.dot_dimension_numbers<[1], [0], [0], [1], [0, 0, 1, 1], [], []>} : vector<14x28xf32>, vector<28x28xf32>, vector<14x28xf32> -> vector<14x28xf32>
      %360 = arith.maximumf %358, %359 : vector<14x28xf32>
      %cst_230 = arith.constant dense<0.000000e+00> : vector<14x14xf32>
      %361 = tpu.matmul %360, %6, %cst_230 {dimension_numbers = #tpu.dot_dimension_numbers<[1], [0], [0], [1], [0, 0, 1, 1], [], []>} : vector<14x28xf32>, vector<28x14xf32>, vector<14x14xf32> -> vector<14x14xf32>
      %cst_231 = arith.constant dense<0.000000e+00> : vector<14x14xf32>
      %362 = tpu.matmul %360, %13, %cst_231 {dimension_numbers = #tpu.dot_dimension_numbers<[1], [0], [0], [1], [0, 0, 1, 1], [], []>} : vector<14x28xf32>, vector<28x14xf32>, vector<14x14xf32> -> vector<14x14xf32>
      %363 = arith.maximumf %361, %362 : vector<14x14xf32>
      %364 = arith.index_cast %arg8 : i32 to index
      %365 = memref.load %arg3[%364] : memref<8xf32, #tpu.memory_space<smem>>
      %366 = vector.broadcast %365 : f32 to vector<14x14xf32>
      %367 = arith.addf %363, %366 : vector<14x14xf32>
      %cst_232 = arith.constant 0.000000e+00 : f32
      %368 = vector.broadcast %cst_232 : f32 to vector<14x14xf32>
      %369 = arith.maximumf %367, %368 : vector<14x14xf32>
      %370 = arith.index_cast %arg8 : i32 to index
      %c1_233 = arith.constant 1 : index
      %c1_234 = arith.constant 1 : index
      %371 = vector.load %arg7[%370, %c1_233, %c1_234] : memref<8x16x16xf32, #tpu.memory_space<vmem>>, vector<1x14x14xf32>
      %372 = vector.shape_cast %371 : vector<1x14x14xf32> to vector<14x14xf32>
      %373 = vector.shape_cast %369 : vector<14x14xf32> to vector<1x14x14xf32>
      tpu.vector_store %arg7[%370, %c1_233, %c1_234], %373 {strides = array<i32>} : memref<8x16x16xf32, #tpu.memory_space<vmem>>, vector<1x14x14xf32>,
    }
    %c8_i32_13 = arith.constant 8 : i32
    %c0_i32_14 = arith.constant 0 : i32
    %c8_i32_15 = arith.constant 8 : i32
    %59 = arith.addi %c0_i32_14, %c8_i32_15 : i32
    %c1_i32_16 = arith.constant 1 : i32
    scf.for %arg8 = %c0_i32_14 to %59 step %c1_i32_16  : i32 {
      %cst_18 = arith.constant 0.000000e+00 : f32
      %60 = vector.broadcast %cst_18 : f32 to vector<14x14xf32>
      %c72_i32 = arith.constant 72 : i32
      %61 = arith.muli %arg8, %c72_i32 : i32
      %c0_i32_19 = arith.constant 0 : i32
      %62 = arith.addi %61, %c0_i32_19 : i32
      %c0_i32_20 = arith.constant 0 : i32
      %63 = arith.addi %62, %c0_i32_20 : i32
      %c0_i32_21 = arith.constant 0 : i32
      %64 = arith.addi %63, %c0_i32_21 : i32
      %65 = arith.index_cast %64 : i32 to index
      %66 = memref.load %arg4[%65] : memref<576xf32, #tpu.memory_space<smem>>
      %c0_22 = arith.constant 0 : index
      %c0_23 = arith.constant 0 : index
      %c0_24 = arith.constant 0 : index
      %67 = vector.load %arg7[%c0_22, %c0_23, %c0_24] : memref<8x16x16xf32, #tpu.memory_space<vmem>>, vector<1x14x14xf32>
      %68 = vector.shape_cast %67 : vector<1x14x14xf32> to vector<14x14xf32>
      %69 = vector.broadcast %66 : f32 to vector<14x14xf32>
      %70 = arith.mulf %69, %68 : vector<14x14xf32>
      %71 = arith.addf %60, %70 : vector<14x14xf32>
      %c72_i32_25 = arith.constant 72 : i32
      %72 = arith.muli %arg8, %c72_i32_25 : i32
      %c0_i32_26 = arith.constant 0 : i32
      %73 = arith.addi %72, %c0_i32_26 : i32
      %c0_i32_27 = arith.constant 0 : i32
      %74 = arith.addi %73, %c0_i32_27 : i32
      %c1_i32_28 = arith.constant 1 : i32
      %75 = arith.addi %74, %c1_i32_28 : i32
      %76 = arith.index_cast %75 : i32 to index
      %77 = memref.load %arg4[%76] : memref<576xf32, #tpu.memory_space<smem>>
      %c0_29 = arith.constant 0 : index
      %c0_30 = arith.constant 0 : index
      %c1 = arith.constant 1 : index
      %78 = vector.load %arg7[%c0_29, %c0_30, %c1] : memref<8x16x16xf32, #tpu.memory_space<vmem>>, vector<1x14x14xf32>
      %79 = vector.shape_cast %78 : vector<1x14x14xf32> to vector<14x14xf32>
      %80 = vector.broadcast %77 : f32 to vector<14x14xf32>
      %81 = arith.mulf %80, %79 : vector<14x14xf32>
      %82 = arith.addf %71, %81 : vector<14x14xf32>
      %c72_i32_31 = arith.constant 72 : i32
      %83 = arith.muli %arg8, %c72_i32_31 : i32
      %c0_i32_32 = arith.constant 0 : i32
      %84 = arith.addi %83, %c0_i32_32 : i32
      %c0_i32_33 = arith.constant 0 : i32
      %85 = arith.addi %84, %c0_i32_33 : i32
      %c2_i32_34 = arith.constant 2 : i32
      %86 = arith.addi %85, %c2_i32_34 : i32
      %87 = arith.index_cast %86 : i32 to index
      %88 = memref.load %arg4[%87] : memref<576xf32, #tpu.memory_space<smem>>
      %c0_35 = arith.constant 0 : index
      %c0_36 = arith.constant 0 : index
      %c2 = arith.constant 2 : index
      %89 = vector.load %arg7[%c0_35, %c0_36, %c2] : memref<8x16x16xf32, #tpu.memory_space<vmem>>, vector<1x14x14xf32>
      %90 = vector.shape_cast %89 : vector<1x14x14xf32> to vector<14x14xf32>
      %91 = vector.broadcast %88 : f32 to vector<14x14xf32>
      %92 = arith.mulf %91, %90 : vector<14x14xf32>
      %93 = arith.addf %82, %92 : vector<14x14xf32>
      %c72_i32_37 = arith.constant 72 : i32
      %94 = arith.muli %arg8, %c72_i32_37 : i32
      %c0_i32_38 = arith.constant 0 : i32
      %95 = arith.addi %94, %c0_i32_38 : i32
      %c3_i32 = arith.constant 3 : i32
      %96 = arith.addi %95, %c3_i32 : i32
      %c0_i32_39 = arith.constant 0 : i32
      %97 = arith.addi %96, %c0_i32_39 : i32
      %98 = arith.index_cast %97 : i32 to index
      %99 = memref.load %arg4[%98] : memref<576xf32, #tpu.memory_space<smem>>
      %c0_40 = arith.constant 0 : index
      %c1_41 = arith.constant 1 : index
      %c0_42 = arith.constant 0 : index
      %100 = vector.load %arg7[%c0_40, %c1_41, %c0_42] : memref<8x16x16xf32, #tpu.memory_space<vmem>>, vector<1x14x14xf32>
      %101 = vector.shape_cast %100 : vector<1x14x14xf32> to vector<14x14xf32>
      %102 = vector.broadcast %99 : f32 to vector<14x14xf32>
      %103 = arith.mulf %102, %101 : vector<14x14xf32>
      %104 = arith.addf %93, %103 : vector<14x14xf32>
      %c72_i32_43 = arith.constant 72 : i32
      %105 = arith.muli %arg8, %c72_i32_43 : i32
      %c0_i32_44 = arith.constant 0 : i32
      %106 = arith.addi %105, %c0_i32_44 : i32
      %c3_i32_45 = arith.constant 3 : i32
      %107 = arith.addi %106, %c3_i32_45 : i32
      %c1_i32_46 = arith.constant 1 : i32
      %108 = arith.addi %107, %c1_i32_46 : i32
      %109 = arith.index_cast %108 : i32 to index
      %110 = memref.load %arg4[%109] : memref<576xf32, #tpu.memory_space<smem>>
      %c0_47 = arith.constant 0 : index
      %c1_48 = arith.constant 1 : index
      %c1_49 = arith.constant 1 : index
      %111 = vector.load %arg7[%c0_47, %c1_48, %c1_49] : memref<8x16x16xf32, #tpu.memory_space<vmem>>, vector<1x14x14xf32>
      %112 = vector.shape_cast %111 : vector<1x14x14xf32> to vector<14x14xf32>
      %113 = vector.broadcast %110 : f32 to vector<14x14xf32>
      %114 = arith.mulf %113, %112 : vector<14x14xf32>
      %115 = arith.addf %104, %114 : vector<14x14xf32>
      %c72_i32_50 = arith.constant 72 : i32
      %116 = arith.muli %arg8, %c72_i32_50 : i32
      %c0_i32_51 = arith.constant 0 : i32
      %117 = arith.addi %116, %c0_i32_51 : i32
      %c3_i32_52 = arith.constant 3 : i32
      %118 = arith.addi %117, %c3_i32_52 : i32
      %c2_i32_53 = arith.constant 2 : i32
      %119 = arith.addi %118, %c2_i32_53 : i32
      %120 = arith.index_cast %119 : i32 to index
      %121 = memref.load %arg4[%120] : memref<576xf32, #tpu.memory_space<smem>>
      %c0_54 = arith.constant 0 : index
      %c1_55 = arith.constant 1 : index
      %c2_56 = arith.constant 2 : index
      %122 = vector.load %arg7[%c0_54, %c1_55, %c2_56] : memref<8x16x16xf32, #tpu.memory_space<vmem>>, vector<1x14x14xf32>
      %123 = vector.shape_cast %122 : vector<1x14x14xf32> to vector<14x14xf32>
      %124 = vector.broadcast %121 : f32 to vector<14x14xf32>
      %125 = arith.mulf %124, %123 : vector<14x14xf32>
      %126 = arith.addf %115, %125 : vector<14x14xf32>
      %c72_i32_57 = arith.constant 72 : i32
      %127 = arith.muli %arg8, %c72_i32_57 : i32
      %c0_i32_58 = arith.constant 0 : i32
      %128 = arith.addi %127, %c0_i32_58 : i32
      %c6_i32 = arith.constant 6 : i32
      %129 = arith.addi %128, %c6_i32 : i32
      %c0_i32_59 = arith.constant 0 : i32
      %130 = arith.addi %129, %c0_i32_59 : i32
      %131 = arith.index_cast %130 : i32 to index
      %132 = memref.load %arg4[%131] : memref<576xf32, #tpu.memory_space<smem>>
      %c0_60 = arith.constant 0 : index
      %c2_61 = arith.constant 2 : index
      %c0_62 = arith.constant 0 : index
      %133 = vector.load %arg7[%c0_60, %c2_61, %c0_62] : memref<8x16x16xf32, #tpu.memory_space<vmem>>, vector<1x14x14xf32>
      %134 = vector.shape_cast %133 : vector<1x14x14xf32> to vector<14x14xf32>
      %135 = vector.broadcast %132 : f32 to vector<14x14xf32>
      %136 = arith.mulf %135, %134 : vector<14x14xf32>
      %137 = arith.addf %126, %136 : vector<14x14xf32>
      %c72_i32_63 = arith.constant 72 : i32
      %138 = arith.muli %arg8, %c72_i32_63 : i32
      %c0_i32_64 = arith.constant 0 : i32
      %139 = arith.addi %138, %c0_i32_64 : i32
      %c6_i32_65 = arith.constant 6 : i32
      %140 = arith.addi %139, %c6_i32_65 : i32
      %c1_i32_66 = arith.constant 1 : i32
      %141 = arith.addi %140, %c1_i32_66 : i32
      %142 = arith.index_cast %141 : i32 to index
      %143 = memref.load %arg4[%142] : memref<576xf32, #tpu.memory_space<smem>>
      %c0_67 = arith.constant 0 : index
      %c2_68 = arith.constant 2 : index
      %c1_69 = arith.constant 1 : index
      %144 = vector.load %arg7[%c0_67, %c2_68, %c1_69] : memref<8x16x16xf32, #tpu.memory_space<vmem>>, vector<1x14x14xf32>
      %145 = vector.shape_cast %144 : vector<1x14x14xf32> to vector<14x14xf32>
      %146 = vector.broadcast %143 : f32 to vector<14x14xf32>
      %147 = arith.mulf %146, %145 : vector<14x14xf32>
      %148 = arith.addf %137, %147 : vector<14x14xf32>
      %c72_i32_70 = arith.constant 72 : i32
      %149 = arith.muli %arg8, %c72_i32_70 : i32
      %c0_i32_71 = arith.constant 0 : i32
      %150 = arith.addi %149, %c0_i32_71 : i32
      %c6_i32_72 = arith.constant 6 : i32
      %151 = arith.addi %150, %c6_i32_72 : i32
      %c2_i32_73 = arith.constant 2 : i32
      %152 = arith.addi %151, %c2_i32_73 : i32
      %153 = arith.index_cast %152 : i32 to index
      %154 = memref.load %arg4[%153] : memref<576xf32, #tpu.memory_space<smem>>
      %c0_74 = arith.constant 0 : index
      %c2_75 = arith.constant 2 : index
      %c2_76 = arith.constant 2 : index
      %155 = vector.load %arg7[%c0_74, %c2_75, %c2_76] : memref<8x16x16xf32, #tpu.memory_space<vmem>>, vector<1x14x14xf32>
      %156 = vector.shape_cast %155 : vector<1x14x14xf32> to vector<14x14xf32>
      %157 = vector.broadcast %154 : f32 to vector<14x14xf32>
      %158 = arith.mulf %157, %156 : vector<14x14xf32>
      %159 = arith.addf %148, %158 : vector<14x14xf32>
      %c72_i32_77 = arith.constant 72 : i32
      %160 = arith.muli %arg8, %c72_i32_77 : i32
      %c9_i32 = arith.constant 9 : i32
      %161 = arith.addi %160, %c9_i32 : i32
      %c0_i32_78 = arith.constant 0 : i32
      %162 = arith.addi %161, %c0_i32_78 : i32
      %c0_i32_79 = arith.constant 0 : i32
      %163 = arith.addi %162, %c0_i32_79 : i32
      %164 = arith.index_cast %163 : i32 to index
      %165 = memref.load %arg4[%164] : memref<576xf32, #tpu.memory_space<smem>>
      %c1_80 = arith.constant 1 : index
      %c0_81 = arith.constant 0 : index
      %c0_82 = arith.constant 0 : index
      %166 = vector.load %arg7[%c1_80, %c0_81, %c0_82] : memref<8x16x16xf32, #tpu.memory_space<vmem>>, vector<1x14x14xf32>
      %167 = vector.shape_cast %166 : vector<1x14x14xf32> to vector<14x14xf32>
      %168 = vector.broadcast %165 : f32 to vector<14x14xf32>
      %169 = arith.mulf %168, %167 : vector<14x14xf32>
      %170 = arith.addf %159, %169 : vector<14x14xf32>
      %c72_i32_83 = arith.constant 72 : i32
      %171 = arith.muli %arg8, %c72_i32_83 : i32
      %c9_i32_84 = arith.constant 9 : i32
      %172 = arith.addi %171, %c9_i32_84 : i32
      %c0_i32_85 = arith.constant 0 : i32
      %173 = arith.addi %172, %c0_i32_85 : i32
      %c1_i32_86 = arith.constant 1 : i32
      %174 = arith.addi %173, %c1_i32_86 : i32
      %175 = arith.index_cast %174 : i32 to index
      %176 = memref.load %arg4[%175] : memref<576xf32, #tpu.memory_space<smem>>
      %c1_87 = arith.constant 1 : index
      %c0_88 = arith.constant 0 : index
      %c1_89 = arith.constant 1 : index
      %177 = vector.load %arg7[%c1_87, %c0_88, %c1_89] : memref<8x16x16xf32, #tpu.memory_space<vmem>>, vector<1x14x14xf32>
      %178 = vector.shape_cast %177 : vector<1x14x14xf32> to vector<14x14xf32>
      %179 = vector.broadcast %176 : f32 to vector<14x14xf32>
      %180 = arith.mulf %179, %178 : vector<14x14xf32>
      %181 = arith.addf %170, %180 : vector<14x14xf32>
      %c72_i32_90 = arith.constant 72 : i32
      %182 = arith.muli %arg8, %c72_i32_90 : i32
      %c9_i32_91 = arith.constant 9 : i32
      %183 = arith.addi %182, %c9_i32_91 : i32
      %c0_i32_92 = arith.constant 0 : i32
      %184 = arith.addi %183, %c0_i32_92 : i32
      %c2_i32_93 = arith.constant 2 : i32
      %185 = arith.addi %184, %c2_i32_93 : i32
      %186 = arith.index_cast %185 : i32 to index
      %187 = memref.load %arg4[%186] : memref<576xf32, #tpu.memory_space<smem>>
      %c1_94 = arith.constant 1 : index
      %c0_95 = arith.constant 0 : index
      %c2_96 = arith.constant 2 : index
      %188 = vector.load %arg7[%c1_94, %c0_95, %c2_96] : memref<8x16x16xf32, #tpu.memory_space<vmem>>, vector<1x14x14xf32>
      %189 = vector.shape_cast %188 : vector<1x14x14xf32> to vector<14x14xf32>
      %190 = vector.broadcast %187 : f32 to vector<14x14xf32>
      %191 = arith.mulf %190, %189 : vector<14x14xf32>
      %192 = arith.addf %181, %191 : vector<14x14xf32>
      %c72_i32_97 = arith.constant 72 : i32
      %193 = arith.muli %arg8, %c72_i32_97 : i32
      %c9_i32_98 = arith.constant 9 : i32
      %194 = arith.addi %193, %c9_i32_98 : i32
      %c3_i32_99 = arith.constant 3 : i32
      %195 = arith.addi %194, %c3_i32_99 : i32
      %c0_i32_100 = arith.constant 0 : i32
      %196 = arith.addi %195, %c0_i32_100 : i32
      %197 = arith.index_cast %196 : i32 to index
      %198 = memref.load %arg4[%197] : memref<576xf32, #tpu.memory_space<smem>>
      %c1_101 = arith.constant 1 : index
      %c1_102 = arith.constant 1 : index
      %c0_103 = arith.constant 0 : index
      %199 = vector.load %arg7[%c1_101, %c1_102, %c0_103] : memref<8x16x16xf32, #tpu.memory_space<vmem>>, vector<1x14x14xf32>
      %200 = vector.shape_cast %199 : vector<1x14x14xf32> to vector<14x14xf32>
      %201 = vector.broadcast %198 : f32 to vector<14x14xf32>
      %202 = arith.mulf %201, %200 : vector<14x14xf32>
      %203 = arith.addf %192, %202 : vector<14x14xf32>
      %c72_i32_104 = arith.constant 72 : i32
      %204 = arith.muli %arg8, %c72_i32_104 : i32
      %c9_i32_105 = arith.constant 9 : i32
      %205 = arith.addi %204, %c9_i32_105 : i32
      %c3_i32_106 = arith.constant 3 : i32
      %206 = arith.addi %205, %c3_i32_106 : i32
      %c1_i32_107 = arith.constant 1 : i32
      %207 = arith.addi %206, %c1_i32_107 : i32
      %208 = arith.index_cast %207 : i32 to index
      %209 = memref.load %arg4[%208] : memref<576xf32, #tpu.memory_space<smem>>
      %c1_108 = arith.constant 1 : index
      %c1_109 = arith.constant 1 : index
      %c1_110 = arith.constant 1 : index
      %210 = vector.load %arg7[%c1_108, %c1_109, %c1_110] : memref<8x16x16xf32, #tpu.memory_space<vmem>>, vector<1x14x14xf32>
      %211 = vector.shape_cast %210 : vector<1x14x14xf32> to vector<14x14xf32>
      %212 = vector.broadcast %209 : f32 to vector<14x14xf32>
      %213 = arith.mulf %212, %211 : vector<14x14xf32>
      %214 = arith.addf %203, %213 : vector<14x14xf32>
      %c72_i32_111 = arith.constant 72 : i32
      %215 = arith.muli %arg8, %c72_i32_111 : i32
      %c9_i32_112 = arith.constant 9 : i32
      %216 = arith.addi %215, %c9_i32_112 : i32
      %c3_i32_113 = arith.constant 3 : i32
      %217 = arith.addi %216, %c3_i32_113 : i32
      %c2_i32_114 = arith.constant 2 : i32
      %218 = arith.addi %217, %c2_i32_114 : i32
      %219 = arith.index_cast %218 : i32 to index
      %220 = memref.load %arg4[%219] : memref<576xf32, #tpu.memory_space<smem>>
      %c1_115 = arith.constant 1 : index
      %c1_116 = arith.constant 1 : index
      %c2_117 = arith.constant 2 : index
      %221 = vector.load %arg7[%c1_115, %c1_116, %c2_117] : memref<8x16x16xf32, #tpu.memory_space<vmem>>, vector<1x14x14xf32>
      %222 = vector.shape_cast %221 : vector<1x14x14xf32> to vector<14x14xf32>
      %223 = vector.broadcast %220 : f32 to vector<14x14xf32>
      %224 = arith.mulf %223, %222 : vector<14x14xf32>
      %225 = arith.addf %214, %224 : vector<14x14xf32>
      %c72_i32_118 = arith.constant 72 : i32
      %226 = arith.muli %arg8, %c72_i32_118 : i32
      %c9_i32_119 = arith.constant 9 : i32
      %227 = arith.addi %226, %c9_i32_119 : i32
      %c6_i32_120 = arith.constant 6 : i32
      %228 = arith.addi %227, %c6_i32_120 : i32
      %c0_i32_121 = arith.constant 0 : i32
      %229 = arith.addi %228, %c0_i32_121 : i32
      %230 = arith.index_cast %229 : i32 to index
      %231 = memref.load %arg4[%230] : memref<576xf32, #tpu.memory_space<smem>>
      %c1_122 = arith.constant 1 : index
      %c2_123 = arith.constant 2 : index
      %c0_124 = arith.constant 0 : index
      %232 = vector.load %arg7[%c1_122, %c2_123, %c0_124] : memref<8x16x16xf32, #tpu.memory_space<vmem>>, vector<1x14x14xf32>
      %233 = vector.shape_cast %232 : vector<1x14x14xf32> to vector<14x14xf32>
      %234 = vector.broadcast %231 : f32 to vector<14x14xf32>
      %235 = arith.mulf %234, %233 : vector<14x14xf32>
      %236 = arith.addf %225, %235 : vector<14x14xf32>
      %c72_i32_125 = arith.constant 72 : i32
      %237 = arith.muli %arg8, %c72_i32_125 : i32
      %c9_i32_126 = arith.constant 9 : i32
      %238 = arith.addi %237, %c9_i32_126 : i32
      %c6_i32_127 = arith.constant 6 : i32
      %239 = arith.addi %238, %c6_i32_127 : i32
      %c1_i32_128 = arith.constant 1 : i32
      %240 = arith.addi %239, %c1_i32_128 : i32
      %241 = arith.index_cast %240 : i32 to index
      %242 = memref.load %arg4[%241] : memref<576xf32, #tpu.memory_space<smem>>
      %c1_129 = arith.constant 1 : index
      %c2_130 = arith.constant 2 : index
      %c1_131 = arith.constant 1 : index
      %243 = vector.load %arg7[%c1_129, %c2_130, %c1_131] : memref<8x16x16xf32, #tpu.memory_space<vmem>>, vector<1x14x14xf32>
      %244 = vector.shape_cast %243 : vector<1x14x14xf32> to vector<14x14xf32>
      %245 = vector.broadcast %242 : f32 to vector<14x14xf32>
      %246 = arith.mulf %245, %244 : vector<14x14xf32>
      %247 = arith.addf %236, %246 : vector<14x14xf32>
      %c72_i32_132 = arith.constant 72 : i32
      %248 = arith.muli %arg8, %c72_i32_132 : i32
      %c9_i32_133 = arith.constant 9 : i32
      %249 = arith.addi %248, %c9_i32_133 : i32
      %c6_i32_134 = arith.constant 6 : i32
      %250 = arith.addi %249, %c6_i32_134 : i32
      %c2_i32_135 = arith.constant 2 : i32
      %251 = arith.addi %250, %c2_i32_135 : i32
      %252 = arith.index_cast %251 : i32 to index
      %253 = memref.load %arg4[%252] : memref<576xf32, #tpu.memory_space<smem>>
      %c1_136 = arith.constant 1 : index
      %c2_137 = arith.constant 2 : index
      %c2_138 = arith.constant 2 : index
      %254 = vector.load %arg7[%c1_136, %c2_137, %c2_138] : memref<8x16x16xf32, #tpu.memory_space<vmem>>, vector<1x14x14xf32>
      %255 = vector.shape_cast %254 : vector<1x14x14xf32> to vector<14x14xf32>
      %256 = vector.broadcast %253 : f32 to vector<14x14xf32>
      %257 = arith.mulf %256, %255 : vector<14x14xf32>
      %258 = arith.addf %247, %257 : vector<14x14xf32>
      %c72_i32_139 = arith.constant 72 : i32
      %259 = arith.muli %arg8, %c72_i32_139 : i32
      %c18_i32 = arith.constant 18 : i32
      %260 = arith.addi %259, %c18_i32 : i32
      %c0_i32_140 = arith.constant 0 : i32
      %261 = arith.addi %260, %c0_i32_140 : i32
      %c0_i32_141 = arith.constant 0 : i32
      %262 = arith.addi %261, %c0_i32_141 : i32
      %263 = arith.index_cast %262 : i32 to index
      %264 = memref.load %arg4[%263] : memref<576xf32, #tpu.memory_space<smem>>
      %c2_142 = arith.constant 2 : index
      %c0_143 = arith.constant 0 : index
      %c0_144 = arith.constant 0 : index
      %265 = vector.load %arg7[%c2_142, %c0_143, %c0_144] : memref<8x16x16xf32, #tpu.memory_space<vmem>>, vector<1x14x14xf32>
      %266 = vector.shape_cast %265 : vector<1x14x14xf32> to vector<14x14xf32>
      %267 = vector.broadcast %264 : f32 to vector<14x14xf32>
      %268 = arith.mulf %267, %266 : vector<14x14xf32>
      %269 = arith.addf %258, %268 : vector<14x14xf32>
      %c72_i32_145 = arith.constant 72 : i32
      %270 = arith.muli %arg8, %c72_i32_145 : i32
      %c18_i32_146 = arith.constant 18 : i32
      %271 = arith.addi %270, %c18_i32_146 : i32
      %c0_i32_147 = arith.constant 0 : i32
      %272 = arith.addi %271, %c0_i32_147 : i32
      %c1_i32_148 = arith.constant 1 : i32
      %273 = arith.addi %272, %c1_i32_148 : i32
      %274 = arith.index_cast %273 : i32 to index
      %275 = memref.load %arg4[%274] : memref<576xf32, #tpu.memory_space<smem>>
      %c2_149 = arith.constant 2 : index
      %c0_150 = arith.constant 0 : index
      %c1_151 = arith.constant 1 : index
      %276 = vector.load %arg7[%c2_149, %c0_150, %c1_151] : memref<8x16x16xf32, #tpu.memory_space<vmem>>, vector<1x14x14xf32>
      %277 = vector.shape_cast %276 : vector<1x14x14xf32> to vector<14x14xf32>
      %278 = vector.broadcast %275 : f32 to vector<14x14xf32>
      %279 = arith.mulf %278, %277 : vector<14x14xf32>
      %280 = arith.addf %269, %279 : vector<14x14xf32>
      %c72_i32_152 = arith.constant 72 : i32
      %281 = arith.muli %arg8, %c72_i32_152 : i32
      %c18_i32_153 = arith.constant 18 : i32
      %282 = arith.addi %281, %c18_i32_153 : i32
      %c0_i32_154 = arith.constant 0 : i32
      %283 = arith.addi %282, %c0_i32_154 : i32
      %c2_i32_155 = arith.constant 2 : i32
      %284 = arith.addi %283, %c2_i32_155 : i32
      %285 = arith.index_cast %284 : i32 to index
      %286 = memref.load %arg4[%285] : memref<576xf32, #tpu.memory_space<smem>>
      %c2_156 = arith.constant 2 : index
      %c0_157 = arith.constant 0 : index
      %c2_158 = arith.constant 2 : index
      %287 = vector.load %arg7[%c2_156, %c0_157, %c2_158] : memref<8x16x16xf32, #tpu.memory_space<vmem>>, vector<1x14x14xf32>
      %288 = vector.shape_cast %287 : vector<1x14x14xf32> to vector<14x14xf32>
      %289 = vector.broadcast %286 : f32 to vector<14x14xf32>
      %290 = arith.mulf %289, %288 : vector<14x14xf32>
      %291 = arith.addf %280, %290 : vector<14x14xf32>
      %c72_i32_159 = arith.constant 72 : i32
      %292 = arith.muli %arg8, %c72_i32_159 : i32
      %c18_i32_160 = arith.constant 18 : i32
      %293 = arith.addi %292, %c18_i32_160 : i32
      %c3_i32_161 = arith.constant 3 : i32
      %294 = arith.addi %293, %c3_i32_161 : i32
      %c0_i32_162 = arith.constant 0 : i32
      %295 = arith.addi %294, %c0_i32_162 : i32
      %296 = arith.index_cast %295 : i32 to index
      %297 = memref.load %arg4[%296] : memref<576xf32, #tpu.memory_space<smem>>
      %c2_163 = arith.constant 2 : index
      %c1_164 = arith.constant 1 : index
      %c0_165 = arith.constant 0 : index
      %298 = vector.load %arg7[%c2_163, %c1_164, %c0_165] : memref<8x16x16xf32, #tpu.memory_space<vmem>>, vector<1x14x14xf32>
      %299 = vector.shape_cast %298 : vector<1x14x14xf32> to vector<14x14xf32>
      %300 = vector.broadcast %297 : f32 to vector<14x14xf32>
      %301 = arith.mulf %300, %299 : vector<14x14xf32>
      %302 = arith.addf %291, %301 : vector<14x14xf32>
      %c72_i32_166 = arith.constant 72 : i32
      %303 = arith.muli %arg8, %c72_i32_166 : i32
      %c18_i32_167 = arith.constant 18 : i32
      %304 = arith.addi %303, %c18_i32_167 : i32
      %c3_i32_168 = arith.constant 3 : i32
      %305 = arith.addi %304, %c3_i32_168 : i32
      %c1_i32_169 = arith.constant 1 : i32
      %306 = arith.addi %305, %c1_i32_169 : i32
      %307 = arith.index_cast %306 : i32 to index
      %308 = memref.load %arg4[%307] : memref<576xf32, #tpu.memory_space<smem>>
      %c2_170 = arith.constant 2 : index
      %c1_171 = arith.constant 1 : index
      %c1_172 = arith.constant 1 : index
      %309 = vector.load %arg7[%c2_170, %c1_171, %c1_172] : memref<8x16x16xf32, #tpu.memory_space<vmem>>, vector<1x14x14xf32>
      %310 = vector.shape_cast %309 : vector<1x14x14xf32> to vector<14x14xf32>
      %311 = vector.broadcast %308 : f32 to vector<14x14xf32>
      %312 = arith.mulf %311, %310 : vector<14x14xf32>
      %313 = arith.addf %302, %312 : vector<14x14xf32>
      %c72_i32_173 = arith.constant 72 : i32
      %314 = arith.muli %arg8, %c72_i32_173 : i32
      %c18_i32_174 = arith.constant 18 : i32
      %315 = arith.addi %314, %c18_i32_174 : i32
      %c3_i32_175 = arith.constant 3 : i32
      %316 = arith.addi %315, %c3_i32_175 : i32
      %c2_i32_176 = arith.constant 2 : i32
      %317 = arith.addi %316, %c2_i32_176 : i32
      %318 = arith.index_cast %317 : i32 to index
      %319 = memref.load %arg4[%318] : memref<576xf32, #tpu.memory_space<smem>>
      %c2_177 = arith.constant 2 : index
      %c1_178 = arith.constant 1 : index
      %c2_179 = arith.constant 2 : index
      %320 = vector.load %arg7[%c2_177, %c1_178, %c2_179] : memref<8x16x16xf32, #tpu.memory_space<vmem>>, vector<1x14x14xf32>
      %321 = vector.shape_cast %320 : vector<1x14x14xf32> to vector<14x14xf32>
      %322 = vector.broadcast %319 : f32 to vector<14x14xf32>
      %323 = arith.mulf %322, %321 : vector<14x14xf32>
      %324 = arith.addf %313, %323 : vector<14x14xf32>
      %c72_i32_180 = arith.constant 72 : i32
      %325 = arith.muli %arg8, %c72_i32_180 : i32
      %c18_i32_181 = arith.constant 18 : i32
      %326 = arith.addi %325, %c18_i32_181 : i32
      %c6_i32_182 = arith.constant 6 : i32
      %327 = arith.addi %326, %c6_i32_182 : i32
      %c0_i32_183 = arith.constant 0 : i32
      %328 = arith.addi %327, %c0_i32_183 : i32
      %329 = arith.index_cast %328 : i32 to index
      %330 = memref.load %arg4[%329] : memref<576xf32, #tpu.memory_space<smem>>
      %c2_184 = arith.constant 2 : index
      %c2_185 = arith.constant 2 : index
      %c0_186 = arith.constant 0 : index
      %331 = vector.load %arg7[%c2_184, %c2_185, %c0_186] : memref<8x16x16xf32, #tpu.memory_space<vmem>>, vector<1x14x14xf32>
      %332 = vector.shape_cast %331 : vector<1x14x14xf32> to vector<14x14xf32>
      %333 = vector.broadcast %330 : f32 to vector<14x14xf32>
      %334 = arith.mulf %333, %332 : vector<14x14xf32>
      %335 = arith.addf %324, %334 : vector<14x14xf32>
      %c72_i32_187 = arith.constant 72 : i32
      %336 = arith.muli %arg8, %c72_i32_187 : i32
      %c18_i32_188 = arith.constant 18 : i32
      %337 = arith.addi %336, %c18_i32_188 : i32
      %c6_i32_189 = arith.constant 6 : i32
      %338 = arith.addi %337, %c6_i32_189 : i32
      %c1_i32_190 = arith.constant 1 : i32
      %339 = arith.addi %338, %c1_i32_190 : i32
      %340 = arith.index_cast %339 : i32 to index
      %341 = memref.load %arg4[%340] : memref<576xf32, #tpu.memory_space<smem>>
      %c2_191 = arith.constant 2 : index
      %c2_192 = arith.constant 2 : index
      %c1_193 = arith.constant 1 : index
      %342 = vector.load %arg7[%c2_191, %c2_192, %c1_193] : memref<8x16x16xf32, #tpu.memory_space<vmem>>, vector<1x14x14xf32>
      %343 = vector.shape_cast %342 : vector<1x14x14xf32> to vector<14x14xf32>
      %344 = vector.broadcast %341 : f32 to vector<14x14xf32>
      %345 = arith.mulf %344, %343 : vector<14x14xf32>
      %346 = arith.addf %335, %345 : vector<14x14xf32>
      %c72_i32_194 = arith.constant 72 : i32
      %347 = arith.muli %arg8, %c72_i32_194 : i32
      %c18_i32_195 = arith.constant 18 : i32
      %348 = arith.addi %347, %c18_i32_195 : i32
      %c6_i32_196 = arith.constant 6 : i32
      %349 = arith.addi %348, %c6_i32_196 : i32
      %c2_i32_197 = arith.constant 2 : i32
      %350 = arith.addi %349, %c2_i32_197 : i32
      %351 = arith.index_cast %350 : i32 to index
      %352 = memref.load %arg4[%351] : memref<576xf32, #tpu.memory_space<smem>>
      %c2_198 = arith.constant 2 : index
      %c2_199 = arith.constant 2 : index
      %c2_200 = arith.constant 2 : index
      %353 = vector.load %arg7[%c2_198, %c2_199, %c2_200] : memref<8x16x16xf32, #tpu.memory_space<vmem>>, vector<1x14x14xf32>
      %354 = vector.shape_cast %353 : vector<1x14x14xf32> to vector<14x14xf32>
      %355 = vector.broadcast %352 : f32 to vector<14x14xf32>
      %356 = arith.mulf %355, %354 : vector<14x14xf32>
      %357 = arith.addf %346, %356 : vector<14x14xf32>
      %c72_i32_201 = arith.constant 72 : i32
      %358 = arith.muli %arg8, %c72_i32_201 : i32
      %c27_i32 = arith.constant 27 : i32
      %359 = arith.addi %358, %c27_i32 : i32
      %c0_i32_202 = arith.constant 0 : i32
      %360 = arith.addi %359, %c0_i32_202 : i32
      %c0_i32_203 = arith.constant 0 : i32
      %361 = arith.addi %360, %c0_i32_203 : i32
      %362 = arith.index_cast %361 : i32 to index
      %363 = memref.load %arg4[%362] : memref<576xf32, #tpu.memory_space<smem>>
      %c3 = arith.constant 3 : index
      %c0_204 = arith.constant 0 : index
      %c0_205 = arith.constant 0 : index
      %364 = vector.load %arg7[%c3, %c0_204, %c0_205] : memref<8x16x16xf32, #tpu.memory_space<vmem>>, vector<1x14x14xf32>
      %365 = vector.shape_cast %364 : vector<1x14x14xf32> to vector<14x14xf32>
      %366 = vector.broadcast %363 : f32 to vector<14x14xf32>
      %367 = arith.mulf %366, %365 : vector<14x14xf32>
      %368 = arith.addf %357, %367 : vector<14x14xf32>
      %c72_i32_206 = arith.constant 72 : i32
      %369 = arith.muli %arg8, %c72_i32_206 : i32
      %c27_i32_207 = arith.constant 27 : i32
      %370 = arith.addi %369, %c27_i32_207 : i32
      %c0_i32_208 = arith.constant 0 : i32
      %371 = arith.addi %370, %c0_i32_208 : i32
      %c1_i32_209 = arith.constant 1 : i32
      %372 = arith.addi %371, %c1_i32_209 : i32
      %373 = arith.index_cast %372 : i32 to index
      %374 = memref.load %arg4[%373] : memref<576xf32, #tpu.memory_space<smem>>
      %c3_210 = arith.constant 3 : index
      %c0_211 = arith.constant 0 : index
      %c1_212 = arith.constant 1 : index
      %375 = vector.load %arg7[%c3_210, %c0_211, %c1_212] : memref<8x16x16xf32, #tpu.memory_space<vmem>>, vector<1x14x14xf32>
      %376 = vector.shape_cast %375 : vector<1x14x14xf32> to vector<14x14xf32>
      %377 = vector.broadcast %374 : f32 to vector<14x14xf32>
      %378 = arith.mulf %377, %376 : vector<14x14xf32>
      %379 = arith.addf %368, %378 : vector<14x14xf32>
      %c72_i32_213 = arith.constant 72 : i32
      %380 = arith.muli %arg8, %c72_i32_213 : i32
      %c27_i32_214 = arith.constant 27 : i32
      %381 = arith.addi %380, %c27_i32_214 : i32
      %c0_i32_215 = arith.constant 0 : i32
      %382 = arith.addi %381, %c0_i32_215 : i32
      %c2_i32_216 = arith.constant 2 : i32
      %383 = arith.addi %382, %c2_i32_216 : i32
      %384 = arith.index_cast %383 : i32 to index
      %385 = memref.load %arg4[%384] : memref<576xf32, #tpu.memory_space<smem>>
      %c3_217 = arith.constant 3 : index
      %c0_218 = arith.constant 0 : index
      %c2_219 = arith.constant 2 : index
      %386 = vector.load %arg7[%c3_217, %c0_218, %c2_219] : memref<8x16x16xf32, #tpu.memory_space<vmem>>, vector<1x14x14xf32>
      %387 = vector.shape_cast %386 : vector<1x14x14xf32> to vector<14x14xf32>
      %388 = vector.broadcast %385 : f32 to vector<14x14xf32>
      %389 = arith.mulf %388, %387 : vector<14x14xf32>
      %390 = arith.addf %379, %389 : vector<14x14xf32>
      %c72_i32_220 = arith.constant 72 : i32
      %391 = arith.muli %arg8, %c72_i32_220 : i32
      %c27_i32_221 = arith.constant 27 : i32
      %392 = arith.addi %391, %c27_i32_221 : i32
      %c3_i32_222 = arith.constant 3 : i32
      %393 = arith.addi %392, %c3_i32_222 : i32
      %c0_i32_223 = arith.constant 0 : i32
      %394 = arith.addi %393, %c0_i32_223 : i32
      %395 = arith.index_cast %394 : i32 to index
      %396 = memref.load %arg4[%395] : memref<576xf32, #tpu.memory_space<smem>>
      %c3_224 = arith.constant 3 : index
      %c1_225 = arith.constant 1 : index
      %c0_226 = arith.constant 0 : index
      %397 = vector.load %arg7[%c3_224, %c1_225, %c0_226] : memref<8x16x16xf32, #tpu.memory_space<vmem>>, vector<1x14x14xf32>
      %398 = vector.shape_cast %397 : vector<1x14x14xf32> to vector<14x14xf32>
      %399 = vector.broadcast %396 : f32 to vector<14x14xf32>
      %400 = arith.mulf %399, %398 : vector<14x14xf32>
      %401 = arith.addf %390, %400 : vector<14x14xf32>
      %c72_i32_227 = arith.constant 72 : i32
      %402 = arith.muli %arg8, %c72_i32_227 : i32
      %c27_i32_228 = arith.constant 27 : i32
      %403 = arith.addi %402, %c27_i32_228 : i32
      %c3_i32_229 = arith.constant 3 : i32
      %404 = arith.addi %403, %c3_i32_229 : i32
      %c1_i32_230 = arith.constant 1 : i32
      %405 = arith.addi %404, %c1_i32_230 : i32
      %406 = arith.index_cast %405 : i32 to index
      %407 = memref.load %arg4[%406] : memref<576xf32, #tpu.memory_space<smem>>
      %c3_231 = arith.constant 3 : index
      %c1_232 = arith.constant 1 : index
      %c1_233 = arith.constant 1 : index
      %408 = vector.load %arg7[%c3_231, %c1_232, %c1_233] : memref<8x16x16xf32, #tpu.memory_space<vmem>>, vector<1x14x14xf32>
      %409 = vector.shape_cast %408 : vector<1x14x14xf32> to vector<14x14xf32>
      %410 = vector.broadcast %407 : f32 to vector<14x14xf32>
      %411 = arith.mulf %410, %409 : vector<14x14xf32>
      %412 = arith.addf %401, %411 : vector<14x14xf32>
      %c72_i32_234 = arith.constant 72 : i32
      %413 = arith.muli %arg8, %c72_i32_234 : i32
      %c27_i32_235 = arith.constant 27 : i32
      %414 = arith.addi %413, %c27_i32_235 : i32
      %c3_i32_236 = arith.constant 3 : i32
      %415 = arith.addi %414, %c3_i32_236 : i32
      %c2_i32_237 = arith.constant 2 : i32
      %416 = arith.addi %415, %c2_i32_237 : i32
      %417 = arith.index_cast %416 : i32 to index
      %418 = memref.load %arg4[%417] : memref<576xf32, #tpu.memory_space<smem>>
      %c3_238 = arith.constant 3 : index
      %c1_239 = arith.constant 1 : index
      %c2_240 = arith.constant 2 : index
      %419 = vector.load %arg7[%c3_238, %c1_239, %c2_240] : memref<8x16x16xf32, #tpu.memory_space<vmem>>, vector<1x14x14xf32>
      %420 = vector.shape_cast %419 : vector<1x14x14xf32> to vector<14x14xf32>
      %421 = vector.broadcast %418 : f32 to vector<14x14xf32>
      %422 = arith.mulf %421, %420 : vector<14x14xf32>
      %423 = arith.addf %412, %422 : vector<14x14xf32>
      %c72_i32_241 = arith.constant 72 : i32
      %424 = arith.muli %arg8, %c72_i32_241 : i32
      %c27_i32_242 = arith.constant 27 : i32
      %425 = arith.addi %424, %c27_i32_242 : i32
      %c6_i32_243 = arith.constant 6 : i32
      %426 = arith.addi %425, %c6_i32_243 : i32
      %c0_i32_244 = arith.constant 0 : i32
      %427 = arith.addi %426, %c0_i32_244 : i32
      %428 = arith.index_cast %427 : i32 to index
      %429 = memref.load %arg4[%428] : memref<576xf32, #tpu.memory_space<smem>>
      %c3_245 = arith.constant 3 : index
      %c2_246 = arith.constant 2 : index
      %c0_247 = arith.constant 0 : index
      %430 = vector.load %arg7[%c3_245, %c2_246, %c0_247] : memref<8x16x16xf32, #tpu.memory_space<vmem>>, vector<1x14x14xf32>
      %431 = vector.shape_cast %430 : vector<1x14x14xf32> to vector<14x14xf32>
      %432 = vector.broadcast %429 : f32 to vector<14x14xf32>
      %433 = arith.mulf %432, %431 : vector<14x14xf32>
      %434 = arith.addf %423, %433 : vector<14x14xf32>
      %c72_i32_248 = arith.constant 72 : i32
      %435 = arith.muli %arg8, %c72_i32_248 : i32
      %c27_i32_249 = arith.constant 27 : i32
      %436 = arith.addi %435, %c27_i32_249 : i32
      %c6_i32_250 = arith.constant 6 : i32
      %437 = arith.addi %436, %c6_i32_250 : i32
      %c1_i32_251 = arith.constant 1 : i32
      %438 = arith.addi %437, %c1_i32_251 : i32
      %439 = arith.index_cast %438 : i32 to index
      %440 = memref.load %arg4[%439] : memref<576xf32, #tpu.memory_space<smem>>
      %c3_252 = arith.constant 3 : index
      %c2_253 = arith.constant 2 : index
      %c1_254 = arith.constant 1 : index
      %441 = vector.load %arg7[%c3_252, %c2_253, %c1_254] : memref<8x16x16xf32, #tpu.memory_space<vmem>>, vector<1x14x14xf32>
      %442 = vector.shape_cast %441 : vector<1x14x14xf32> to vector<14x14xf32>
      %443 = vector.broadcast %440 : f32 to vector<14x14xf32>
      %444 = arith.mulf %443, %442 : vector<14x14xf32>
      %445 = arith.addf %434, %444 : vector<14x14xf32>
      %c72_i32_255 = arith.constant 72 : i32
      %446 = arith.muli %arg8, %c72_i32_255 : i32
      %c27_i32_256 = arith.constant 27 : i32
      %447 = arith.addi %446, %c27_i32_256 : i32
      %c6_i32_257 = arith.constant 6 : i32
      %448 = arith.addi %447, %c6_i32_257 : i32
      %c2_i32_258 = arith.constant 2 : i32
      %449 = arith.addi %448, %c2_i32_258 : i32
      %450 = arith.index_cast %449 : i32 to index
      %451 = memref.load %arg4[%450] : memref<576xf32, #tpu.memory_space<smem>>
      %c3_259 = arith.constant 3 : index
      %c2_260 = arith.constant 2 : index
      %c2_261 = arith.constant 2 : index
      %452 = vector.load %arg7[%c3_259, %c2_260, %c2_261] : memref<8x16x16xf32, #tpu.memory_space<vmem>>, vector<1x14x14xf32>
      %453 = vector.shape_cast %452 : vector<1x14x14xf32> to vector<14x14xf32>
      %454 = vector.broadcast %451 : f32 to vector<14x14xf32>
      %455 = arith.mulf %454, %453 : vector<14x14xf32>
      %456 = arith.addf %445, %455 : vector<14x14xf32>
      %c72_i32_262 = arith.constant 72 : i32
      %457 = arith.muli %arg8, %c72_i32_262 : i32
      %c36_i32 = arith.constant 36 : i32
      %458 = arith.addi %457, %c36_i32 : i32
      %c0_i32_263 = arith.constant 0 : i32
      %459 = arith.addi %458, %c0_i32_263 : i32
      %c0_i32_264 = arith.constant 0 : i32
      %460 = arith.addi %459, %c0_i32_264 : i32
      %461 = arith.index_cast %460 : i32 to index
      %462 = memref.load %arg4[%461] : memref<576xf32, #tpu.memory_space<smem>>
      %c4 = arith.constant 4 : index
      %c0_265 = arith.constant 0 : index
      %c0_266 = arith.constant 0 : index
      %463 = vector.load %arg7[%c4, %c0_265, %c0_266] : memref<8x16x16xf32, #tpu.memory_space<vmem>>, vector<1x14x14xf32>
      %464 = vector.shape_cast %463 : vector<1x14x14xf32> to vector<14x14xf32>
      %465 = vector.broadcast %462 : f32 to vector<14x14xf32>
      %466 = arith.mulf %465, %464 : vector<14x14xf32>
      %467 = arith.addf %456, %466 : vector<14x14xf32>
      %c72_i32_267 = arith.constant 72 : i32
      %468 = arith.muli %arg8, %c72_i32_267 : i32
      %c36_i32_268 = arith.constant 36 : i32
      %469 = arith.addi %468, %c36_i32_268 : i32
      %c0_i32_269 = arith.constant 0 : i32
      %470 = arith.addi %469, %c0_i32_269 : i32
      %c1_i32_270 = arith.constant 1 : i32
      %471 = arith.addi %470, %c1_i32_270 : i32
      %472 = arith.index_cast %471 : i32 to index
      %473 = memref.load %arg4[%472] : memref<576xf32, #tpu.memory_space<smem>>
      %c4_271 = arith.constant 4 : index
      %c0_272 = arith.constant 0 : index
      %c1_273 = arith.constant 1 : index
      %474 = vector.load %arg7[%c4_271, %c0_272, %c1_273] : memref<8x16x16xf32, #tpu.memory_space<vmem>>, vector<1x14x14xf32>
      %475 = vector.shape_cast %474 : vector<1x14x14xf32> to vector<14x14xf32>
      %476 = vector.broadcast %473 : f32 to vector<14x14xf32>
      %477 = arith.mulf %476, %475 : vector<14x14xf32>
      %478 = arith.addf %467, %477 : vector<14x14xf32>
      %c72_i32_274 = arith.constant 72 : i32
      %479 = arith.muli %arg8, %c72_i32_274 : i32
      %c36_i32_275 = arith.constant 36 : i32
      %480 = arith.addi %479, %c36_i32_275 : i32
      %c0_i32_276 = arith.constant 0 : i32
      %481 = arith.addi %480, %c0_i32_276 : i32
      %c2_i32_277 = arith.constant 2 : i32
      %482 = arith.addi %481, %c2_i32_277 : i32
      %483 = arith.index_cast %482 : i32 to index
      %484 = memref.load %arg4[%483] : memref<576xf32, #tpu.memory_space<smem>>
      %c4_278 = arith.constant 4 : index
      %c0_279 = arith.constant 0 : index
      %c2_280 = arith.constant 2 : index
      %485 = vector.load %arg7[%c4_278, %c0_279, %c2_280] : memref<8x16x16xf32, #tpu.memory_space<vmem>>, vector<1x14x14xf32>
      %486 = vector.shape_cast %485 : vector<1x14x14xf32> to vector<14x14xf32>
      %487 = vector.broadcast %484 : f32 to vector<14x14xf32>
      %488 = arith.mulf %487, %486 : vector<14x14xf32>
      %489 = arith.addf %478, %488 : vector<14x14xf32>
      %c72_i32_281 = arith.constant 72 : i32
      %490 = arith.muli %arg8, %c72_i32_281 : i32
      %c36_i32_282 = arith.constant 36 : i32
      %491 = arith.addi %490, %c36_i32_282 : i32
      %c3_i32_283 = arith.constant 3 : i32
      %492 = arith.addi %491, %c3_i32_283 : i32
      %c0_i32_284 = arith.constant 0 : i32
      %493 = arith.addi %492, %c0_i32_284 : i32
      %494 = arith.index_cast %493 : i32 to index
      %495 = memref.load %arg4[%494] : memref<576xf32, #tpu.memory_space<smem>>
      %c4_285 = arith.constant 4 : index
      %c1_286 = arith.constant 1 : index
      %c0_287 = arith.constant 0 : index
      %496 = vector.load %arg7[%c4_285, %c1_286, %c0_287] : memref<8x16x16xf32, #tpu.memory_space<vmem>>, vector<1x14x14xf32>
      %497 = vector.shape_cast %496 : vector<1x14x14xf32> to vector<14x14xf32>
      %498 = vector.broadcast %495 : f32 to vector<14x14xf32>
      %499 = arith.mulf %498, %497 : vector<14x14xf32>
      %500 = arith.addf %489, %499 : vector<14x14xf32>
      %c72_i32_288 = arith.constant 72 : i32
      %501 = arith.muli %arg8, %c72_i32_288 : i32
      %c36_i32_289 = arith.constant 36 : i32
      %502 = arith.addi %501, %c36_i32_289 : i32
      %c3_i32_290 = arith.constant 3 : i32
      %503 = arith.addi %502, %c3_i32_290 : i32
      %c1_i32_291 = arith.constant 1 : i32
      %504 = arith.addi %503, %c1_i32_291 : i32
      %505 = arith.index_cast %504 : i32 to index
      %506 = memref.load %arg4[%505] : memref<576xf32, #tpu.memory_space<smem>>
      %c4_292 = arith.constant 4 : index
      %c1_293 = arith.constant 1 : index
      %c1_294 = arith.constant 1 : index
      %507 = vector.load %arg7[%c4_292, %c1_293, %c1_294] : memref<8x16x16xf32, #tpu.memory_space<vmem>>, vector<1x14x14xf32>
      %508 = vector.shape_cast %507 : vector<1x14x14xf32> to vector<14x14xf32>
      %509 = vector.broadcast %506 : f32 to vector<14x14xf32>
      %510 = arith.mulf %509, %508 : vector<14x14xf32>
      %511 = arith.addf %500, %510 : vector<14x14xf32>
      %c72_i32_295 = arith.constant 72 : i32
      %512 = arith.muli %arg8, %c72_i32_295 : i32
      %c36_i32_296 = arith.constant 36 : i32
      %513 = arith.addi %512, %c36_i32_296 : i32
      %c3_i32_297 = arith.constant 3 : i32
      %514 = arith.addi %513, %c3_i32_297 : i32
      %c2_i32_298 = arith.constant 2 : i32
      %515 = arith.addi %514, %c2_i32_298 : i32
      %516 = arith.index_cast %515 : i32 to index
      %517 = memref.load %arg4[%516] : memref<576xf32, #tpu.memory_space<smem>>
      %c4_299 = arith.constant 4 : index
      %c1_300 = arith.constant 1 : index
      %c2_301 = arith.constant 2 : index
      %518 = vector.load %arg7[%c4_299, %c1_300, %c2_301] : memref<8x16x16xf32, #tpu.memory_space<vmem>>, vector<1x14x14xf32>
      %519 = vector.shape_cast %518 : vector<1x14x14xf32> to vector<14x14xf32>
      %520 = vector.broadcast %517 : f32 to vector<14x14xf32>
      %521 = arith.mulf %520, %519 : vector<14x14xf32>
      %522 = arith.addf %511, %521 : vector<14x14xf32>
      %c72_i32_302 = arith.constant 72 : i32
      %523 = arith.muli %arg8, %c72_i32_302 : i32
      %c36_i32_303 = arith.constant 36 : i32
      %524 = arith.addi %523, %c36_i32_303 : i32
      %c6_i32_304 = arith.constant 6 : i32
      %525 = arith.addi %524, %c6_i32_304 : i32
      %c0_i32_305 = arith.constant 0 : i32
      %526 = arith.addi %525, %c0_i32_305 : i32
      %527 = arith.index_cast %526 : i32 to index
      %528 = memref.load %arg4[%527] : memref<576xf32, #tpu.memory_space<smem>>
      %c4_306 = arith.constant 4 : index
      %c2_307 = arith.constant 2 : index
      %c0_308 = arith.constant 0 : index
      %529 = vector.load %arg7[%c4_306, %c2_307, %c0_308] : memref<8x16x16xf32, #tpu.memory_space<vmem>>, vector<1x14x14xf32>
      %530 = vector.shape_cast %529 : vector<1x14x14xf32> to vector<14x14xf32>
      %531 = vector.broadcast %528 : f32 to vector<14x14xf32>
      %532 = arith.mulf %531, %530 : vector<14x14xf32>
      %533 = arith.addf %522, %532 : vector<14x14xf32>
      %c72_i32_309 = arith.constant 72 : i32
      %534 = arith.muli %arg8, %c72_i32_309 : i32
      %c36_i32_310 = arith.constant 36 : i32
      %535 = arith.addi %534, %c36_i32_310 : i32
      %c6_i32_311 = arith.constant 6 : i32
      %536 = arith.addi %535, %c6_i32_311 : i32
      %c1_i32_312 = arith.constant 1 : i32
      %537 = arith.addi %536, %c1_i32_312 : i32
      %538 = arith.index_cast %537 : i32 to index
      %539 = memref.load %arg4[%538] : memref<576xf32, #tpu.memory_space<smem>>
      %c4_313 = arith.constant 4 : index
      %c2_314 = arith.constant 2 : index
      %c1_315 = arith.constant 1 : index
      %540 = vector.load %arg7[%c4_313, %c2_314, %c1_315] : memref<8x16x16xf32, #tpu.memory_space<vmem>>, vector<1x14x14xf32>
      %541 = vector.shape_cast %540 : vector<1x14x14xf32> to vector<14x14xf32>
      %542 = vector.broadcast %539 : f32 to vector<14x14xf32>
      %543 = arith.mulf %542, %541 : vector<14x14xf32>
      %544 = arith.addf %533, %543 : vector<14x14xf32>
      %c72_i32_316 = arith.constant 72 : i32
      %545 = arith.muli %arg8, %c72_i32_316 : i32
      %c36_i32_317 = arith.constant 36 : i32
      %546 = arith.addi %545, %c36_i32_317 : i32
      %c6_i32_318 = arith.constant 6 : i32
      %547 = arith.addi %546, %c6_i32_318 : i32
      %c2_i32_319 = arith.constant 2 : i32
      %548 = arith.addi %547, %c2_i32_319 : i32
      %549 = arith.index_cast %548 : i32 to index
      %550 = memref.load %arg4[%549] : memref<576xf32, #tpu.memory_space<smem>>
      %c4_320 = arith.constant 4 : index
      %c2_321 = arith.constant 2 : index
      %c2_322 = arith.constant 2 : index
      %551 = vector.load %arg7[%c4_320, %c2_321, %c2_322] : memref<8x16x16xf32, #tpu.memory_space<vmem>>, vector<1x14x14xf32>
      %552 = vector.shape_cast %551 : vector<1x14x14xf32> to vector<14x14xf32>
      %553 = vector.broadcast %550 : f32 to vector<14x14xf32>
      %554 = arith.mulf %553, %552 : vector<14x14xf32>
      %555 = arith.addf %544, %554 : vector<14x14xf32>
      %c72_i32_323 = arith.constant 72 : i32
      %556 = arith.muli %arg8, %c72_i32_323 : i32
      %c45_i32 = arith.constant 45 : i32
      %557 = arith.addi %556, %c45_i32 : i32
      %c0_i32_324 = arith.constant 0 : i32
      %558 = arith.addi %557, %c0_i32_324 : i32
      %c0_i32_325 = arith.constant 0 : i32
      %559 = arith.addi %558, %c0_i32_325 : i32
      %560 = arith.index_cast %559 : i32 to index
      %561 = memref.load %arg4[%560] : memref<576xf32, #tpu.memory_space<smem>>
      %c5 = arith.constant 5 : index
      %c0_326 = arith.constant 0 : index
      %c0_327 = arith.constant 0 : index
      %562 = vector.load %arg7[%c5, %c0_326, %c0_327] : memref<8x16x16xf32, #tpu.memory_space<vmem>>, vector<1x14x14xf32>
      %563 = vector.shape_cast %562 : vector<1x14x14xf32> to vector<14x14xf32>
      %564 = vector.broadcast %561 : f32 to vector<14x14xf32>
      %565 = arith.mulf %564, %563 : vector<14x14xf32>
      %566 = arith.addf %555, %565 : vector<14x14xf32>
      %c72_i32_328 = arith.constant 72 : i32
      %567 = arith.muli %arg8, %c72_i32_328 : i32
      %c45_i32_329 = arith.constant 45 : i32
      %568 = arith.addi %567, %c45_i32_329 : i32
      %c0_i32_330 = arith.constant 0 : i32
      %569 = arith.addi %568, %c0_i32_330 : i32
      %c1_i32_331 = arith.constant 1 : i32
      %570 = arith.addi %569, %c1_i32_331 : i32
      %571 = arith.index_cast %570 : i32 to index
      %572 = memref.load %arg4[%571] : memref<576xf32, #tpu.memory_space<smem>>
      %c5_332 = arith.constant 5 : index
      %c0_333 = arith.constant 0 : index
      %c1_334 = arith.constant 1 : index
      %573 = vector.load %arg7[%c5_332, %c0_333, %c1_334] : memref<8x16x16xf32, #tpu.memory_space<vmem>>, vector<1x14x14xf32>
      %574 = vector.shape_cast %573 : vector<1x14x14xf32> to vector<14x14xf32>
      %575 = vector.broadcast %572 : f32 to vector<14x14xf32>
      %576 = arith.mulf %575, %574 : vector<14x14xf32>
      %577 = arith.addf %566, %576 : vector<14x14xf32>
      %c72_i32_335 = arith.constant 72 : i32
      %578 = arith.muli %arg8, %c72_i32_335 : i32
      %c45_i32_336 = arith.constant 45 : i32
      %579 = arith.addi %578, %c45_i32_336 : i32
      %c0_i32_337 = arith.constant 0 : i32
      %580 = arith.addi %579, %c0_i32_337 : i32
      %c2_i32_338 = arith.constant 2 : i32
      %581 = arith.addi %580, %c2_i32_338 : i32
      %582 = arith.index_cast %581 : i32 to index
      %583 = memref.load %arg4[%582] : memref<576xf32, #tpu.memory_space<smem>>
      %c5_339 = arith.constant 5 : index
      %c0_340 = arith.constant 0 : index
      %c2_341 = arith.constant 2 : index
      %584 = vector.load %arg7[%c5_339, %c0_340, %c2_341] : memref<8x16x16xf32, #tpu.memory_space<vmem>>, vector<1x14x14xf32>
      %585 = vector.shape_cast %584 : vector<1x14x14xf32> to vector<14x14xf32>
      %586 = vector.broadcast %583 : f32 to vector<14x14xf32>
      %587 = arith.mulf %586, %585 : vector<14x14xf32>
      %588 = arith.addf %577, %587 : vector<14x14xf32>
      %c72_i32_342 = arith.constant 72 : i32
      %589 = arith.muli %arg8, %c72_i32_342 : i32
      %c45_i32_343 = arith.constant 45 : i32
      %590 = arith.addi %589, %c45_i32_343 : i32
      %c3_i32_344 = arith.constant 3 : i32
      %591 = arith.addi %590, %c3_i32_344 : i32
      %c0_i32_345 = arith.constant 0 : i32
      %592 = arith.addi %591, %c0_i32_345 : i32
      %593 = arith.index_cast %592 : i32 to index
      %594 = memref.load %arg4[%593] : memref<576xf32, #tpu.memory_space<smem>>
      %c5_346 = arith.constant 5 : index
      %c1_347 = arith.constant 1 : index
      %c0_348 = arith.constant 0 : index
      %595 = vector.load %arg7[%c5_346, %c1_347, %c0_348] : memref<8x16x16xf32, #tpu.memory_space<vmem>>, vector<1x14x14xf32>
      %596 = vector.shape_cast %595 : vector<1x14x14xf32> to vector<14x14xf32>
      %597 = vector.broadcast %594 : f32 to vector<14x14xf32>
      %598 = arith.mulf %597, %596 : vector<14x14xf32>
      %599 = arith.addf %588, %598 : vector<14x14xf32>
      %c72_i32_349 = arith.constant 72 : i32
      %600 = arith.muli %arg8, %c72_i32_349 : i32
      %c45_i32_350 = arith.constant 45 : i32
      %601 = arith.addi %600, %c45_i32_350 : i32
      %c3_i32_351 = arith.constant 3 : i32
      %602 = arith.addi %601, %c3_i32_351 : i32
      %c1_i32_352 = arith.constant 1 : i32
      %603 = arith.addi %602, %c1_i32_352 : i32
      %604 = arith.index_cast %603 : i32 to index
      %605 = memref.load %arg4[%604] : memref<576xf32, #tpu.memory_space<smem>>
      %c5_353 = arith.constant 5 : index
      %c1_354 = arith.constant 1 : index
      %c1_355 = arith.constant 1 : index
      %606 = vector.load %arg7[%c5_353, %c1_354, %c1_355] : memref<8x16x16xf32, #tpu.memory_space<vmem>>, vector<1x14x14xf32>
      %607 = vector.shape_cast %606 : vector<1x14x14xf32> to vector<14x14xf32>
      %608 = vector.broadcast %605 : f32 to vector<14x14xf32>
      %609 = arith.mulf %608, %607 : vector<14x14xf32>
      %610 = arith.addf %599, %609 : vector<14x14xf32>
      %c72_i32_356 = arith.constant 72 : i32
      %611 = arith.muli %arg8, %c72_i32_356 : i32
      %c45_i32_357 = arith.constant 45 : i32
      %612 = arith.addi %611, %c45_i32_357 : i32
      %c3_i32_358 = arith.constant 3 : i32
      %613 = arith.addi %612, %c3_i32_358 : i32
      %c2_i32_359 = arith.constant 2 : i32
      %614 = arith.addi %613, %c2_i32_359 : i32
      %615 = arith.index_cast %614 : i32 to index
      %616 = memref.load %arg4[%615] : memref<576xf32, #tpu.memory_space<smem>>
      %c5_360 = arith.constant 5 : index
      %c1_361 = arith.constant 1 : index
      %c2_362 = arith.constant 2 : index
      %617 = vector.load %arg7[%c5_360, %c1_361, %c2_362] : memref<8x16x16xf32, #tpu.memory_space<vmem>>, vector<1x14x14xf32>
      %618 = vector.shape_cast %617 : vector<1x14x14xf32> to vector<14x14xf32>
      %619 = vector.broadcast %616 : f32 to vector<14x14xf32>
      %620 = arith.mulf %619, %618 : vector<14x14xf32>
      %621 = arith.addf %610, %620 : vector<14x14xf32>
      %c72_i32_363 = arith.constant 72 : i32
      %622 = arith.muli %arg8, %c72_i32_363 : i32
      %c45_i32_364 = arith.constant 45 : i32
      %623 = arith.addi %622, %c45_i32_364 : i32
      %c6_i32_365 = arith.constant 6 : i32
      %624 = arith.addi %623, %c6_i32_365 : i32
      %c0_i32_366 = arith.constant 0 : i32
      %625 = arith.addi %624, %c0_i32_366 : i32
      %626 = arith.index_cast %625 : i32 to index
      %627 = memref.load %arg4[%626] : memref<576xf32, #tpu.memory_space<smem>>
      %c5_367 = arith.constant 5 : index
      %c2_368 = arith.constant 2 : index
      %c0_369 = arith.constant 0 : index
      %628 = vector.load %arg7[%c5_367, %c2_368, %c0_369] : memref<8x16x16xf32, #tpu.memory_space<vmem>>, vector<1x14x14xf32>
      %629 = vector.shape_cast %628 : vector<1x14x14xf32> to vector<14x14xf32>
      %630 = vector.broadcast %627 : f32 to vector<14x14xf32>
      %631 = arith.mulf %630, %629 : vector<14x14xf32>
      %632 = arith.addf %621, %631 : vector<14x14xf32>
      %c72_i32_370 = arith.constant 72 : i32
      %633 = arith.muli %arg8, %c72_i32_370 : i32
      %c45_i32_371 = arith.constant 45 : i32
      %634 = arith.addi %633, %c45_i32_371 : i32
      %c6_i32_372 = arith.constant 6 : i32
      %635 = arith.addi %634, %c6_i32_372 : i32
      %c1_i32_373 = arith.constant 1 : i32
      %636 = arith.addi %635, %c1_i32_373 : i32
      %637 = arith.index_cast %636 : i32 to index
      %638 = memref.load %arg4[%637] : memref<576xf32, #tpu.memory_space<smem>>
      %c5_374 = arith.constant 5 : index
      %c2_375 = arith.constant 2 : index
      %c1_376 = arith.constant 1 : index
      %639 = vector.load %arg7[%c5_374, %c2_375, %c1_376] : memref<8x16x16xf32, #tpu.memory_space<vmem>>, vector<1x14x14xf32>
      %640 = vector.shape_cast %639 : vector<1x14x14xf32> to vector<14x14xf32>
      %641 = vector.broadcast %638 : f32 to vector<14x14xf32>
      %642 = arith.mulf %641, %640 : vector<14x14xf32>
      %643 = arith.addf %632, %642 : vector<14x14xf32>
      %c72_i32_377 = arith.constant 72 : i32
      %644 = arith.muli %arg8, %c72_i32_377 : i32
      %c45_i32_378 = arith.constant 45 : i32
      %645 = arith.addi %644, %c45_i32_378 : i32
      %c6_i32_379 = arith.constant 6 : i32
      %646 = arith.addi %645, %c6_i32_379 : i32
      %c2_i32_380 = arith.constant 2 : i32
      %647 = arith.addi %646, %c2_i32_380 : i32
      %648 = arith.index_cast %647 : i32 to index
      %649 = memref.load %arg4[%648] : memref<576xf32, #tpu.memory_space<smem>>
      %c5_381 = arith.constant 5 : index
      %c2_382 = arith.constant 2 : index
      %c2_383 = arith.constant 2 : index
      %650 = vector.load %arg7[%c5_381, %c2_382, %c2_383] : memref<8x16x16xf32, #tpu.memory_space<vmem>>, vector<1x14x14xf32>
      %651 = vector.shape_cast %650 : vector<1x14x14xf32> to vector<14x14xf32>
      %652 = vector.broadcast %649 : f32 to vector<14x14xf32>
      %653 = arith.mulf %652, %651 : vector<14x14xf32>
      %654 = arith.addf %643, %653 : vector<14x14xf32>
      %c72_i32_384 = arith.constant 72 : i32
      %655 = arith.muli %arg8, %c72_i32_384 : i32
      %c54_i32 = arith.constant 54 : i32
      %656 = arith.addi %655, %c54_i32 : i32
      %c0_i32_385 = arith.constant 0 : i32
      %657 = arith.addi %656, %c0_i32_385 : i32
      %c0_i32_386 = arith.constant 0 : i32
      %658 = arith.addi %657, %c0_i32_386 : i32
      %659 = arith.index_cast %658 : i32 to index
      %660 = memref.load %arg4[%659] : memref<576xf32, #tpu.memory_space<smem>>
      %c6 = arith.constant 6 : index
      %c0_387 = arith.constant 0 : index
      %c0_388 = arith.constant 0 : index
      %661 = vector.load %arg7[%c6, %c0_387, %c0_388] : memref<8x16x16xf32, #tpu.memory_space<vmem>>, vector<1x14x14xf32>
      %662 = vector.shape_cast %661 : vector<1x14x14xf32> to vector<14x14xf32>
      %663 = vector.broadcast %660 : f32 to vector<14x14xf32>
      %664 = arith.mulf %663, %662 : vector<14x14xf32>
      %665 = arith.addf %654, %664 : vector<14x14xf32>
      %c72_i32_389 = arith.constant 72 : i32
      %666 = arith.muli %arg8, %c72_i32_389 : i32
      %c54_i32_390 = arith.constant 54 : i32
      %667 = arith.addi %666, %c54_i32_390 : i32
      %c0_i32_391 = arith.constant 0 : i32
      %668 = arith.addi %667, %c0_i32_391 : i32
      %c1_i32_392 = arith.constant 1 : i32
      %669 = arith.addi %668, %c1_i32_392 : i32
      %670 = arith.index_cast %669 : i32 to index
      %671 = memref.load %arg4[%670] : memref<576xf32, #tpu.memory_space<smem>>
      %c6_393 = arith.constant 6 : index
      %c0_394 = arith.constant 0 : index
      %c1_395 = arith.constant 1 : index
      %672 = vector.load %arg7[%c6_393, %c0_394, %c1_395] : memref<8x16x16xf32, #tpu.memory_space<vmem>>, vector<1x14x14xf32>
      %673 = vector.shape_cast %672 : vector<1x14x14xf32> to vector<14x14xf32>
      %674 = vector.broadcast %671 : f32 to vector<14x14xf32>
      %675 = arith.mulf %674, %673 : vector<14x14xf32>
      %676 = arith.addf %665, %675 : vector<14x14xf32>
      %c72_i32_396 = arith.constant 72 : i32
      %677 = arith.muli %arg8, %c72_i32_396 : i32
      %c54_i32_397 = arith.constant 54 : i32
      %678 = arith.addi %677, %c54_i32_397 : i32
      %c0_i32_398 = arith.constant 0 : i32
      %679 = arith.addi %678, %c0_i32_398 : i32
      %c2_i32_399 = arith.constant 2 : i32
      %680 = arith.addi %679, %c2_i32_399 : i32
      %681 = arith.index_cast %680 : i32 to index
      %682 = memref.load %arg4[%681] : memref<576xf32, #tpu.memory_space<smem>>
      %c6_400 = arith.constant 6 : index
      %c0_401 = arith.constant 0 : index
      %c2_402 = arith.constant 2 : index
      %683 = vector.load %arg7[%c6_400, %c0_401, %c2_402] : memref<8x16x16xf32, #tpu.memory_space<vmem>>, vector<1x14x14xf32>
      %684 = vector.shape_cast %683 : vector<1x14x14xf32> to vector<14x14xf32>
      %685 = vector.broadcast %682 : f32 to vector<14x14xf32>
      %686 = arith.mulf %685, %684 : vector<14x14xf32>
      %687 = arith.addf %676, %686 : vector<14x14xf32>
      %c72_i32_403 = arith.constant 72 : i32
      %688 = arith.muli %arg8, %c72_i32_403 : i32
      %c54_i32_404 = arith.constant 54 : i32
      %689 = arith.addi %688, %c54_i32_404 : i32
      %c3_i32_405 = arith.constant 3 : i32
      %690 = arith.addi %689, %c3_i32_405 : i32
      %c0_i32_406 = arith.constant 0 : i32
      %691 = arith.addi %690, %c0_i32_406 : i32
      %692 = arith.index_cast %691 : i32 to index
      %693 = memref.load %arg4[%692] : memref<576xf32, #tpu.memory_space<smem>>
      %c6_407 = arith.constant 6 : index
      %c1_408 = arith.constant 1 : index
      %c0_409 = arith.constant 0 : index
      %694 = vector.load %arg7[%c6_407, %c1_408, %c0_409] : memref<8x16x16xf32, #tpu.memory_space<vmem>>, vector<1x14x14xf32>
      %695 = vector.shape_cast %694 : vector<1x14x14xf32> to vector<14x14xf32>
      %696 = vector.broadcast %693 : f32 to vector<14x14xf32>
      %697 = arith.mulf %696, %695 : vector<14x14xf32>
      %698 = arith.addf %687, %697 : vector<14x14xf32>
      %c72_i32_410 = arith.constant 72 : i32
      %699 = arith.muli %arg8, %c72_i32_410 : i32
      %c54_i32_411 = arith.constant 54 : i32
      %700 = arith.addi %699, %c54_i32_411 : i32
      %c3_i32_412 = arith.constant 3 : i32
      %701 = arith.addi %700, %c3_i32_412 : i32
      %c1_i32_413 = arith.constant 1 : i32
      %702 = arith.addi %701, %c1_i32_413 : i32
      %703 = arith.index_cast %702 : i32 to index
      %704 = memref.load %arg4[%703] : memref<576xf32, #tpu.memory_space<smem>>
      %c6_414 = arith.constant 6 : index
      %c1_415 = arith.constant 1 : index
      %c1_416 = arith.constant 1 : index
      %705 = vector.load %arg7[%c6_414, %c1_415, %c1_416] : memref<8x16x16xf32, #tpu.memory_space<vmem>>, vector<1x14x14xf32>
      %706 = vector.shape_cast %705 : vector<1x14x14xf32> to vector<14x14xf32>
      %707 = vector.broadcast %704 : f32 to vector<14x14xf32>
      %708 = arith.mulf %707, %706 : vector<14x14xf32>
      %709 = arith.addf %698, %708 : vector<14x14xf32>
      %c72_i32_417 = arith.constant 72 : i32
      %710 = arith.muli %arg8, %c72_i32_417 : i32
      %c54_i32_418 = arith.constant 54 : i32
      %711 = arith.addi %710, %c54_i32_418 : i32
      %c3_i32_419 = arith.constant 3 : i32
      %712 = arith.addi %711, %c3_i32_419 : i32
      %c2_i32_420 = arith.constant 2 : i32
      %713 = arith.addi %712, %c2_i32_420 : i32
      %714 = arith.index_cast %713 : i32 to index
      %715 = memref.load %arg4[%714] : memref<576xf32, #tpu.memory_space<smem>>
      %c6_421 = arith.constant 6 : index
      %c1_422 = arith.constant 1 : index
      %c2_423 = arith.constant 2 : index
      %716 = vector.load %arg7[%c6_421, %c1_422, %c2_423] : memref<8x16x16xf32, #tpu.memory_space<vmem>>, vector<1x14x14xf32>
      %717 = vector.shape_cast %716 : vector<1x14x14xf32> to vector<14x14xf32>
      %718 = vector.broadcast %715 : f32 to vector<14x14xf32>
      %719 = arith.mulf %718, %717 : vector<14x14xf32>
      %720 = arith.addf %709, %719 : vector<14x14xf32>
      %c72_i32_424 = arith.constant 72 : i32
      %721 = arith.muli %arg8, %c72_i32_424 : i32
      %c54_i32_425 = arith.constant 54 : i32
      %722 = arith.addi %721, %c54_i32_425 : i32
      %c6_i32_426 = arith.constant 6 : i32
      %723 = arith.addi %722, %c6_i32_426 : i32
      %c0_i32_427 = arith.constant 0 : i32
      %724 = arith.addi %723, %c0_i32_427 : i32
      %725 = arith.index_cast %724 : i32 to index
      %726 = memref.load %arg4[%725] : memref<576xf32, #tpu.memory_space<smem>>
      %c6_428 = arith.constant 6 : index
      %c2_429 = arith.constant 2 : index
      %c0_430 = arith.constant 0 : index
      %727 = vector.load %arg7[%c6_428, %c2_429, %c0_430] : memref<8x16x16xf32, #tpu.memory_space<vmem>>, vector<1x14x14xf32>
      %728 = vector.shape_cast %727 : vector<1x14x14xf32> to vector<14x14xf32>
      %729 = vector.broadcast %726 : f32 to vector<14x14xf32>
      %730 = arith.mulf %729, %728 : vector<14x14xf32>
      %731 = arith.addf %720, %730 : vector<14x14xf32>
      %c72_i32_431 = arith.constant 72 : i32
      %732 = arith.muli %arg8, %c72_i32_431 : i32
      %c54_i32_432 = arith.constant 54 : i32
      %733 = arith.addi %732, %c54_i32_432 : i32
      %c6_i32_433 = arith.constant 6 : i32
      %734 = arith.addi %733, %c6_i32_433 : i32
      %c1_i32_434 = arith.constant 1 : i32
      %735 = arith.addi %734, %c1_i32_434 : i32
      %736 = arith.index_cast %735 : i32 to index
      %737 = memref.load %arg4[%736] : memref<576xf32, #tpu.memory_space<smem>>
      %c6_435 = arith.constant 6 : index
      %c2_436 = arith.constant 2 : index
      %c1_437 = arith.constant 1 : index
      %738 = vector.load %arg7[%c6_435, %c2_436, %c1_437] : memref<8x16x16xf32, #tpu.memory_space<vmem>>, vector<1x14x14xf32>
      %739 = vector.shape_cast %738 : vector<1x14x14xf32> to vector<14x14xf32>
      %740 = vector.broadcast %737 : f32 to vector<14x14xf32>
      %741 = arith.mulf %740, %739 : vector<14x14xf32>
      %742 = arith.addf %731, %741 : vector<14x14xf32>
      %c72_i32_438 = arith.constant 72 : i32
      %743 = arith.muli %arg8, %c72_i32_438 : i32
      %c54_i32_439 = arith.constant 54 : i32
      %744 = arith.addi %743, %c54_i32_439 : i32
      %c6_i32_440 = arith.constant 6 : i32
      %745 = arith.addi %744, %c6_i32_440 : i32
      %c2_i32_441 = arith.constant 2 : i32
      %746 = arith.addi %745, %c2_i32_441 : i32
      %747 = arith.index_cast %746 : i32 to index
      %748 = memref.load %arg4[%747] : memref<576xf32, #tpu.memory_space<smem>>
      %c6_442 = arith.constant 6 : index
      %c2_443 = arith.constant 2 : index
      %c2_444 = arith.constant 2 : index
      %749 = vector.load %arg7[%c6_442, %c2_443, %c2_444] : memref<8x16x16xf32, #tpu.memory_space<vmem>>, vector<1x14x14xf32>
      %750 = vector.shape_cast %749 : vector<1x14x14xf32> to vector<14x14xf32>
      %751 = vector.broadcast %748 : f32 to vector<14x14xf32>
      %752 = arith.mulf %751, %750 : vector<14x14xf32>
      %753 = arith.addf %742, %752 : vector<14x14xf32>
      %c72_i32_445 = arith.constant 72 : i32
      %754 = arith.muli %arg8, %c72_i32_445 : i32
      %c63_i32 = arith.constant 63 : i32
      %755 = arith.addi %754, %c63_i32 : i32
      %c0_i32_446 = arith.constant 0 : i32
      %756 = arith.addi %755, %c0_i32_446 : i32
      %c0_i32_447 = arith.constant 0 : i32
      %757 = arith.addi %756, %c0_i32_447 : i32
      %758 = arith.index_cast %757 : i32 to index
      %759 = memref.load %arg4[%758] : memref<576xf32, #tpu.memory_space<smem>>
      %c7 = arith.constant 7 : index
      %c0_448 = arith.constant 0 : index
      %c0_449 = arith.constant 0 : index
      %760 = vector.load %arg7[%c7, %c0_448, %c0_449] : memref<8x16x16xf32, #tpu.memory_space<vmem>>, vector<1x14x14xf32>
      %761 = vector.shape_cast %760 : vector<1x14x14xf32> to vector<14x14xf32>
      %762 = vector.broadcast %759 : f32 to vector<14x14xf32>
      %763 = arith.mulf %762, %761 : vector<14x14xf32>
      %764 = arith.addf %753, %763 : vector<14x14xf32>
      %c72_i32_450 = arith.constant 72 : i32
      %765 = arith.muli %arg8, %c72_i32_450 : i32
      %c63_i32_451 = arith.constant 63 : i32
      %766 = arith.addi %765, %c63_i32_451 : i32
      %c0_i32_452 = arith.constant 0 : i32
      %767 = arith.addi %766, %c0_i32_452 : i32
      %c1_i32_453 = arith.constant 1 : i32
      %768 = arith.addi %767, %c1_i32_453 : i32
      %769 = arith.index_cast %768 : i32 to index
      %770 = memref.load %arg4[%769] : memref<576xf32, #tpu.memory_space<smem>>
      %c7_454 = arith.constant 7 : index
      %c0_455 = arith.constant 0 : index
      %c1_456 = arith.constant 1 : index
      %771 = vector.load %arg7[%c7_454, %c0_455, %c1_456] : memref<8x16x16xf32, #tpu.memory_space<vmem>>, vector<1x14x14xf32>
      %772 = vector.shape_cast %771 : vector<1x14x14xf32> to vector<14x14xf32>
      %773 = vector.broadcast %770 : f32 to vector<14x14xf32>
      %774 = arith.mulf %773, %772 : vector<14x14xf32>
      %775 = arith.addf %764, %774 : vector<14x14xf32>
      %c72_i32_457 = arith.constant 72 : i32
      %776 = arith.muli %arg8, %c72_i32_457 : i32
      %c63_i32_458 = arith.constant 63 : i32
      %777 = arith.addi %776, %c63_i32_458 : i32
      %c0_i32_459 = arith.constant 0 : i32
      %778 = arith.addi %777, %c0_i32_459 : i32
      %c2_i32_460 = arith.constant 2 : i32
      %779 = arith.addi %778, %c2_i32_460 : i32
      %780 = arith.index_cast %779 : i32 to index
      %781 = memref.load %arg4[%780] : memref<576xf32, #tpu.memory_space<smem>>
      %c7_461 = arith.constant 7 : index
      %c0_462 = arith.constant 0 : index
      %c2_463 = arith.constant 2 : index
      %782 = vector.load %arg7[%c7_461, %c0_462, %c2_463] : memref<8x16x16xf32, #tpu.memory_space<vmem>>, vector<1x14x14xf32>
      %783 = vector.shape_cast %782 : vector<1x14x14xf32> to vector<14x14xf32>
      %784 = vector.broadcast %781 : f32 to vector<14x14xf32>
      %785 = arith.mulf %784, %783 : vector<14x14xf32>
      %786 = arith.addf %775, %785 : vector<14x14xf32>
      %c72_i32_464 = arith.constant 72 : i32
      %787 = arith.muli %arg8, %c72_i32_464 : i32
      %c63_i32_465 = arith.constant 63 : i32
      %788 = arith.addi %787, %c63_i32_465 : i32
      %c3_i32_466 = arith.constant 3 : i32
      %789 = arith.addi %788, %c3_i32_466 : i32
      %c0_i32_467 = arith.constant 0 : i32
      %790 = arith.addi %789, %c0_i32_467 : i32
      %791 = arith.index_cast %790 : i32 to index
      %792 = memref.load %arg4[%791] : memref<576xf32, #tpu.memory_space<smem>>
      %c7_468 = arith.constant 7 : index
      %c1_469 = arith.constant 1 : index
      %c0_470 = arith.constant 0 : index
      %793 = vector.load %arg7[%c7_468, %c1_469, %c0_470] : memref<8x16x16xf32, #tpu.memory_space<vmem>>, vector<1x14x14xf32>
      %794 = vector.shape_cast %793 : vector<1x14x14xf32> to vector<14x14xf32>
      %795 = vector.broadcast %792 : f32 to vector<14x14xf32>
      %796 = arith.mulf %795, %794 : vector<14x14xf32>
      %797 = arith.addf %786, %796 : vector<14x14xf32>
      %c72_i32_471 = arith.constant 72 : i32
      %798 = arith.muli %arg8, %c72_i32_471 : i32
      %c63_i32_472 = arith.constant 63 : i32
      %799 = arith.addi %798, %c63_i32_472 : i32
      %c3_i32_473 = arith.constant 3 : i32
      %800 = arith.addi %799, %c3_i32_473 : i32
      %c1_i32_474 = arith.constant 1 : i32
      %801 = arith.addi %800, %c1_i32_474 : i32
      %802 = arith.index_cast %801 : i32 to index
      %803 = memref.load %arg4[%802] : memref<576xf32, #tpu.memory_space<smem>>
      %c7_475 = arith.constant 7 : index
      %c1_476 = arith.constant 1 : index
      %c1_477 = arith.constant 1 : index
      %804 = vector.load %arg7[%c7_475, %c1_476, %c1_477] : memref<8x16x16xf32, #tpu.memory_space<vmem>>, vector<1x14x14xf32>
      %805 = vector.shape_cast %804 : vector<1x14x14xf32> to vector<14x14xf32>
      %806 = vector.broadcast %803 : f32 to vector<14x14xf32>
      %807 = arith.mulf %806, %805 : vector<14x14xf32>
      %808 = arith.addf %797, %807 : vector<14x14xf32>
      %c72_i32_478 = arith.constant 72 : i32
      %809 = arith.muli %arg8, %c72_i32_478 : i32
      %c63_i32_479 = arith.constant 63 : i32
      %810 = arith.addi %809, %c63_i32_479 : i32
      %c3_i32_480 = arith.constant 3 : i32
      %811 = arith.addi %810, %c3_i32_480 : i32
      %c2_i32_481 = arith.constant 2 : i32
      %812 = arith.addi %811, %c2_i32_481 : i32
      %813 = arith.index_cast %812 : i32 to index
      %814 = memref.load %arg4[%813] : memref<576xf32, #tpu.memory_space<smem>>
      %c7_482 = arith.constant 7 : index
      %c1_483 = arith.constant 1 : index
      %c2_484 = arith.constant 2 : index
      %815 = vector.load %arg7[%c7_482, %c1_483, %c2_484] : memref<8x16x16xf32, #tpu.memory_space<vmem>>, vector<1x14x14xf32>
      %816 = vector.shape_cast %815 : vector<1x14x14xf32> to vector<14x14xf32>
      %817 = vector.broadcast %814 : f32 to vector<14x14xf32>
      %818 = arith.mulf %817, %816 : vector<14x14xf32>
      %819 = arith.addf %808, %818 : vector<14x14xf32>
      %c72_i32_485 = arith.constant 72 : i32
      %820 = arith.muli %arg8, %c72_i32_485 : i32
      %c63_i32_486 = arith.constant 63 : i32
      %821 = arith.addi %820, %c63_i32_486 : i32
      %c6_i32_487 = arith.constant 6 : i32
      %822 = arith.addi %821, %c6_i32_487 : i32
      %c0_i32_488 = arith.constant 0 : i32
      %823 = arith.addi %822, %c0_i32_488 : i32
      %824 = arith.index_cast %823 : i32 to index
      %825 = memref.load %arg4[%824] : memref<576xf32, #tpu.memory_space<smem>>
      %c7_489 = arith.constant 7 : index
      %c2_490 = arith.constant 2 : index
      %c0_491 = arith.constant 0 : index
      %826 = vector.load %arg7[%c7_489, %c2_490, %c0_491] : memref<8x16x16xf32, #tpu.memory_space<vmem>>, vector<1x14x14xf32>
      %827 = vector.shape_cast %826 : vector<1x14x14xf32> to vector<14x14xf32>
      %828 = vector.broadcast %825 : f32 to vector<14x14xf32>
      %829 = arith.mulf %828, %827 : vector<14x14xf32>
      %830 = arith.addf %819, %829 : vector<14x14xf32>
      %c72_i32_492 = arith.constant 72 : i32
      %831 = arith.muli %arg8, %c72_i32_492 : i32
      %c63_i32_493 = arith.constant 63 : i32
      %832 = arith.addi %831, %c63_i32_493 : i32
      %c6_i32_494 = arith.constant 6 : i32
      %833 = arith.addi %832, %c6_i32_494 : i32
      %c1_i32_495 = arith.constant 1 : i32
      %834 = arith.addi %833, %c1_i32_495 : i32
      %835 = arith.index_cast %834 : i32 to index
      %836 = memref.load %arg4[%835] : memref<576xf32, #tpu.memory_space<smem>>
      %c7_496 = arith.constant 7 : index
      %c2_497 = arith.constant 2 : index
      %c1_498 = arith.constant 1 : index
      %837 = vector.load %arg7[%c7_496, %c2_497, %c1_498] : memref<8x16x16xf32, #tpu.memory_space<vmem>>, vector<1x14x14xf32>
      %838 = vector.shape_cast %837 : vector<1x14x14xf32> to vector<14x14xf32>
      %839 = vector.broadcast %836 : f32 to vector<14x14xf32>
      %840 = arith.mulf %839, %838 : vector<14x14xf32>
      %841 = arith.addf %830, %840 : vector<14x14xf32>
      %c72_i32_499 = arith.constant 72 : i32
      %842 = arith.muli %arg8, %c72_i32_499 : i32
      %c63_i32_500 = arith.constant 63 : i32
      %843 = arith.addi %842, %c63_i32_500 : i32
      %c6_i32_501 = arith.constant 6 : i32
      %844 = arith.addi %843, %c6_i32_501 : i32
      %c2_i32_502 = arith.constant 2 : i32
      %845 = arith.addi %844, %c2_i32_502 : i32
      %846 = arith.index_cast %845 : i32 to index
      %847 = memref.load %arg4[%846] : memref<576xf32, #tpu.memory_space<smem>>
      %c7_503 = arith.constant 7 : index
      %c2_504 = arith.constant 2 : index
      %c2_505 = arith.constant 2 : index
      %848 = vector.load %arg7[%c7_503, %c2_504, %c2_505] : memref<8x16x16xf32, #tpu.memory_space<vmem>>, vector<1x14x14xf32>
      %849 = vector.shape_cast %848 : vector<1x14x14xf32> to vector<14x14xf32>
      %850 = vector.broadcast %847 : f32 to vector<14x14xf32>
      %851 = arith.mulf %850, %849 : vector<14x14xf32>
      %852 = arith.addf %841, %851 : vector<14x14xf32>
      %cst_506 = arith.constant dense<0.000000e+00> : vector<7x14xf32>
      %853 = tpu.matmul %48, %852, %cst_506 {dimension_numbers = #tpu.dot_dimension_numbers<[1], [0], [0], [1], [0, 0, 1, 1], [], []>} : vector<7x14xf32>, vector<14x14xf32>, vector<7x14xf32> -> vector<7x14xf32>
      %cst_507 = arith.constant dense<0.000000e+00> : vector<7x14xf32>
      %854 = tpu.matmul %55, %852, %cst_507 {dimension_numbers = #tpu.dot_dimension_numbers<[1], [0], [0], [1], [0, 0, 1, 1], [], []>} : vector<7x14xf32>, vector<14x14xf32>, vector<7x14xf32> -> vector<7x14xf32>
      %855 = arith.maximumf %853, %854 : vector<7x14xf32>
      %cst_508 = arith.constant dense<0.000000e+00> : vector<7x7xf32>
      %856 = tpu.matmul %855, %34, %cst_508 {dimension_numbers = #tpu.dot_dimension_numbers<[1], [0], [0], [1], [0, 0, 1, 1], [], []>} : vector<7x14xf32>, vector<14x7xf32>, vector<7x7xf32> -> vector<7x7xf32>
      %cst_509 = arith.constant dense<0.000000e+00> : vector<7x7xf32>
      %857 = tpu.matmul %855, %41, %cst_509 {dimension_numbers = #tpu.dot_dimension_numbers<[1], [0], [0], [1], [0, 0, 1, 1], [], []>} : vector<7x14xf32>, vector<14x7xf32>, vector<7x7xf32> -> vector<7x7xf32>
      %858 = arith.maximumf %856, %857 : vector<7x7xf32>
      %859 = arith.index_cast %arg8 : i32 to index
      %860 = memref.load %arg5[%859] : memref<8xf32, #tpu.memory_space<smem>>
      %861 = vector.broadcast %860 : f32 to vector<7x7xf32>
      %862 = arith.addf %858, %861 : vector<7x7xf32>
      %cst_510 = arith.constant 0.000000e+00 : f32
      %863 = vector.broadcast %cst_510 : f32 to vector<7x7xf32>
      %864 = arith.maximumf %862, %863 : vector<7x7xf32>
      %c0_511 = arith.constant 0 : index
      %865 = arith.index_cast %arg8 : i32 to index
      %c0_512 = arith.constant 0 : index
      %c0_513 = arith.constant 0 : index
      %866 = vector.load %arg6[%c0_511, %865, %c0_512, %c0_513] : memref<1x8x7x7xf32, #tpu.memory_space<vmem>>, vector<1x1x7x7xf32>
      %867 = vector.shape_cast %866 : vector<1x1x7x7xf32> to vector<7x7xf32>
      %868 = vector.shape_cast %864 : vector<7x7xf32> to vector<1x1x7x7xf32>
      tpu.vector_store %arg6[%c0_511, %865, %c0_512, %c0_513], %868 {strides = array<i32>} : memref<1x8x7x7xf32, #tpu.memory_space<vmem>>, vector<1x1x7x7xf32>,
    }
    %c8_i32_17 = arith.constant 8 : i32
    return
  }
  func.func @transform_0(%arg0: i32) -> (i32, i32, i32, i32) {
    %c0_i32 = arith.constant 0 : i32
    %c0_i32_0 = arith.constant 0 : i32
    %c0_i32_1 = arith.constant 0 : i32
    %c0_i32_2 = arith.constant 0 : i32
    return %arg0, %c0_i32, %c0_i32_0, %c0_i32_1 : i32, i32, i32, i32
  }
  func.func @transform_1(%arg0: i32) -> i32 {
    %c0_i32 = arith.constant 0 : i32
    %c0_i32_0 = arith.constant 0 : i32
    return %c0_i32 : i32
  }
  func.func @transform_2(%arg0: i32) -> i32 {
    %c0_i32 = arith.constant 0 : i32
    %c0_i32_0 = arith.constant 0 : i32
    return %c0_i32 : i32
  }
  func.func @transform_3(%arg0: i32) -> i32 {
    %c0_i32 = arith.constant 0 : i32
    %c0_i32_0 = arith.constant 0 : i32
    return %c0_i32 : i32
  }
  func.func @transform_4(%arg0: i32) -> i32 {
    %c0_i32 = arith.constant 0 : i32
    %c0_i32_0 = arith.constant 0 : i32
    return %c0_i32 : i32
  }
  func.func @transform_5(%arg0: i32) -> (i32, i32, i32, i32) {
    %c0_i32 = arith.constant 0 : i32
    %c0_i32_0 = arith.constant 0 : i32
    %c0_i32_1 = arith.constant 0 : i32
    %c0_i32_2 = arith.constant 0 : i32
    return %arg0, %c0_i32, %c0_i32_0, %c0_i32_1 : i32, i32, i32, i32
  }
}

module attributes {stable_mosaic.version = 11 : i64} {
  func.func @_fc_kernel(%arg0: i32, %arg1: memref<2x392xf32, #tpu.memory_space<vmem>>, %arg2: memref<392x32xf32, #tpu.memory_space<vmem>>, %arg3: memref<1x32xf32, #tpu.memory_space<vmem>>, %arg4: memref<32x64xf32, #tpu.memory_space<vmem>>, %arg5: memref<1x64xf32, #tpu.memory_space<vmem>>, %arg6: memref<64x10xf32, #tpu.memory_space<vmem>>, %arg7: memref<1x10xf32, #tpu.memory_space<vmem>>, %arg8: memref<2x10xf32, #tpu.memory_space<vmem>>, %arg9: memref<2x32xf32, #tpu.memory_space<vmem>>) attributes {dimension_semantics = [#tpu.dimension_semantics<parallel>], iteration_bounds = array<i64: 1>, scalar_prefetch = 0 : i64, scratch_operands = 0 : i64, tpu.core_type = #tpu.core_type<tc>, window_params = [{transform_indices = @transform_0, window_bounds = array<i64: 2, 392>}, {pipeline_mode = #tpu.pipeline_mode<synchronous>, transform_indices = @transform_1, window_bounds = array<i64: 392, 32>}, {pipeline_mode = #tpu.pipeline_mode<synchronous>, transform_indices = @transform_2, window_bounds = array<i64: 1, 32>}, {pipeline_mode = #tpu.pipeline_mode<synchronous>, transform_indices = @transform_3, window_bounds = array<i64: 32, 64>}, {pipeline_mode = #tpu.pipeline_mode<synchronous>, transform_indices = @transform_4, window_bounds = array<i64: 1, 64>}, {pipeline_mode = #tpu.pipeline_mode<synchronous>, transform_indices = @transform_5, window_bounds = array<i64: 64, 10>}, {pipeline_mode = #tpu.pipeline_mode<synchronous>, transform_indices = @transform_6, window_bounds = array<i64: 1, 10>}, {transform_indices = @transform_7, window_bounds = array<i64: 2, 10>}, {transform_indices = @transform_8, window_bounds = array<i64: 2, 32>}]} {
    %c0 = arith.constant 0 : index
    %c0_0 = arith.constant 0 : index
    %0 = vector.load %arg1[%c0, %c0_0] : memref<2x392xf32, #tpu.memory_space<vmem>>, vector<2x392xf32>
    %c0_1 = arith.constant 0 : index
    %c0_2 = arith.constant 0 : index
    %1 = vector.load %arg2[%c0_1, %c0_2] : memref<392x32xf32, #tpu.memory_space<vmem>>, vector<392x32xf32>
    %cst = arith.constant dense<0.000000e+00> : vector<2x32xf32>
    %2 = tpu.matmul %0, %1, %cst {dimension_numbers = #tpu.dot_dimension_numbers<[1], [0], [0], [1], [0, 0, 1, 1], [], []>} : vector<2x392xf32>, vector<392x32xf32>, vector<2x32xf32> -> vector<2x32xf32>
    %c0_3 = arith.constant 0 : index
    %c0_4 = arith.constant 0 : index
    %3 = vector.load %arg3[%c0_3, %c0_4] : memref<1x32xf32, #tpu.memory_space<vmem>>, vector<1x32xf32>
    %4 = vector.broadcast %3 : vector<1x32xf32> to vector<2x32xf32>
    %5 = arith.addf %2, %4 : vector<2x32xf32>
    %cst_5 = arith.constant 0.000000e+00 : f32
    %6 = vector.broadcast %cst_5 : f32 to vector<2x32xf32>
    %7 = arith.maximumf %5, %6 : vector<2x32xf32>
    %c0_6 = arith.constant 0 : index
    %c0_7 = arith.constant 0 : index
    %8 = vector.load %arg9[%c0_6, %c0_7] : memref<2x32xf32, #tpu.memory_space<vmem>>, vector<2x32xf32>
    tpu.vector_store %arg9[%c0_6, %c0_7], %7 {strides = array<i32>} : memref<2x32xf32, #tpu.memory_space<vmem>>, vector<2x32xf32>,
    %c0_8 = arith.constant 0 : index
    %c0_9 = arith.constant 0 : index
    %9 = vector.load %arg4[%c0_8, %c0_9] : memref<32x64xf32, #tpu.memory_space<vmem>>, vector<32x64xf32>
    %cst_10 = arith.constant dense<0.000000e+00> : vector<2x64xf32>
    %10 = tpu.matmul %7, %9, %cst_10 {dimension_numbers = #tpu.dot_dimension_numbers<[1], [0], [0], [1], [0, 0, 1, 1], [], []>} : vector<2x32xf32>, vector<32x64xf32>, vector<2x64xf32> -> vector<2x64xf32>
    %c0_11 = arith.constant 0 : index
    %c0_12 = arith.constant 0 : index
    %11 = vector.load %arg5[%c0_11, %c0_12] : memref<1x64xf32, #tpu.memory_space<vmem>>, vector<1x64xf32>
    %12 = vector.broadcast %11 : vector<1x64xf32> to vector<2x64xf32>
    %13 = arith.addf %10, %12 : vector<2x64xf32>
    %cst_13 = arith.constant 0.000000e+00 : f32
    %14 = vector.broadcast %cst_13 : f32 to vector<2x64xf32>
    %15 = arith.maximumf %13, %14 : vector<2x64xf32>
    %c0_14 = arith.constant 0 : index
    %c0_15 = arith.constant 0 : index
    %16 = vector.load %arg6[%c0_14, %c0_15] : memref<64x10xf32, #tpu.memory_space<vmem>>, vector<64x10xf32>
    %cst_16 = arith.constant dense<0.000000e+00> : vector<2x10xf32>
    %17 = tpu.matmul %15, %16, %cst_16 {dimension_numbers = #tpu.dot_dimension_numbers<[1], [0], [0], [1], [0, 0, 1, 1], [], []>} : vector<2x64xf32>, vector<64x10xf32>, vector<2x10xf32> -> vector<2x10xf32>
    %c0_17 = arith.constant 0 : index
    %c0_18 = arith.constant 0 : index
    %18 = vector.load %arg7[%c0_17, %c0_18] : memref<1x10xf32, #tpu.memory_space<vmem>>, vector<1x10xf32>
    %19 = vector.broadcast %18 : vector<1x10xf32> to vector<2x10xf32>
    %20 = arith.addf %17, %19 : vector<2x10xf32>
    %c0_19 = arith.constant 0 : index
    %c0_20 = arith.constant 0 : index
    %21 = vector.load %arg8[%c0_19, %c0_20] : memref<2x10xf32, #tpu.memory_space<vmem>>, vector<2x10xf32>
    tpu.vector_store %arg8[%c0_19, %c0_20], %20 {strides = array<i32>} : memref<2x10xf32, #tpu.memory_space<vmem>>, vector<2x10xf32>,
    return
  }
  func.func @transform_0(%arg0: i32) -> (i32, i32) {
    %c0_i32 = arith.constant 0 : i32
    %c0_i32_0 = arith.constant 0 : i32
    return %arg0, %c0_i32 : i32, i32
  }
  func.func @transform_1(%arg0: i32) -> (i32, i32) {
    %c0_i32 = arith.constant 0 : i32
    %c0_i32_0 = arith.constant 0 : i32
    %c0_i32_1 = arith.constant 0 : i32
    return %c0_i32, %c0_i32_0 : i32, i32
  }
  func.func @transform_2(%arg0: i32) -> (i32, i32) {
    %c0_i32 = arith.constant 0 : i32
    %c0_i32_0 = arith.constant 0 : i32
    %c0_i32_1 = arith.constant 0 : i32
    return %c0_i32, %c0_i32_0 : i32, i32
  }
  func.func @transform_3(%arg0: i32) -> (i32, i32) {
    %c0_i32 = arith.constant 0 : i32
    %c0_i32_0 = arith.constant 0 : i32
    %c0_i32_1 = arith.constant 0 : i32
    return %c0_i32, %c0_i32_0 : i32, i32
  }
  func.func @transform_4(%arg0: i32) -> (i32, i32) {
    %c0_i32 = arith.constant 0 : i32
    %c0_i32_0 = arith.constant 0 : i32
    %c0_i32_1 = arith.constant 0 : i32
    return %c0_i32, %c0_i32_0 : i32, i32
  }
  func.func @transform_5(%arg0: i32) -> (i32, i32) {
    %c0_i32 = arith.constant 0 : i32
    %c0_i32_0 = arith.constant 0 : i32
    %c0_i32_1 = arith.constant 0 : i32
    return %c0_i32, %c0_i32_0 : i32, i32
  }
  func.func @transform_6(%arg0: i32) -> (i32, i32) {
    %c0_i32 = arith.constant 0 : i32
    %c0_i32_0 = arith.constant 0 : i32
    %c0_i32_1 = arith.constant 0 : i32
    return %c0_i32, %c0_i32_0 : i32, i32
  }
  func.func @transform_7(%arg0: i32) -> (i32, i32) {
    %c0_i32 = arith.constant 0 : i32
    %c0_i32_0 = arith.constant 0 : i32
    return %arg0, %c0_i32 : i32, i32
  }
  func.func @transform_8(%arg0: i32) -> (i32, i32) {
    %c0_i32 = arith.constant 0 : i32
    %c0_i32_0 = arith.constant 0 : i32
    return %arg0, %c0_i32 : i32, i32
  }
}

</mosaic_0001>

<llo_original>
// kernel: mnist_conv_forward.3
$region0: #{mnist_conv_forward.3}
  #allocation0 [shape = 'u32[]', space=smem, size = 0x4, offset = 0x4, fixed_abs, tag = 'smem constant byte address 0x4 - core index']
  #allocation1 [shape = 'u32[144,128]{1,0:T(1,128)}', space=vmem, size = 0x12000, scoped, tag = 'internal scratch']
  %s0 = inlined_call_operand.vmem [shape: f32[2,392], index: 0, kind: input, shape index: {}]
  %s1 = inlined_call_operand.vmem [shape: f32[392,32], index: 1, kind: input, shape index: {}]
  %s2 = inlined_call_operand.vmem [shape: f32[1,32], index: 2, kind: input, shape index: {}]
  %s3 = inlined_call_operand.vmem [shape: f32[32,64], index: 3, kind: input, shape index: {}]
  %s4 = inlined_call_operand.vmem [shape: f32[1,64], index: 4, kind: input, shape index: {}]
  %s5 = inlined_call_operand.vmem [shape: f32[64,10], index: 5, kind: input, shape index: {}]
  %s6 = inlined_call_operand.vmem [shape: f32[1,10], index: 6, kind: input, shape index: {}]
  %s7 = inlined_call_operand.hbm [shape: f32[2,10], index: 7, kind: output, shape index: {0}]
  %s8 = inlined_call_operand.hbm [shape: f32[2,32], index: 8, kind: output, shape index: {1}]
  %9 = xla_tuple %s7, %s8
  %s10 = sld [smem:[#allocation0]]
  $region46: #{mnist_conv_forward.3} parent=0
    _
  %s12 = ssub.s32 1, %s10
  %s13 = scalar_select 0, %s12, %s10
  $region1: #{mnist_conv_forward.3} parent=0
    #allocation2 [shape = 'u8[1024]{0}', space=vmem, size = 0x400, scoped, tag = 'output window, operand 0, single buffered']
    #allocation3 [shape = 's32[1]{0}', space=sflag, size = 0x4, scoped, tag = 'scoped memory for mnist_conv_forward.3']
    #allocation4 [shape = 'u8[1024]{0}', space=vmem, size = 0x400, scoped, tag = 'output window, operand 1, single buffered']
    #allocation5 [shape = 's32[1]{0}', space=sflag, size = 0x4, scoped, tag = 'scoped memory for mnist_conv_forward.3']
    %14 = vsyncpa [#allocation3], 0
    %15 = vsyncpa [#allocation5], 0
    // Predicated region
    $region2: #{mnist_conv_forward.3} parent=1 // pred_check
      _
    $region3: #{mnist_conv_forward.3} parent=1 // pred_check_branch
      %17 = sbr.rel (0) target = $region5
    $region4: #{mnist_conv_forward.3} parent=1 // pred_region
      _
    $region5: #{mnist_conv_forward.3} parent=1 // pred_fallthru
      _
    // Predicated region
    $region6: #{mnist_conv_forward.3} parent=1 // pred_check
      _
    $region7: #{mnist_conv_forward.3} parent=1 // pred_check_branch
      %19 = sbr.rel (0) target = $region9
    $region8: #{mnist_conv_forward.3} parent=1 // pred_region
      _
    $region9: #{mnist_conv_forward.3} parent=1 // pred_fallthru
      _
    // Predicated region
    $region10: #{mnist_conv_forward.3} parent=1 // pred_check
      _
    $region11: #{mnist_conv_forward.3} parent=1 // pred_check_branch
      %21 = sbr.rel (0) target = $region13
    $region12: #{mnist_conv_forward.3} parent=1 // pred_region
      _
    $region13: #{mnist_conv_forward.3} parent=1 // pred_fallthru
      _
    // Predicated region
    $region14: #{mnist_conv_forward.3} parent=1 // pred_check
      _
    $region15: #{mnist_conv_forward.3} parent=1 // pred_check_branch
      %23 = sbr.rel (0) target = $region17
    $region16: #{mnist_conv_forward.3} parent=1 // pred_region
      _
    $region17: #{mnist_conv_forward.3} parent=1 // pred_fallthru
      _
    // Predicated region
    $region18: #{mnist_conv_forward.3} parent=1 // pred_check
      _
    $region19: #{mnist_conv_forward.3} parent=1 // pred_check_branch
      %25 = sbr.rel (0) target = $region21
    $region20: #{mnist_conv_forward.3} parent=1 // pred_region
      _
    $region21: #{mnist_conv_forward.3} parent=1 // pred_fallthru
      _
    // Predicated region
    $region22: #{mnist_conv_forward.3} parent=1 // pred_check
      _
    $region23: #{mnist_conv_forward.3} parent=1 // pred_check_branch
      %27 = sbr.rel (0) target = $region25
    $region24: #{mnist_conv_forward.3} parent=1 // pred_region
      _
    $region25: #{mnist_conv_forward.3} parent=1 // pred_fallthru
      _
    // Predicated region
    $region26: #{mnist_conv_forward.3} parent=1 // pred_check
      _
    $region27: #{mnist_conv_forward.3} parent=1 // pred_check_branch
      %29 = sbr.rel (0) target = $region29
    $region28: #{mnist_conv_forward.3} parent=1 // pred_region
      _
    $region29: #{mnist_conv_forward.3} parent=1 // pred_fallthru
      _
    %v30 = vld [vmem:[%s0] sm:$0xff]
    %v31 = vld [vmem:[%s1] sm:$0xff]
    %v32 = vld [vmem:[%s1 + $0x8] sm:$0xff]
    %v33 = vld [vmem:[%s1 + $0x10] sm:$0xff]
    %v34 = vld [vmem:[%s1 + $0x18] sm:$0xff]
    %v35 = vld [vmem:[%s1 + $0x20] sm:$0xff]
    %v36 = vld [vmem:[%s1 + $0x28] sm:$0xff]
    %v37 = vld [vmem:[%s1 + $0x30] sm:$0xff]
    %v38 = vld [vmem:[%s1 + $0x38] sm:$0xff]
    %v39 = vld [vmem:[%s1 + $0x40] sm:$0xff]
    %v40 = vld [vmem:[%s1 + $0x48] sm:$0xff]
    %v41 = vld [vmem:[%s1 + $0x50] sm:$0xff]
    %v42 = vld [vmem:[%s1 + $0x58] sm:$0xff]
    %v43 = vld [vmem:[%s1 + $0x60] sm:$0xff]
    %v44 = vld [vmem:[%s1 + $0x68] sm:$0xff]
    %v45 = vld [vmem:[%s1 + $0x70] sm:$0xff]
    %v46 = vld [vmem:[%s1 + $0x78] sm:$0xff]
    %v47 = vld [vmem:[%s1 + $0x80] sm:$0xff]
    %v48 = vld [vmem:[%s1 + $0x88] sm:$0xff]
    %v49 = vld [vmem:[%s1 + $0x90] sm:$0xff]
    %v50 = vld [vmem:[%s1 + $0x98] sm:$0xff]
    %v51 = vld [vmem:[%s1 + $0xa0] sm:$0xff]
    %v52 = vld [vmem:[%s1 + $0xa8] sm:$0xff]
    %v53 = vld [vmem:[%s1 + $0xb0] sm:$0xff]
    %v54 = vld [vmem:[%s1 + $0xb8] sm:$0xff]
    %v55 = vld [vmem:[%s1 + $0xc0] sm:$0xff]
    %v56 = vld [vmem:[%s1 + $0xc8] sm:$0xff]
    %v57 = vld [vmem:[%s1 + $0xd0] sm:$0xff]
    %v58 = vld [vmem:[%s1 + $0xd8] sm:$0xff]
    %v59 = vld [vmem:[%s1 + $0xe0] sm:$0xff]
    %v60 = vld [vmem:[%s1 + $0xe8] sm:$0xff]
    %v61 = vld [vmem:[%s1 + $0xf0] sm:$0xff]
    %v62 = vld [vmem:[%s1 + $0xf8] sm:$0xff]
    %v63 = vld [vmem:[%s1 + $0x100] sm:$0xff]
    %v64 = vld [vmem:[%s1 + $0x108] sm:$0xff]
    %v65 = vld [vmem:[%s1 + $0x110] sm:$0xff]
    %v66 = vld [vmem:[%s1 + $0x118] sm:$0xff]
    %v67 = vld [vmem:[%s1 + $0x120] sm:$0xff]
    %v68 = vld [vmem:[%s1 + $0x128] sm:$0xff]
    %v69 = vld [vmem:[%s1 + $0x130] sm:$0xff]
    %v70 = vld [vmem:[%s1 + $0x138] sm:$0xff]
    %v71 = vld [vmem:[%s1 + $0x140] sm:$0xff]
    %v72 = vld [vmem:[%s1 + $0x148] sm:$0xff]
    %v73 = vld [vmem:[%s1 + $0x150] sm:$0xff]
    %v74 = vld [vmem:[%s1 + $0x158] sm:$0xff]
    %v75 = vld [vmem:[%s1 + $0x160] sm:$0xff]
    %v76 = vld [vmem:[%s1 + $0x168] sm:$0xff]
    %v77 = vld [vmem:[%s1 + $0x170] sm:$0xff]
    %v78 = vld [vmem:[%s1 + $0x178] sm:$0xff]
    %v79 = vld [vmem:[%s1 + $0x180] sm:$0xff]
    %v80 = vld [vmem:[%s2] sm:$0x1]
    %v82 = vlaneseq
    %v83 = vshrl.u32 %v82, 7
    %v84 = vsub.s32 0, %v83
    %v85 = vrot.slane %v80, %v84
    %v88 = vcombine.high %v30, %v30
    %v90 = vunpack.c.l.s4 1983009808
    %v91 = vunpack.c.0.s8 %v90
    %v92 = vlaneseq
    %v93 = vshrl.u32 %v92, 7
    %v94 = vsub.s32 %v91, %v93
    %v95 = vrot.slane %v30, %v94
    %v97 = vunpack.c.l.s4 1983009808
    %v98 = vunpack.c.0.s8 %v97
    %v99 = vlaneseq
    %v100 = vshrl.u32 %v99, 7
    %v101 = vsub.s32 %v98, %v100
    %v102 = vrot.slane %v88, %v101
    %v103 = vcombine.high %v95, %v95
    %v104 = vcombine.high %v102, %v102
    %vm108 = vcmask 64512
    %v109 = vsel %vm108, %v104, 0
    %111 = vmatprep.subr.mxu0 0.0
    %112 = vmatpush1.msra.mxu0 %v31
    %113 = vmatprep.subr.mxu0 0.0
    %114 = vmatpush1.msra.mxu0 %v32
    %115 = vmatprep.subr.mxu0 0.0
    %116 = vmatpush1.msra.mxu0 %v33
    %117 = vmatprep.subr.mxu0 0.0
    %118 = vmatpush1.msra.mxu0 %v34
    %119 = vmatprep.subr.mxu0 0.0
    %120 = vmatpush1.msra.mxu0 %v35
    %121 = vmatprep.subr.mxu0 0.0
    %122 = vmatpush1.msra.mxu0 %v36
    %123 = vmatprep.subr.mxu0 0.0
    %124 = vmatpush1.msra.mxu0 %v37
    %125 = vmatprep.subr.mxu0 0.0
    %126 = vmatpush1.msra.mxu0 %v38
    %127 = vmatprep.subr.mxu0 0.0
    %128 = vmatpush1.msra.mxu0 %v39
    %129 = vmatprep.subr.mxu0 0.0
    %130 = vmatpush1.msra.mxu0 %v40
    %131 = vmatprep.subr.mxu0 0.0
    %132 = vmatpush1.msra.mxu0 %v41
    %133 = vmatprep.subr.mxu0 0.0
    %134 = vmatpush1.msra.mxu0 %v42
    %135 = vmatprep.subr.mxu0 0.0
    %136 = vmatpush1.msra.mxu0 %v43
    %137 = vmatprep.subr.mxu0 0.0
    %138 = vmatpush1.msra.mxu0 %v44
    %139 = vmatprep.subr.mxu0 0.0
    %140 = vmatpush1.msra.mxu0 %v45
    %141 = vmatprep.subr.mxu0 0.0
    %142 = vmatpush1.msra.mxu0 %v46
    %143 = vmatprep.subr.mxu0 0.0
    %144 = vmatpush1.msra.mxu0 %v47
    %145 = vmatprep.subr.mxu0 0.0
    %146 = vmatpush1.msra.mxu0 %v48
    %147 = vmatprep.subr.mxu0 0.0
    %148 = vmatpush1.msra.mxu0 %v49
    %149 = vmatprep.subr.mxu0 0.0
    %150 = vmatpush1.msra.mxu0 %v50
    %151 = vmatprep.subr.mxu0 0.0
    %152 = vmatpush1.msra.mxu0 %v51
    %153 = vmatprep.subr.mxu0 0.0
    %154 = vmatpush1.msra.mxu0 %v52
    %155 = vmatprep.subr.mxu0 0.0
    %156 = vmatpush1.msra.mxu0 %v53
    %157 = vmatprep.subr.mxu0 0.0
    %158 = vmatpush1.msra.mxu0 %v54
    %159 = vmatprep.subr.mxu0 0.0
    %160 = vmatpush1.msra.mxu0 %v55
    %161 = vmatprep.subr.mxu0 0.0
    %162 = vmatpush1.msra.mxu0 %v56
    %163 = vmatprep.subr.mxu0 0.0
    %164 = vmatpush1.msra.mxu0 %v57
    %165 = vmatprep.subr.mxu0 0.0
    %166 = vmatpush1.msra.mxu0 %v58
    %167 = vmatprep.subr.mxu0 0.0
    %168 = vmatpush1.msra.mxu0 %v59
    %169 = vmatprep.subr.mxu0 0.0
    %170 = vmatpush1.msra.mxu0 %v60
    %171 = vmatprep.subr.mxu0 0.0
    %172 = vmatpush1.msra.mxu0 %v61
    %173 = vmatprep.subr.mxu0 0.0
    %174 = vmatpush1.msra.mxu0 %v62
    %175 = vmatprep.mubr.f32.mxu0 %v103
    %176 = vmatmul.mubr.f32.gmra.mrb[0].mxu0 %v95
    %v177 = vpop.f32.mrb[0].mxu0
    %v178 = vadd.f32 %v85, %v177
    %v179 = vpop.f32.mrb[0].mxu0
    %180 = vdwg.mxu0
    %181 = vmatprep.subr.mxu0 0.0
    %182 = vmatpush1.msra.mxu0 %v63
    %183 = vmatprep.subr.mxu0 0.0
    %184 = vmatpush1.msra.mxu0 %v64
    %185 = vmatprep.subr.mxu0 0.0
    %186 = vmatpush1.msra.mxu0 %v65
    %187 = vmatprep.subr.mxu0 0.0
    %188 = vmatpush1.msra.mxu0 %v66
    %189 = vmatprep.subr.mxu0 0.0
    %190 = vmatpush1.msra.mxu0 %v67
    %191 = vmatprep.subr.mxu0 0.0
    %192 = vmatpush1.msra.mxu0 %v68
    %193 = vmatprep.subr.mxu0 0.0
    %194 = vmatpush1.msra.mxu0 %v69
    %195 = vmatprep.subr.mxu0 0.0
    %196 = vmatpush1.msra.mxu0 %v70
    %197 = vmatprep.subr.mxu0 0.0
    %198 = vmatpush1.msra.mxu0 %v71
    %199 = vmatprep.subr.mxu0 0.0
    %200 = vmatpush1.msra.mxu0 %v72
    %201 = vmatprep.subr.mxu0 0.0
    %202 = vmatpush1.msra.mxu0 %v73
    %203 = vmatprep.subr.mxu0 0.0
    %204 = vmatpush1.msra.mxu0 %v74
    %205 = vmatprep.subr.mxu0 0.0
    %206 = vmatpush1.msra.mxu0 %v75
    %207 = vmatprep.subr.mxu0 0.0
    %208 = vmatpush1.msra.mxu0 %v76
    %209 = vmatprep.subr.mxu0 0.0
    %210 = vmatpush1.msra.mxu0 %v77
    %211 = vmatprep.subr.mxu0 0.0
    %212 = vmatpush1.msra.mxu0 %v78
    %213 = vmatprep.subr.mxu0 0.0
    %214 = vmatpush1.msra.mxu0 %v79
    %215 = vmatprep.subr.mxu0 0.0
    %216 = vmatpush1.msra.mxu0 0.0
    %217 = vmatprep.subr.mxu0 0.0
    %218 = vmatpush1.msra.mxu0 0.0
    %219 = vmatprep.subr.mxu0 0.0
    %220 = vmatpush1.msra.mxu0 0.0
    %221 = vmatprep.subr.mxu0 0.0
    %222 = vmatpush1.msra.mxu0 0.0
    %223 = vmatprep.subr.mxu0 0.0
    %224 = vmatpush1.msra.mxu0 0.0
    %225 = vmatprep.subr.mxu0 0.0
    %226 = vmatpush1.msra.mxu0 0.0
    %227 = vmatprep.subr.mxu0 0.0
    %228 = vmatpush1.msra.mxu0 0.0
    %229 = vmatprep.subr.mxu0 0.0
    %230 = vmatpush1.msra.mxu0 0.0
    %231 = vmatprep.subr.mxu0 0.0
    %232 = vmatpush1.msra.mxu0 0.0
    %233 = vmatprep.subr.mxu0 0.0
    %234 = vmatpush1.msra.mxu0 0.0
    %235 = vmatprep.subr.mxu0 0.0
    %236 = vmatpush1.msra.mxu0 0.0
    %237 = vmatprep.subr.mxu0 0.0
    %238 = vmatpush1.msra.mxu0 0.0
    %239 = vmatprep.subr.mxu0 0.0
    %240 = vmatpush1.msra.mxu0 0.0
    %241 = vmatprep.subr.mxu0 0.0
    %242 = vmatpush1.msra.mxu0 0.0
    %243 = vmatprep.subr.mxu0 0.0
    %244 = vmatpush1.msra.mxu0 0.0
    %245 = vmatprep.mubr.f32.mxu0 %v109
    %246 = vmatmul.mubr.f32.gmra.mrb[0].mxu0 %v102
    %v247 = vpop.f32.mrb[0].mxu0
    %v248 = vadd.f32 %v178, %v247
    %v249 = vpop.f32.mrb[0].mxu0
    %250 = vdwg.mxu0
    %v251 = vmax.f32 %v248, 0.0
    %vm252 = vcmask 254976
    %253 = vst.msk [vmem:[#allocation4] sm:$0x3] %vm252, %v251
    %v254 = vld [vmem:[%s3] sm:$0xff]
    %v255 = vld [vmem:[%s3 + $0x8] sm:$0xff]
    %v256 = vld [vmem:[%s3 + $0x10] sm:$0xff]
    %v257 = vld [vmem:[%s3 + $0x18] sm:$0xff]
    %v258 = vld [vmem:[%s4] sm:$0x1]
    %v260 = vlaneseq
    %v261 = vshrl.u32 %v260, 7
    %v262 = vsub.s32 0, %v261
    %v263 = vrot.slane %v258, %v262
    %vm265 = vcmask 261120
    %v267 = vsel %vm265, %v251, 0
    %269 = vmatprep.subr.mxu0 0.0
    %270 = vmatpush1.msra.mxu0 %v254
    %271 = vmatprep.subr.mxu0 0.0
    %272 = vmatpush1.msra.mxu0 %v255
    %273 = vmatprep.subr.mxu0 0.0
    %274 = vmatpush1.msra.mxu0 %v256
    %275 = vmatprep.subr.mxu0 0.0
    %276 = vmatpush1.msra.mxu0 %v257
    %277 = vmatprep.subr.mxu0 0.0
    %278 = vmatpush1.msra.mxu0 0.0
    %279 = vmatprep.subr.mxu0 0.0
    %280 = vmatpush1.msra.mxu0 0.0
    %281 = vmatprep.subr.mxu0 0.0
    %282 = vmatpush1.msra.mxu0 0.0
    %283 = vmatprep.subr.mxu0 0.0
    %284 = vmatpush1.msra.mxu0 0.0
    %285 = vmatprep.subr.mxu0 0.0
    %286 = vmatpush1.msra.mxu0 0.0
    %287 = vmatprep.subr.mxu0 0.0
    %288 = vmatpush1.msra.mxu0 0.0
    %289 = vmatprep.subr.mxu0 0.0
    %290 = vmatpush1.msra.mxu0 0.0
    %291 = vmatprep.subr.mxu0 0.0
    %292 = vmatpush1.msra.mxu0 0.0
    %293 = vmatprep.subr.mxu0 0.0
    %294 = vmatpush1.msra.mxu0 0.0
    %295 = vmatprep.subr.mxu0 0.0
    %296 = vmatpush1.msra.mxu0 0.0
    %297 = vmatprep.subr.mxu0 0.0
    %298 = vmatpush1.msra.mxu0 0.0
    %299 = vmatprep.subr.mxu0 0.0
    %300 = vmatpush1.msra.mxu0 0.0
    %301 = vmatprep.subr.mxu0 0.0
    %302 = vmatpush1.msra.mxu0 0.0
    %303 = vmatprep.subr.mxu0 0.0
    %304 = vmatpush1.msra.mxu0 0.0
    %305 = vmatprep.subr.mxu0 0.0
    %306 = vmatpush1.msra.mxu0 0.0
    %307 = vmatprep.subr.mxu0 0.0
    %308 = vmatpush1.msra.mxu0 0.0
    %309 = vmatprep.subr.mxu0 0.0
    %310 = vmatpush1.msra.mxu0 0.0
    %311 = vmatprep.subr.mxu0 0.0
    %312 = vmatpush1.msra.mxu0 0.0
    %313 = vmatprep.subr.mxu0 0.0
    %314 = vmatpush1.msra.mxu0 0.0
    %315 = vmatprep.subr.mxu0 0.0
    %316 = vmatpush1.msra.mxu0 0.0
    %317 = vmatprep.subr.mxu0 0.0
    %318 = vmatpush1.msra.mxu0 0.0
    %319 = vmatprep.subr.mxu0 0.0
    %320 = vmatpush1.msra.mxu0 0.0
    %321 = vmatprep.subr.mxu0 0.0
    %322 = vmatpush1.msra.mxu0 0.0
    %323 = vmatprep.subr.mxu0 0.0
    %324 = vmatpush1.msra.mxu0 0.0
    %325 = vmatprep.subr.mxu0 0.0
    %326 = vmatpush1.msra.mxu0 0.0
    %327 = vmatprep.subr.mxu0 0.0
    %328 = vmatpush1.msra.mxu0 0.0
    %329 = vmatprep.subr.mxu0 0.0
    %330 = vmatpush1.msra.mxu0 0.0
    %331 = vmatprep.subr.mxu0 0.0
    %332 = vmatpush1.msra.mxu0 0.0
    %333 = vmatprep.mubr.f32.mxu0 0.0
    %334 = vmatmul.mubr.f32.gmra.mrb[0].mxu0 %v267
    %v335 = vpop.f32.mrb[0].mxu0
    %v336 = vadd.f32 %v263, %v335
    %v337 = vpop.f32.mrb[0].mxu0
    %338 = vdwg.mxu0
    %v339 = vmax.f32 %v336, 0.0
    %v340 = vld [vmem:[%s5] sm:$0xff]
    %v341 = vld [vmem:[%s5 + $0x8] sm:$0xff]
    %v342 = vld [vmem:[%s5 + $0x10] sm:$0xff]
    %v343 = vld [vmem:[%s5 + $0x18] sm:$0xff]
    %v344 = vld [vmem:[%s5 + $0x20] sm:$0xff]
    %v345 = vld [vmem:[%s5 + $0x28] sm:$0xff]
    %v346 = vld [vmem:[%s5 + $0x30] sm:$0xff]
    %v347 = vld [vmem:[%s5 + $0x38] sm:$0xff]
    %v348 = vld [vmem:[%s6] sm:$0x1]
    %v350 = vlaneseq
    %v351 = vshrl.u32 %v350, 7
    %v352 = vsub.s32 0, %v351
    %v353 = vrot.slane %v348, %v352
    %vm355 = vcmask 523264
    %v357 = vsel %vm355, %v339, 0
    %359 = vmatprep.subr.mxu0 0.0
    %360 = vmatpush1.msra.mxu0 %v340
    %361 = vmatprep.subr.mxu0 0.0
    %362 = vmatpush1.msra.mxu0 %v341
    %363 = vmatprep.subr.mxu0 0.0
    %364 = vmatpush1.msra.mxu0 %v342
    %365 = vmatprep.subr.mxu0 0.0
    %366 = vmatpush1.msra.mxu0 %v343
    %367 = vmatprep.subr.mxu0 0.0
    %368 = vmatpush1.msra.mxu0 %v344
    %369 = vmatprep.subr.mxu0 0.0
    %370 = vmatpush1.msra.mxu0 %v345
    %371 = vmatprep.subr.mxu0 0.0
    %372 = vmatpush1.msra.mxu0 %v346
    %373 = vmatprep.subr.mxu0 0.0
    %374 = vmatpush1.msra.mxu0 %v347
    %375 = vmatprep.subr.mxu0 0.0
    %376 = vmatpush1.msra.mxu0 0.0
    %377 = vmatprep.subr.mxu0 0.0
    %378 = vmatpush1.msra.mxu0 0.0
    %379 = vmatprep.subr.mxu0 0.0
    %380 = vmatpush1.msra.mxu0 0.0
    %381 = vmatprep.subr.mxu0 0.0
    %382 = vmatpush1.msra.mxu0 0.0
    %383 = vmatprep.subr.mxu0 0.0
    %384 = vmatpush1.msra.mxu0 0.0
    %385 = vmatprep.subr.mxu0 0.0
    %386 = vmatpush1.msra.mxu0 0.0
    %387 = vmatprep.subr.mxu0 0.0
    %388 = vmatpush1.msra.mxu0 0.0
    %389 = vmatprep.subr.mxu0 0.0
    %390 = vmatpush1.msra.mxu0 0.0
    %391 = vmatprep.subr.mxu0 0.0
    %392 = vmatpush1.msra.mxu0 0.0
    %393 = vmatprep.subr.mxu0 0.0
    %394 = vmatpush1.msra.mxu0 0.0
    %395 = vmatprep.subr.mxu0 0.0
    %396 = vmatpush1.msra.mxu0 0.0
    %397 = vmatprep.subr.mxu0 0.0
    %398 = vmatpush1.msra.mxu0 0.0
    %399 = vmatprep.subr.mxu0 0.0
    %400 = vmatpush1.msra.mxu0 0.0
    %401 = vmatprep.subr.mxu0 0.0
    %402 = vmatpush1.msra.mxu0 0.0
    %403 = vmatprep.subr.mxu0 0.0
    %404 = vmatpush1.msra.mxu0 0.0
    %405 = vmatprep.subr.mxu0 0.0
    %406 = vmatpush1.msra.mxu0 0.0
    %407 = vmatprep.subr.mxu0 0.0
    %408 = vmatpush1.msra.mxu0 0.0
    %409 = vmatprep.subr.mxu0 0.0
    %410 = vmatpush1.msra.mxu0 0.0
    %411 = vmatprep.subr.mxu0 0.0
    %412 = vmatpush1.msra.mxu0 0.0
    %413 = vmatprep.subr.mxu0 0.0
    %414 = vmatpush1.msra.mxu0 0.0
    %415 = vmatprep.subr.mxu0 0.0
    %416 = vmatpush1.msra.mxu0 0.0
    %417 = vmatprep.subr.mxu0 0.0
    %418 = vmatpush1.msra.mxu0 0.0
    %419 = vmatprep.subr.mxu0 0.0
    %420 = vmatpush1.msra.mxu0 0.0
    %421 = vmatprep.subr.mxu0 0.0
    %422 = vmatpush1.msra.mxu0 0.0
    %423 = vmatprep.mubr.f32.mxu0 0.0
    %424 = vmatmul.mubr.f32.gmra.mrb[0].mxu0 %v357
    %v425 = vpop.f32.mrb[0].mxu0
    %v426 = vadd.f32 %v353, %v425
    %v427 = vpop.f32.mrb[0].mxu0
    %428 = vdwg.mxu0
    %vm429 = vcmask 74752
    %430 = vst.msk [vmem:[#allocation2] sm:$0x3] %vm429, %v426
    // Predicated region
    $region30: #{mnist_conv_forward.3} parent=1 // pred_check
      _
    $region31: #{mnist_conv_forward.3} parent=1 // pred_check_branch
      %432 = sbr.rel (0) target = $region33
    $region32: #{mnist_conv_forward.3} parent=1 // pred_region
      %s434 = ssub.s32 32, 32
      %435 = vsyncadd [#allocation3], %s434
      %s437 = sshll.u32 [#allocation2], 4
      %s438 = int_to_ptr.vmem [resolvable:$true] %s437
      %440 = dma.vmem_to_hbm [thread:$0]  %s438, 32, %s7, [#allocation3]
    $region33: #{mnist_conv_forward.3} parent=1 // pred_fallthru
      _
    // Predicated region
    $region34: #{mnist_conv_forward.3} parent=1 // pred_check
      _
    $region35: #{mnist_conv_forward.3} parent=1 // pred_check_branch
      %442 = sbr.rel (0) target = $region37
    $region36: #{mnist_conv_forward.3} parent=1 // pred_region
      %s444 = ssub.s32 32, 32
      %445 = vsyncadd [#allocation5], %s444
      %s447 = sshll.u32 [#allocation4], 4
      %s448 = int_to_ptr.vmem [resolvable:$true] %s447
      %450 = dma.vmem_to_hbm [thread:$0]  %s448, 32, %s8, [#allocation5]
    $region37: #{mnist_conv_forward.3} parent=1 // pred_fallthru
      _
    // Predicated region
    $region38: #{mnist_conv_forward.3} parent=1 // pred_check
      _
    $region39: #{mnist_conv_forward.3} parent=1 // pred_check_branch
      %452 = sbr.rel (0) target = $region41
    $region40: #{mnist_conv_forward.3} parent=1 // pred_region
      %453 = dma.done [#allocation3], 32
    $region41: #{mnist_conv_forward.3} parent=1 // pred_fallthru
      _
    // Predicated region
    $region42: #{mnist_conv_forward.3} parent=1 // pred_check
      _
    $region43: #{mnist_conv_forward.3} parent=1 // pred_check_branch
      %455 = sbr.rel (0) target = $region45
    $region44: #{mnist_conv_forward.3} parent=1 // pred_region
      %456 = dma.done [#allocation5], 32
    $region45: #{mnist_conv_forward.3} parent=1 // pred_fallthru
      _
    %457 = vsyncpa [#allocation3], 1
    %458 = vsyncpa [#allocation5], 1

// kernel: mnist_conv_forward.2
$region0: #{mnist_conv_forward.2}
  #allocation0 [shape = 'u32[]', space=smem, size = 0x4, offset = 0x4, fixed_abs, tag = 'smem constant byte address 0x4 - core index']
  #allocation1 [shape = 'u32[144,128]{1,0:T(1,128)}', space=vmem, size = 0x12000, scoped, tag = 'internal scratch']
  #allocation2 [shape = 'f32[8,16,16]{2,1,0:T(8,128)}', space=vmem, size = 0x10000, scoped, tag = 'scratch operand']
  %s0 = inlined_call_operand.vmem [shape: f32[2,3,30,30], index: 0, kind: input, shape index: {}]
  %s1 = inlined_call_operand.vmem [shape: f32[216], index: 1, kind: input, shape index: {}]
  %s2 = inlined_call_operand.vmem [shape: f32[8], index: 2, kind: input, shape index: {}]
  %s3 = inlined_call_operand.vmem [shape: f32[576], index: 3, kind: input, shape index: {}]
  %s4 = inlined_call_operand.vmem [shape: f32[8], index: 4, kind: input, shape index: {}]
  %s5 = inlined_call_operand.vmem [shape: f32[2,8,7,7], index: 5, kind: output, shape index: {}]
  %s6 = sld [smem:[#allocation0]]
  $region83: #{mnist_conv_forward.2} parent=0
    _
  %s8 = ssub.s32 1, %s6
  %s9 = scalar_select 0, %s8, %s6
  $region1: #{mnist_conv_forward.2} parent=0
    #allocation3 [shape = 'u8[1024]{0}', space=smem, size = 0x400, scoped, tag = 'input window, operand 1, single buffered']
    #allocation4 [shape = 's32[2]{0}', space=sflag, size = 0x8, scoped, tag = 'scoped memory for mnist_conv_forward.2']
    #allocation5 [shape = 'u8[512]{0}', space=smem, size = 0x200, scoped, tag = 'input window, operand 2, single buffered']
    #allocation6 [shape = 's32[1]{0}', space=sflag, size = 0x4, scoped, tag = 'scoped memory for mnist_conv_forward.2']
    #allocation7 [shape = 'u8[2560]{0}', space=smem, size = 0xa00, scoped, tag = 'input window, operand 3, single buffered']
    #allocation8 [shape = 'u8[512]{0}', space=smem, size = 0x200, scoped, tag = 'input window, operand 4, single buffered']
    #allocation9 [shape = 's32[1]{0}', space=sflag, size = 0x4, scoped, tag = 'scoped memory for mnist_conv_forward.2']
    %10 = vsyncpa [#allocation4], 0
    %11 = vsyncpa [#allocation6], 0
    %12 = vsyncpa [#allocation9], 0
    loop: start=0, step=1, limit=4
    $region2: #{mnist_conv_forward.2} parent=1 // loop_pre_header
      _
    $region3: #{mnist_conv_forward.2} parent=1 // loop_header
      %s14 = sphi 0, %s18
      %p15 = scmp.ge.s32.totalorder %s14, 4
      %s24 = sphi 0, %s26
      %s27 = sphi 0, %s24
      %s28 = sphi 0, %s27
      %s44 = sphi 0, %s28
      %s48 = sphi 0, %s48
      %s50 = sphi 0, %s48
      %s51 = sphi 0, %s50
      %s65 = sphi 0, %s51
      %s69 = sphi 0, %s69
      %s71 = sphi 0, %s69
      %s72 = sphi 0, %s71
      %s86 = sphi 0, %s72
      %s90 = sphi 0, %s90
      %s92 = sphi 0, %s90
      %s93 = sphi 0, %s92
      %s107 = sphi 0, %s93
      %s111 = sphi 0, %s111
      %s113 = sphi 0, %s111
      %s114 = sphi 0, %s113
      %s128 = sphi 0, %s114
      %s134 = sphi 0, %s136
      %s137 = sphi 0, %s134
      %s138 = sphi 0, %s137
      %s154 = sphi 0, %s138
    $region4: #{mnist_conv_forward.2} parent=1 // loop_header_branch
      %17 = sbr.rel (%p15) target = $region8
    $region5: #{mnist_conv_forward.2} parent=1 // loop_body
      %s19 = ssub.s32 %s14, 1
      %s20 = ssub.s32 %s14, 2
      %s21 = sadd.s32 %s14, 1
      %s22 = ssub.s32 %s14, %s21
      %p23 = scmp.eq.s32.totalorder %s22, 0
      %s25 = sadd.s32 %s24, 1
      %s26 = scalar_select %p23, %s24, %s25
      %p29 = pneg %p23
      %p30 = scmp.eq.s32.totalorder %s14, 1
      %p31 = por %p29, %p30
      %p32 = scmp.ne.s32.totalorder %s24, %s27
      %p33 = scmp.eq.s32.totalorder %s14, 0
      %p34 = por %p32, %p33
      %p35 = scmp.ne.s32.totalorder %s24, %s27
      %p36 = scmp.eq.s32.totalorder %s19, 1
      %p37 = por %p35, %p36
      %p38 = scmp.ne.s32.totalorder %s27, %s28
      %p39 = scmp.eq.s32.totalorder %s19, 0
      %p40 = por %p38, %p39
      %p41 = scmp.ne.s32.totalorder %s27, %s28
      %p42 = scmp.eq.s32.totalorder %s20, 1
      %p43 = por %p41, %p42
      %p45 = scmp.ne.s32.totalorder %s28, %s44
      %p46 = scmp.eq.s32.totalorder %s20, 0
      %p47 = por %p45, %p46
      %s49 = sadd.s32 %s48, 1
      %p52 = scmp.eq.s32.totalorder %s14, 1
      %p53 = scmp.ne.s32.totalorder %s48, %s50
      %p54 = scmp.eq.s32.totalorder %s14, 0
      %p55 = por %p53, %p54
      %p56 = scmp.ne.s32.totalorder %s48, %s50
      %p57 = scmp.eq.s32.totalorder %s19, 1
      %p58 = por %p56, %p57
      %p59 = scmp.ne.s32.totalorder %s50, %s51
      %p60 = scmp.eq.s32.totalorder %s19, 0
      %p61 = por %p59, %p60
      %p62 = scmp.ne.s32.totalorder %s50, %s51
      %p63 = scmp.eq.s32.totalorder %s20, 1
      %p64 = por %p62, %p63
      %p66 = scmp.ne.s32.totalorder %s51, %s65
      %p67 = scmp.eq.s32.totalorder %s20, 0
      %p68 = por %p66, %p67
      %s70 = sadd.s32 %s69, 1
      %p73 = scmp.eq.s32.totalorder %s14, 1
      %p74 = scmp.ne.s32.totalorder %s69, %s71
      %p75 = scmp.eq.s32.totalorder %s14, 0
      %p76 = por %p74, %p75
      %p77 = scmp.ne.s32.totalorder %s69, %s71
      %p78 = scmp.eq.s32.totalorder %s19, 1
      %p79 = por %p77, %p78
      %p80 = scmp.ne.s32.totalorder %s71, %s72
      %p81 = scmp.eq.s32.totalorder %s19, 0
      %p82 = por %p80, %p81
      %p83 = scmp.ne.s32.totalorder %s71, %s72
      %p84 = scmp.eq.s32.totalorder %s20, 1
      %p85 = por %p83, %p84
      %p87 = scmp.ne.s32.totalorder %s72, %s86
      %p88 = scmp.eq.s32.totalorder %s20, 0
      %p89 = por %p87, %p88
      %s91 = sadd.s32 %s90, 1
      %p94 = scmp.eq.s32.totalorder %s14, 1
      %p95 = scmp.ne.s32.totalorder %s90, %s92
      %p96 = scmp.eq.s32.totalorder %s14, 0
      %p97 = por %p95, %p96
      %p98 = scmp.ne.s32.totalorder %s90, %s92
      %p99 = scmp.eq.s32.totalorder %s19, 1
      %p100 = por %p98, %p99
      %p101 = scmp.ne.s32.totalorder %s92, %s93
      %p102 = scmp.eq.s32.totalorder %s19, 0
      %p103 = por %p101, %p102
      %p104 = scmp.ne.s32.totalorder %s92, %s93
      %p105 = scmp.eq.s32.totalorder %s20, 1
      %p106 = por %p104, %p105
      %p108 = scmp.ne.s32.totalorder %s93, %s107
      %p109 = scmp.eq.s32.totalorder %s20, 0
      %p110 = por %p108, %p109
      %s112 = sadd.s32 %s111, 1
      %p115 = scmp.eq.s32.totalorder %s14, 1
      %p116 = scmp.ne.s32.totalorder %s111, %s113
      %p117 = scmp.eq.s32.totalorder %s14, 0
      %p118 = por %p116, %p117
      %p119 = scmp.ne.s32.totalorder %s111, %s113
      %p120 = scmp.eq.s32.totalorder %s19, 1
      %p121 = por %p119, %p120
      %p122 = scmp.ne.s32.totalorder %s113, %s114
      %p123 = scmp.eq.s32.totalorder %s19, 0
      %p124 = por %p122, %p123
      %p125 = scmp.ne.s32.totalorder %s113, %s114
      %p126 = scmp.eq.s32.totalorder %s20, 1
      %p127 = por %p125, %p126
      %p129 = scmp.ne.s32.totalorder %s114, %s128
      %p130 = scmp.eq.s32.totalorder %s20, 0
      %p131 = por %p129, %p130
      %s132 = ssub.s32 %s14, %s21
      %p133 = scmp.eq.s32.totalorder %s132, 0
      %s135 = sadd.s32 %s134, 1
      %s136 = scalar_select %p133, %s134, %s135
      %p139 = pneg %p133
      %p140 = scmp.eq.s32.totalorder %s14, 1
      %p141 = por %p139, %p140
      %p142 = scmp.ne.s32.totalorder %s134, %s137
      %p143 = scmp.eq.s32.totalorder %s14, 0
      %p144 = por %p142, %p143
      %p145 = scmp.ne.s32.totalorder %s134, %s137
      %p146 = scmp.eq.s32.totalorder %s19, 1
      %p147 = por %p145, %p146
      %p148 = scmp.ne.s32.totalorder %s137, %s138
      %p149 = scmp.eq.s32.totalorder %s19, 0
      %p150 = por %p148, %p149
      %p151 = scmp.ne.s32.totalorder %s137, %s138
      %p152 = scmp.eq.s32.totalorder %s20, 1
      %p153 = por %p151, %p152
      %p155 = scmp.ne.s32.totalorder %s138, %s154
      %p156 = scmp.eq.s32.totalorder %s20, 0
      %p157 = por %p155, %p156
      %p158 = scmp.le.s32.totalorder 1, %s14
      %p159 = scmp.lt.s32.totalorder %s14, 3
      %p160 = pnand %p158, %p159
      %p161 = pneg %p160
      // Predicated region
      $region9: #{mnist_conv_forward.2} parent=5 // pred_check
        _
      $region10: #{mnist_conv_forward.2} parent=5 // pred_check_branch
        %163 = sbr.rel (%p160) target = $region12
      $region11: #{mnist_conv_forward.2} parent=5 // pred_region
        %s164 = ssub.s32 %s14, 1
        // Predicated region
        $region13: #{mnist_conv_forward.2} parent=11 // pred_check
          %p165 = pneg %p61
        $region14: #{mnist_conv_forward.2} parent=11 // pred_check_branch
          %167 = sbr.rel (%p165) target = $region16
        $region15: #{mnist_conv_forward.2} parent=11 // pred_region
          %s169 = ssub.s32 32, 32
          %170 = vsyncadd [#allocation4], %s169
          %s172 = sshll.u32 %s1, 4
          %s173 = int_to_ptr.vmem [resolvable:$true] %s172
          %175 = dma.vmem_to_smem %s173, 32, [#allocation3], [#allocation4]
        $region16: #{mnist_conv_forward.2} parent=11 // pred_fallthru
          _
        // Predicated region
        $region17: #{mnist_conv_forward.2} parent=11 // pred_check
          %p176 = pneg %p82
        $region18: #{mnist_conv_forward.2} parent=11 // pred_check_branch
          %178 = sbr.rel (%p176) target = $region20
        $region19: #{mnist_conv_forward.2} parent=11 // pred_region
          %s180 = ssub.s32 16, 16
          %181 = vsyncadd [#allocation6], %s180
          %s183 = sshll.u32 %s2, 4
          %s184 = int_to_ptr.vmem [resolvable:$true] %s183
          %186 = dma.vmem_to_smem %s184, 16, [#allocation5], [#allocation6]
        $region20: #{mnist_conv_forward.2} parent=11 // pred_fallthru
          _
        // Predicated region
        $region21: #{mnist_conv_forward.2} parent=11 // pred_check
          %p187 = pneg %p103
        $region22: #{mnist_conv_forward.2} parent=11 // pred_check_branch
          %189 = sbr.rel (%p187) target = $region24
        $region23: #{mnist_conv_forward.2} parent=11 // pred_region
          %s191 = ssub.s32 80, 80
          %192 = vsyncadd [#allocation6], %s191
          %s194 = sshll.u32 %s3, 4
          %s195 = int_to_ptr.vmem [resolvable:$true] %s194
          %197 = dma.vmem_to_smem %s195, 80, [#allocation7], [#allocation6]
        $region24: #{mnist_conv_forward.2} parent=11 // pred_fallthru
          _
        // Predicated region
        $region25: #{mnist_conv_forward.2} parent=11 // pred_check
          %p198 = pneg %p124
        $region26: #{mnist_conv_forward.2} parent=11 // pred_check_branch
          %200 = sbr.rel (%p198) target = $region28
        $region27: #{mnist_conv_forward.2} parent=11 // pred_region
          %s202 = ssub.s32 16, 16
          %203 = vsyncadd [#allocation9], %s202
          %s205 = sshll.u32 %s4, 4
          %s206 = int_to_ptr.vmem [resolvable:$true] %s205
          %208 = dma.vmem_to_smem %s206, 16, [#allocation8], [#allocation9]
        $region28: #{mnist_conv_forward.2} parent=11 // pred_fallthru
          _
      $region12: #{mnist_conv_forward.2} parent=5 // pred_fallthru
        _
      %p209 = scmp.lt.s32.totalorder %s14, 2
      // Predicated region
      $region29: #{mnist_conv_forward.2} parent=5 // pred_check
        %p210 = pneg %p209
      $region30: #{mnist_conv_forward.2} parent=5 // pred_check_branch
        %212 = sbr.rel (%p210) target = $region32
      $region31: #{mnist_conv_forward.2} parent=5 // pred_region
        // Predicated region
        $region33: #{mnist_conv_forward.2} parent=31 // pred_check
          %p213 = pneg %p34
        $region34: #{mnist_conv_forward.2} parent=31 // pred_check_branch
          %215 = sbr.rel (%p213) target = $region36
        $region35: #{mnist_conv_forward.2} parent=31 // pred_region
          %p216 = scmp.lt.s32.totalorder %s14, 1
          %s217 = scalar_select %p216, %s14, 1
          %s218 = smul.addr %s217, 12
          %s219 = smul.addr %s218, 8
          %s220 = scalar_lea.vmem %s0, %s219
        $region36: #{mnist_conv_forward.2} parent=31 // pred_fallthru
          _
      $region32: #{mnist_conv_forward.2} parent=5 // pred_fallthru
        _
      %p221 = scmp.le.s32.totalorder 1, %s14
      %p222 = scmp.lt.s32.totalorder %s14, 3
      %p223 = pnand %p221, %p222
      %p224 = pneg %p223
      // Predicated region
      $region37: #{mnist_conv_forward.2} parent=5 // pred_check
        _
      $region38: #{mnist_conv_forward.2} parent=5 // pred_check_branch
        %226 = sbr.rel (%p223) target = $region40
      $region39: #{mnist_conv_forward.2} parent=5 // pred_region
        %s227 = ssub.s32 %s14, 1
        // Predicated region
        $region41: #{mnist_conv_forward.2} parent=39 // pred_check
          %p228 = pneg %p61
        $region42: #{mnist_conv_forward.2} parent=39 // pred_check_branch
          %230 = sbr.rel (%p228) target = $region44
        $region43: #{mnist_conv_forward.2} parent=39 // pred_region
          %231 = dma.done [#allocation4], 32
        $region44: #{mnist_conv_forward.2} parent=39 // pred_fallthru
          _
        // Predicated region
        $region45: #{mnist_conv_forward.2} parent=39 // pred_check
          %p232 = pneg %p82
        $region46: #{mnist_conv_forward.2} parent=39 // pred_check_branch
          %234 = sbr.rel (%p232) target = $region48
        $region47: #{mnist_conv_forward.2} parent=39 // pred_region
          %235 = dma.done [#allocation6], 16
        $region48: #{mnist_conv_forward.2} parent=39 // pred_fallthru
          _
        // Predicated region
        $region49: #{mnist_conv_forward.2} parent=39 // pred_check
          %p236 = pneg %p103
        $region50: #{mnist_conv_forward.2} parent=39 // pred_check_branch
          %238 = sbr.rel (%p236) target = $region52
        $region51: #{mnist_conv_forward.2} parent=39 // pred_region
          %239 = dma.done [#allocation6], 80
        $region52: #{mnist_conv_forward.2} parent=39 // pred_fallthru
          _
        // Predicated region
        $region53: #{mnist_conv_forward.2} parent=39 // pred_check
          %p240 = pneg %p124
        $region54: #{mnist_conv_forward.2} parent=39 // pred_check_branch
          %242 = sbr.rel (%p240) target = $region56
        $region55: #{mnist_conv_forward.2} parent=39 // pred_region
          %243 = dma.done [#allocation9], 16
        $region56: #{mnist_conv_forward.2} parent=39 // pred_fallthru
          _
        %244 = sfence
        %p245 = scmp.lt.s32.totalorder %s19, 1
        %s246 = scalar_select %p245, %s19, 1
        %s247 = smul.addr %s246, 12
        %s248 = smul.addr %s247, 8
        %s249 = scalar_lea.vmem %s0, %s248
        %p250 = pneg %p40
        %p251 = pneg %p37
        %p252 = pneg %p61
        %p253 = pneg %p58
        %p254 = pneg %p82
        %p255 = pneg %p79
        %p256 = pneg %p103
        %p257 = pneg %p100
        %p258 = pneg %p124
        %p259 = pneg %p121
        %p260 = pneg %p150
        %p261 = pneg %p147
        %p262 = scmp.lt.s32.totalorder %s19, 1
        %s263 = scalar_select %p262, %s19, 1
        %s264 = smul.addr %s263, 8
        %s265 = smul.addr %s264, 8
        %s266 = scalar_lea.vmem %s5, %s265
        %p267 = scmp.lt.s32.totalorder %s19, 1
        %s268 = scalar_select %p267, %s19, 1
        %s269 = smul.addr %s268, 12
        %s270 = smul.addr %s269, 8
        %s271 = scalar_lea.vmem %s0, %s270
        %p272 = scmp.lt.s32.totalorder %s19, 1
        %s273 = scalar_select %p272, %s19, 1
        %s274 = smul.addr %s273, 8
        %s275 = smul.addr %s274, 8
        %s276 = scalar_lea.vmem %s5, %s275
        %v277 = vlaneseq
        %v278 = vshrl.u32 %v277, 7
        %v279 = vadd.s32 %v278, 8
        %v280 = vadd.s32 %v278, 16
        %v281 = vadd.s32 %v278, 24
        %v282 = vlaneseq
        %v283 = vand.u32 %v282, 127
        %v284 = vmul.u32 %v283, 2
        %vm285 = vcmp.eq.s32.totalorder %v278, %v284
        %vm286 = vcmp.eq.s32.totalorder %v279, %v284
        %vm287 = vcmp.eq.s32.totalorder %v280, %v284
        %vm288 = vcmp.eq.s32.totalorder %v281, %v284
        %v289 = vsel %vm285, 1, 0
        %v290 = vsel %vm286, 1, 0
        %v291 = vsel %vm287, 1, 0
        %v292 = vsel %vm288, 1, 0
        %v293 = vcvt.s32.f32 %v289
        %v294 = vcvt.s32.f32 %v290
        %v295 = vcvt.s32.f32 %v291
        %v296 = vcvt.s32.f32 %v292
        %v297 = vadd.s32 %v284, 1
        %vm298 = vcmp.eq.s32.totalorder %v278, %v297
        %vm299 = vcmp.eq.s32.totalorder %v279, %v297
        %vm300 = vcmp.eq.s32.totalorder %v280, %v297
        %vm301 = vcmp.eq.s32.totalorder %v281, %v297
        %v302 = vsel %vm298, 1, 0
        %v303 = vsel %vm299, 1, 0
        %v304 = vsel %vm300, 1, 0
        %v305 = vsel %vm301, 1, 0
        %v306 = vcvt.s32.f32 %v302
        %v307 = vcvt.s32.f32 %v303
        %v308 = vcvt.s32.f32 %v304
        %v309 = vcvt.s32.f32 %v305
        %v310 = vmul.u32 %v278, 2
        %v311 = vmul.u32 %v279, 2
        %vm312 = vcmp.eq.s32.totalorder %v283, %v310
        %vm313 = vcmp.eq.s32.totalorder %v283, %v311
        %v314 = vsel %vm312, 1, 0
        %v315 = vsel %vm313, 1, 0
        %v316 = vcvt.s32.f32 %v314
        %v317 = vcvt.s32.f32 %v315
        %v318 = vadd.s32 %v310, 1
        %v319 = vadd.s32 %v311, 1
        %vm320 = vcmp.eq.s32.totalorder %v283, %v318
        %vm321 = vcmp.eq.s32.totalorder %v283, %v319
        %v322 = vsel %vm320, 1, 0
        %v323 = vsel %vm321, 1, 0
        %v324 = vcvt.s32.f32 %v322
        %v325 = vcvt.s32.f32 %v323
        %vm326 = vcmask 130048
        %327 = vst.msk [vmem:[#allocation2] sm:$0xff] %vm326, 0.0
        %328 = vst.msk [vmem:[#allocation2 + $0x8] sm:$0xff] %vm326, 0.0
        %329 = vst.msk [vmem:[#allocation2 + $0x10] sm:$0xff] %vm326, 0.0
        %330 = vst.msk [vmem:[#allocation2 + $0x18] sm:$0xff] %vm326, 0.0
        %331 = vst.msk [vmem:[#allocation2 + $0x20] sm:$0xff] %vm326, 0.0
        %332 = vst.msk [vmem:[#allocation2 + $0x28] sm:$0xff] %vm326, 0.0
        %333 = vst.msk [vmem:[#allocation2 + $0x30] sm:$0xff] %vm326, 0.0
        %334 = vst.msk [vmem:[#allocation2 + $0x38] sm:$0xff] %vm326, 0.0
        %335 = vst.msk [vmem:[#allocation2 + $0x40] sm:$0xff] %vm326, 0.0
        %336 = vst.msk [vmem:[#allocation2 + $0x48] sm:$0xff] %vm326, 0.0
        %337 = vst.msk [vmem:[#allocation2 + $0x50] sm:$0xff] %vm326, 0.0
        %338 = vst.msk [vmem:[#allocation2 + $0x58] sm:$0xff] %vm326, 0.0
        %339 = vst.msk [vmem:[#allocation2 + $0x60] sm:$0xff] %vm326, 0.0
        %340 = vst.msk [vmem:[#allocation2 + $0x68] sm:$0xff] %vm326, 0.0
        %341 = vst.msk [vmem:[#allocation2 + $0x70] sm:$0xff] %vm326, 0.0
        %342 = vst.msk [vmem:[#allocation2 + $0x78] sm:$0xff] %vm326, 0.0
        loop: start=0, step=1, limit=8
        $region57: #{mnist_conv_forward.2} parent=39 // loop_pre_header
          _
        $region58: #{mnist_conv_forward.2} parent=39 // loop_header
          %s344 = sphi 0, %s348
          %p345 = scmp.ge.s32.totalorder %s344, 8
        $region59: #{mnist_conv_forward.2} parent=39 // loop_header_branch
          %347 = sbr.rel (%p345) target = $region63
        $region60: #{mnist_conv_forward.2} parent=39 // loop_body
          %s349 = smul.u32 %s344, 27
          %s350 = sld [smem:[#allocation3 + %s349]]
          %v351 = vld [vmem:[%s271] sm:$0xff]
          %v352 = vld [vmem:[%s271 + $0x8] sm:$0xff]
          %v353 = vld [vmem:[%s271 + $0x10] sm:$0xff]
          %v354 = vld [vmem:[%s271 + $0x18] sm:$0xf]
          %v355 = vstv %s350
          %v356 = vmul.f32 %v355, %v351
          %v357 = vmul.f32 %v355, %v352
          %v358 = vmul.f32 %v355, %v353
          %v359 = vmul.f32 %v355, %v354
          %v360 = vadd.f32 %v356, 0.0
          %v361 = vadd.f32 %v357, 0.0
          %v362 = vadd.f32 %v358, 0.0
          %v363 = vadd.f32 %v359, 0.0
          %s364 = sadd.s32 %s349, 1
          %s365 = sld [smem:[#allocation3 + %s364]]
          %v366 = vstv %s365
          %v367 = vmul.f32 %v366, %v351
          %v368 = vmul.f32 %v366, %v352
          %v369 = vmul.f32 %v366, %v353
          %v370 = vmul.f32 %v366, %v354
          %375 = vrot.lane.b32.xlu0 %v367, 127
          %v376 = vpop.permute.xlu0 %375
          %377 = vrot.lane.b32.xlu0 %v368, 127
          %v378 = vpop.permute.xlu0 %377
          %379 = vrot.lane.b32.xlu0 %v369, 127
          %v380 = vpop.permute.xlu0 %379
          %381 = vrot.lane.b32.xlu0 %v370, 127
          %v382 = vpop.permute.xlu0 %381
          %v387 = vadd.f32 %v360, %v376
          %v388 = vadd.f32 %v361, %v378
          %v389 = vadd.f32 %v362, %v380
          %v390 = vadd.f32 %v363, %v382
          %s391 = sadd.s32 %s349, 2
          %s392 = sld [smem:[#allocation3 + %s391]]
          %v393 = vstv %s392
          %v394 = vmul.f32 %v393, %v351
          %v395 = vmul.f32 %v393, %v352
          %v396 = vmul.f32 %v393, %v353
          %v397 = vmul.f32 %v393, %v354
          %402 = vrot.lane.b32.xlu0 %v394, 126
          %v403 = vpop.permute.xlu0 %402
          %404 = vrot.lane.b32.xlu0 %v395, 126
          %v405 = vpop.permute.xlu0 %404
          %406 = vrot.lane.b32.xlu0 %v396, 126
          %v407 = vpop.permute.xlu0 %406
          %408 = vrot.lane.b32.xlu0 %v397, 126
          %v409 = vpop.permute.xlu0 %408
          %v414 = vadd.f32 %v387, %v403
          %v415 = vadd.f32 %v388, %v405
          %v416 = vadd.f32 %v389, %v407
          %v417 = vadd.f32 %v390, %v409
          %s418 = sadd.s32 %s349, 3
          %s419 = sld [smem:[#allocation3 + %s418]]
          %v420 = vld [vmem:[%s271 + $0x1] sm:$0xff]
          %v421 = vld [vmem:[%s271 + $0x9] sm:$0xff]
          %v422 = vld [vmem:[%s271 + $0x11] sm:$0xff]
          %v423 = vld [vmem:[%s271 + $0x19] sm:$0xf]
          %v424 = vstv %s419
          %v425 = vmul.f32 %v424, %v420
          %v426 = vmul.f32 %v424, %v421
          %v427 = vmul.f32 %v424, %v422
          %v428 = vmul.f32 %v424, %v423
          %v429 = vadd.f32 %v414, %v425
          %v430 = vadd.f32 %v415, %v426
          %v431 = vadd.f32 %v416, %v427
          %v432 = vadd.f32 %v417, %v428
          %s433 = sadd.s32 %s349, 4
          %s434 = sld [smem:[#allocation3 + %s433]]
          %v435 = vstv %s434
          %v436 = vmul.f32 %v435, %v420
          %v437 = vmul.f32 %v435, %v421
          %v438 = vmul.f32 %v435, %v422
          %v439 = vmul.f32 %v435, %v423
          %444 = vrot.lane.b32.xlu0 %v436, 127
          %v445 = vpop.permute.xlu0 %444
          %446 = vrot.lane.b32.xlu0 %v437, 127
          %v447 = vpop.permute.xlu0 %446
          %448 = vrot.lane.b32.xlu0 %v438, 127
          %v449 = vpop.permute.xlu0 %448
          %450 = vrot.lane.b32.xlu0 %v439, 127
          %v451 = vpop.permute.xlu0 %450
          %v456 = vadd.f32 %v429, %v445
          %v457 = vadd.f32 %v430, %v447
          %v458 = vadd.f32 %v431, %v449
          %v459 = vadd.f32 %v432, %v451
          %s460 = sadd.s32 %s349, 5
          %s461 = sld [smem:[#allocation3 + %s460]]
          %v462 = vstv %s461
          %v463 = vmul.f32 %v462, %v420
          %v464 = vmul.f32 %v462, %v421
          %v465 = vmul.f32 %v462, %v422
          %v466 = vmul.f32 %v462, %v423
          %471 = vrot.lane.b32.xlu0 %v463, 126
          %v472 = vpop.permute.xlu0 %471
          %473 = vrot.lane.b32.xlu0 %v464, 126
          %v474 = vpop.permute.xlu0 %473
          %475 = vrot.lane.b32.xlu0 %v465, 126
          %v476 = vpop.permute.xlu0 %475
          %477 = vrot.lane.b32.xlu0 %v466, 126
          %v478 = vpop.permute.xlu0 %477
          %v483 = vadd.f32 %v456, %v472
          %v484 = vadd.f32 %v457, %v474
          %v485 = vadd.f32 %v458, %v476
          %v486 = vadd.f32 %v459, %v478
          %s487 = sadd.s32 %s349, 6
          %s488 = sld [smem:[#allocation3 + %s487]]
          %v489 = vld [vmem:[%s271 + $0x2] sm:$0xff]
          %v490 = vld [vmem:[%s271 + $0xa] sm:$0xff]
          %v491 = vld [vmem:[%s271 + $0x12] sm:$0xff]
          %v492 = vld [vmem:[%s271 + $0x1a] sm:$0xf]
          %v493 = vstv %s488
          %v494 = vmul.f32 %v493, %v489
          %v495 = vmul.f32 %v493, %v490
          %v496 = vmul.f32 %v493, %v491
          %v497 = vmul.f32 %v493, %v492
          %v498 = vadd.f32 %v483, %v494
          %v499 = vadd.f32 %v484, %v495
          %v500 = vadd.f32 %v485, %v496
          %v501 = vadd.f32 %v486, %v497
          %s502 = sadd.s32 %s349, 7
          %s503 = sld [smem:[#allocation3 + %s502]]
          %v504 = vstv %s503
          %v505 = vmul.f32 %v504, %v489
          %v506 = vmul.f32 %v504, %v490
          %v507 = vmul.f32 %v504, %v491
          %v508 = vmul.f32 %v504, %v492
          %513 = vrot.lane.b32.xlu0 %v505, 127
          %v514 = vpop.permute.xlu0 %513
          %515 = vrot.lane.b32.xlu0 %v506, 127
          %v516 = vpop.permute.xlu0 %515
          %517 = vrot.lane.b32.xlu0 %v507, 127
          %v518 = vpop.permute.xlu0 %517
          %519 = vrot.lane.b32.xlu0 %v508, 127
          %v520 = vpop.permute.xlu0 %519
          %v525 = vadd.f32 %v498, %v514
          %v526 = vadd.f32 %v499, %v516
          %v527 = vadd.f32 %v500, %v518
          %v528 = vadd.f32 %v501, %v520
          %s529 = sadd.s32 %s349, 8
          %s530 = sld [smem:[#allocation3 + %s529]]
          %v531 = vstv %s530
          %v532 = vmul.f32 %v531, %v489
          %v533 = vmul.f32 %v531, %v490
          %v534 = vmul.f32 %v531, %v491
          %v535 = vmul.f32 %v531, %v492
          %540 = vrot.lane.b32.xlu0 %v532, 126
          %v541 = vpop.permute.xlu0 %540
          %542 = vrot.lane.b32.xlu0 %v533, 126
          %v543 = vpop.permute.xlu0 %542
          %544 = vrot.lane.b32.xlu0 %v534, 126
          %v545 = vpop.permute.xlu0 %544
          %546 = vrot.lane.b32.xlu0 %v535, 126
          %v547 = vpop.permute.xlu0 %546
          %v552 = vadd.f32 %v525, %v541
          %v553 = vadd.f32 %v526, %v543
          %v554 = vadd.f32 %v527, %v545
          %v555 = vadd.f32 %v528, %v547
          %s556 = sadd.s32 %s349, 9
          %s557 = sld [smem:[#allocation3 + %s556]]
          %s558 = scalar_lea.vmem %s271, 32
          %v559 = vld [vmem:[%s558] sm:$0xff]
          %v560 = vld [vmem:[%s558 + $0x8] sm:$0xff]
          %v561 = vld [vmem:[%s558 + $0x10] sm:$0xff]
          %v562 = vld [vmem:[%s558 + $0x18] sm:$0xf]
          %v563 = vstv %s557
          %v564 = vmul.f32 %v563, %v559
          %v565 = vmul.f32 %v563, %v560
          %v566 = vmul.f32 %v563, %v561
          %v567 = vmul.f32 %v563, %v562
          %v568 = vadd.f32 %v552, %v564
          %v569 = vadd.f32 %v553, %v565
          %v570 = vadd.f32 %v554, %v566
          %v571 = vadd.f32 %v555, %v567
          %s572 = sadd.s32 %s349, 10
          %s573 = sld [smem:[#allocation3 + %s572]]
          %v574 = vstv %s573
          %v575 = vmul.f32 %v574, %v559
          %v576 = vmul.f32 %v574, %v560
          %v577 = vmul.f32 %v574, %v561
          %v578 = vmul.f32 %v574, %v562
          %583 = vrot.lane.b32.xlu0 %v575, 127
          %v584 = vpop.permute.xlu0 %583
          %585 = vrot.lane.b32.xlu0 %v576, 127
          %v586 = vpop.permute.xlu0 %585
          %587 = vrot.lane.b32.xlu0 %v577, 127
          %v588 = vpop.permute.xlu0 %587
          %589 = vrot.lane.b32.xlu0 %v578, 127
          %v590 = vpop.permute.xlu0 %589
          %v595 = vadd.f32 %v568, %v584
          %v596 = vadd.f32 %v569, %v586
          %v597 = vadd.f32 %v570, %v588
          %v598 = vadd.f32 %v571, %v590
          %s599 = sadd.s32 %s349, 11
          %s600 = sld [smem:[#allocation3 + %s599]]
          %v601 = vstv %s600
          %v602 = vmul.f32 %v601, %v559
          %v603 = vmul.f32 %v601, %v560
          %v604 = vmul.f32 %v601, %v561
          %v605 = vmul.f32 %v601, %v562
          %610 = vrot.lane.b32.xlu0 %v602, 126
          %v611 = vpop.permute.xlu0 %610
          %612 = vrot.lane.b32.xlu0 %v603, 126
          %v613 = vpop.permute.xlu0 %612
          %614 = vrot.lane.b32.xlu0 %v604, 126
          %v615 = vpop.permute.xlu0 %614
          %616 = vrot.lane.b32.xlu0 %v605, 126
          %v617 = vpop.permute.xlu0 %616
          %v622 = vadd.f32 %v595, %v611
          %v623 = vadd.f32 %v596, %v613
          %v624 = vadd.f32 %v597, %v615
          %v625 = vadd.f32 %v598, %v617
          %s626 = sadd.s32 %s349, 12
          %s627 = sld [smem:[#allocation3 + %s626]]
          %v628 = vld [vmem:[%s558 + $0x1] sm:$0xff]
          %v629 = vld [vmem:[%s558 + $0x9] sm:$0xff]
          %v630 = vld [vmem:[%s558 + $0x11] sm:$0xff]
          %v631 = vld [vmem:[%s558 + $0x19] sm:$0xf]
          %v632 = vstv %s627
          %v633 = vmul.f32 %v632, %v628
          %v634 = vmul.f32 %v632, %v629
          %v635 = vmul.f32 %v632, %v630
          %v636 = vmul.f32 %v632, %v631
          %v637 = vadd.f32 %v622, %v633
          %v638 = vadd.f32 %v623, %v634
          %v639 = vadd.f32 %v624, %v635
          %v640 = vadd.f32 %v625, %v636
          %s641 = sadd.s32 %s349, 13
          %s642 = sld [smem:[#allocation3 + %s641]]
          %v643 = vstv %s642
          %v644 = vmul.f32 %v643, %v628
          %v645 = vmul.f32 %v643, %v629
          %v646 = vmul.f32 %v643, %v630
          %v647 = vmul.f32 %v643, %v631
          %652 = vrot.lane.b32.xlu0 %v644, 127
          %v653 = vpop.permute.xlu0 %652
          %654 = vrot.lane.b32.xlu0 %v645, 127
          %v655 = vpop.permute.xlu0 %654
          %656 = vrot.lane.b32.xlu0 %v646, 127
          %v657 = vpop.permute.xlu0 %656
          %658 = vrot.lane.b32.xlu0 %v647, 127
          %v659 = vpop.permute.xlu0 %658
          %v664 = vadd.f32 %v637, %v653
          %v665 = vadd.f32 %v638, %v655
          %v666 = vadd.f32 %v639, %v657
          %v667 = vadd.f32 %v640, %v659
          %s668 = sadd.s32 %s349, 14
          %s669 = sld [smem:[#allocation3 + %s668]]
          %v670 = vstv %s669
          %v671 = vmul.f32 %v670, %v628
          %v672 = vmul.f32 %v670, %v629
          %v673 = vmul.f32 %v670, %v630
          %v674 = vmul.f32 %v670, %v631
          %679 = vrot.lane.b32.xlu0 %v671, 126
          %v680 = vpop.permute.xlu0 %679
          %681 = vrot.lane.b32.xlu0 %v672, 126
          %v682 = vpop.permute.xlu0 %681
          %683 = vrot.lane.b32.xlu0 %v673, 126
          %v684 = vpop.permute.xlu0 %683
          %685 = vrot.lane.b32.xlu0 %v674, 126
          %v686 = vpop.permute.xlu0 %685
          %v691 = vadd.f32 %v664, %v680
          %v692 = vadd.f32 %v665, %v682
          %v693 = vadd.f32 %v666, %v684
          %v694 = vadd.f32 %v667, %v686
          %s695 = sadd.s32 %s349, 15
          %s696 = sld [smem:[#allocation3 + %s695]]
          %v697 = vld [vmem:[%s558 + $0x2] sm:$0xff]
          %v698 = vld [vmem:[%s558 + $0xa] sm:$0xff]
          %v699 = vld [vmem:[%s558 + $0x12] sm:$0xff]
          %v700 = vld [vmem:[%s558 + $0x1a] sm:$0xf]
          %v701 = vstv %s696
          %v702 = vmul.f32 %v701, %v697
          %v703 = vmul.f32 %v701, %v698
          %v704 = vmul.f32 %v701, %v699
          %v705 = vmul.f32 %v701, %v700
          %v706 = vadd.f32 %v691, %v702
          %v707 = vadd.f32 %v692, %v703
          %v708 = vadd.f32 %v693, %v704
          %v709 = vadd.f32 %v694, %v705
          %s710 = sadd.s32 %s349, 16
          %s711 = sld [smem:[#allocation3 + %s710]]
          %v712 = vstv %s711
          %v713 = vmul.f32 %v712, %v697
          %v714 = vmul.f32 %v712, %v698
          %v715 = vmul.f32 %v712, %v699
          %v716 = vmul.f32 %v712, %v700
          %721 = vrot.lane.b32.xlu0 %v713, 127
          %v722 = vpop.permute.xlu0 %721
          %723 = vrot.lane.b32.xlu0 %v714, 127
          %v724 = vpop.permute.xlu0 %723
          %725 = vrot.lane.b32.xlu0 %v715, 127
          %v726 = vpop.permute.xlu0 %725
          %727 = vrot.lane.b32.xlu0 %v716, 127
          %v728 = vpop.permute.xlu0 %727
          %v733 = vadd.f32 %v706, %v722
          %v734 = vadd.f32 %v707, %v724
          %v735 = vadd.f32 %v708, %v726
          %v736 = vadd.f32 %v709, %v728
          %s737 = sadd.s32 %s349, 17
          %s738 = sld [smem:[#allocation3 + %s737]]
          %v739 = vstv %s738
          %v740 = vmul.f32 %v739, %v697
          %v741 = vmul.f32 %v739, %v698
          %v742 = vmul.f32 %v739, %v699
          %v743 = vmul.f32 %v739, %v700
          %748 = vrot.lane.b32.xlu0 %v740, 126
          %v749 = vpop.permute.xlu0 %748
          %750 = vrot.lane.b32.xlu0 %v741, 126
          %v751 = vpop.permute.xlu0 %750
          %752 = vrot.lane.b32.xlu0 %v742, 126
          %v753 = vpop.permute.xlu0 %752
          %754 = vrot.lane.b32.xlu0 %v743, 126
          %v755 = vpop.permute.xlu0 %754
          %v760 = vadd.f32 %v733, %v749
          %v761 = vadd.f32 %v734, %v751
          %v762 = vadd.f32 %v735, %v753
          %v763 = vadd.f32 %v736, %v755
          %s764 = sadd.s32 %s349, 18
          %s765 = sld [smem:[#allocation3 + %s764]]
          %s766 = scalar_lea.vmem %s271, 64
          %v767 = vld [vmem:[%s766] sm:$0xff]
          %v768 = vld [vmem:[%s766 + $0x8] sm:$0xff]
          %v769 = vld [vmem:[%s766 + $0x10] sm:$0xff]
          %v770 = vld [vmem:[%s766 + $0x18] sm:$0xf]
          %v771 = vstv %s765
          %v772 = vmul.f32 %v771, %v767
          %v773 = vmul.f32 %v771, %v768
          %v774 = vmul.f32 %v771, %v769
          %v775 = vmul.f32 %v771, %v770
          %v776 = vadd.f32 %v760, %v772
          %v777 = vadd.f32 %v761, %v773
          %v778 = vadd.f32 %v762, %v774
          %v779 = vadd.f32 %v763, %v775
          %s780 = sadd.s32 %s349, 19
          %s781 = sld [smem:[#allocation3 + %s780]]
          %v782 = vstv %s781
          %v783 = vmul.f32 %v782, %v767
          %v784 = vmul.f32 %v782, %v768
          %v785 = vmul.f32 %v782, %v769
          %v786 = vmul.f32 %v782, %v770
          %791 = vrot.lane.b32.xlu0 %v783, 127
          %v792 = vpop.permute.xlu0 %791
          %793 = vrot.lane.b32.xlu0 %v784, 127
          %v794 = vpop.permute.xlu0 %793
          %795 = vrot.lane.b32.xlu0 %v785, 127
          %v796 = vpop.permute.xlu0 %795
          %797 = vrot.lane.b32.xlu0 %v786, 127
          %v798 = vpop.permute.xlu0 %797
          %v803 = vadd.f32 %v776, %v792
          %v804 = vadd.f32 %v777, %v794
          %v805 = vadd.f32 %v778, %v796
          %v806 = vadd.f32 %v779, %v798
          %s807 = sadd.s32 %s349, 20
          %s808 = sld [smem:[#allocation3 + %s807]]
          %v809 = vstv %s808
          %v810 = vmul.f32 %v809, %v767
          %v811 = vmul.f32 %v809, %v768
          %v812 = vmul.f32 %v809, %v769
          %v813 = vmul.f32 %v809, %v770
          %818 = vrot.lane.b32.xlu0 %v810, 126
          %v819 = vpop.permute.xlu0 %818
          %820 = vrot.lane.b32.xlu0 %v811, 126
          %v821 = vpop.permute.xlu0 %820
          %822 = vrot.lane.b32.xlu0 %v812, 126
          %v823 = vpop.permute.xlu0 %822
          %824 = vrot.lane.b32.xlu0 %v813, 126
          %v825 = vpop.permute.xlu0 %824
          %v830 = vadd.f32 %v803, %v819
          %v831 = vadd.f32 %v804, %v821
          %v832 = vadd.f32 %v805, %v823
          %v833 = vadd.f32 %v806, %v825
          %s834 = sadd.s32 %s349, 21
          %s835 = sld [smem:[#allocation3 + %s834]]
          %v836 = vld [vmem:[%s766 + $0x1] sm:$0xff]
          %v837 = vld [vmem:[%s766 + $0x9] sm:$0xff]
          %v838 = vld [vmem:[%s766 + $0x11] sm:$0xff]
          %v839 = vld [vmem:[%s766 + $0x19] sm:$0xf]
          %v840 = vstv %s835
          %v841 = vmul.f32 %v840, %v836
          %v842 = vmul.f32 %v840, %v837
          %v843 = vmul.f32 %v840, %v838
          %v844 = vmul.f32 %v840, %v839
          %v845 = vadd.f32 %v830, %v841
          %v846 = vadd.f32 %v831, %v842
          %v847 = vadd.f32 %v832, %v843
          %v848 = vadd.f32 %v833, %v844
          %s849 = sadd.s32 %s349, 22
          %s850 = sld [smem:[#allocation3 + %s849]]
          %v851 = vstv %s850
          %v852 = vmul.f32 %v851, %v836
          %v853 = vmul.f32 %v851, %v837
          %v854 = vmul.f32 %v851, %v838
          %v855 = vmul.f32 %v851, %v839
          %860 = vrot.lane.b32.xlu0 %v852, 127
          %v861 = vpop.permute.xlu0 %860
          %862 = vrot.lane.b32.xlu0 %v853, 127
          %v863 = vpop.permute.xlu0 %862
          %864 = vrot.lane.b32.xlu0 %v854, 127
          %v865 = vpop.permute.xlu0 %864
          %866 = vrot.lane.b32.xlu0 %v855, 127
          %v867 = vpop.permute.xlu0 %866
          %v872 = vadd.f32 %v845, %v861
          %v873 = vadd.f32 %v846, %v863
          %v874 = vadd.f32 %v847, %v865
          %v875 = vadd.f32 %v848, %v867
          %s876 = sadd.s32 %s349, 23
          %s877 = sld [smem:[#allocation3 + %s876]]
          %v878 = vstv %s877
          %v879 = vmul.f32 %v878, %v836
          %v880 = vmul.f32 %v878, %v837
          %v881 = vmul.f32 %v878, %v838
          %v882 = vmul.f32 %v878, %v839
          %887 = vrot.lane.b32.xlu0 %v879, 126
          %v888 = vpop.permute.xlu0 %887
          %889 = vrot.lane.b32.xlu0 %v880, 126
          %v890 = vpop.permute.xlu0 %889
          %891 = vrot.lane.b32.xlu0 %v881, 126
          %v892 = vpop.permute.xlu0 %891
          %893 = vrot.lane.b32.xlu0 %v882, 126
          %v894 = vpop.permute.xlu0 %893
          %v899 = vadd.f32 %v872, %v888
          %v900 = vadd.f32 %v873, %v890
          %v901 = vadd.f32 %v874, %v892
          %v902 = vadd.f32 %v875, %v894
          %s903 = sadd.s32 %s349, 24
          %s904 = sld [smem:[#allocation3 + %s903]]
          %v905 = vld [vmem:[%s766 + $0x2] sm:$0xff]
          %v906 = vld [vmem:[%s766 + $0xa] sm:$0xff]
          %v907 = vld [vmem:[%s766 + $0x12] sm:$0xff]
          %v908 = vld [vmem:[%s766 + $0x1a] sm:$0xf]
          %v909 = vstv %s904
          %v910 = vmul.f32 %v909, %v905
          %v911 = vmul.f32 %v909, %v906
          %v912 = vmul.f32 %v909, %v907
          %v913 = vmul.f32 %v909, %v908
          %v914 = vadd.f32 %v899, %v910
          %v915 = vadd.f32 %v900, %v911
          %v916 = vadd.f32 %v901, %v912
          %v917 = vadd.f32 %v902, %v913
          %s918 = sadd.s32 %s349, 25
          %s919 = sld [smem:[#allocation3 + %s918]]
          %v920 = vstv %s919
          %v921 = vmul.f32 %v920, %v905
          %v922 = vmul.f32 %v920, %v906
          %v923 = vmul.f32 %v920, %v907
          %v924 = vmul.f32 %v920, %v908
          %929 = vrot.lane.b32.xlu0 %v921, 127
          %v930 = vpop.permute.xlu0 %929
          %931 = vrot.lane.b32.xlu0 %v922, 127
          %v932 = vpop.permute.xlu0 %931
          %933 = vrot.lane.b32.xlu0 %v923, 127
          %v934 = vpop.permute.xlu0 %933
          %935 = vrot.lane.b32.xlu0 %v924, 127
          %v936 = vpop.permute.xlu0 %935
          %v941 = vadd.f32 %v914, %v930
          %v942 = vadd.f32 %v915, %v932
          %v943 = vadd.f32 %v916, %v934
          %v944 = vadd.f32 %v917, %v936
          %s945 = sadd.s32 %s349, 26
          %s946 = sld [smem:[#allocation3 + %s945]]
          %v947 = vstv %s946
          %v948 = vmul.f32 %v947, %v905
          %v949 = vmul.f32 %v947, %v906
          %v950 = vmul.f32 %v947, %v907
          %v951 = vmul.f32 %v947, %v908
          %956 = vrot.lane.b32.xlu0 %v948, 126
          %v957 = vpop.permute.xlu0 %956
          %958 = vrot.lane.b32.xlu0 %v949, 126
          %v959 = vpop.permute.xlu0 %958
          %960 = vrot.lane.b32.xlu0 %v950, 126
          %v961 = vpop.permute.xlu0 %960
          %962 = vrot.lane.b32.xlu0 %v951, 126
          %v963 = vpop.permute.xlu0 %962
          %v968 = vadd.f32 %v941, %v957
          %v969 = vadd.f32 %v942, %v959
          %v970 = vadd.f32 %v943, %v961
          %v971 = vadd.f32 %v944, %v963
          %vm972 = vcmask 228352
          %v974 = vsel %vm972, %v316, 0
          %v977 = vsel %vm972, %v317, 0
          %vm979 = vcmask 1043456
          %v981 = vsel %vm979, %v971, 0
          %983 = vmatprep.subr.mxu0 0.0
          %984 = vmatpush1.msra.mxu0 %v968
          %985 = vmatprep.subr.mxu0 0.0
          %986 = vmatpush1.msra.mxu0 %v969
          %987 = vmatprep.subr.mxu0 0.0
          %988 = vmatpush1.msra.mxu0 %v970
          %989 = vmatprep.subr.mxu0 0.0
          %990 = vmatpush1.msra.mxu0 %v981
          %991 = vmatprep.subr.mxu0 0.0
          %992 = vmatpush1.msra.mxu0 0.0
          %993 = vmatprep.subr.mxu0 0.0
          %994 = vmatpush1.msra.mxu0 0.0
          %995 = vmatprep.subr.mxu0 0.0
          %996 = vmatpush1.msra.mxu0 0.0
          %997 = vmatprep.subr.mxu0 0.0
          %998 = vmatpush1.msra.mxu0 0.0
          %999 = vmatprep.subr.mxu0 0.0
          %1000 = vmatpush1.msra.mxu0 0.0
          %1001 = vmatprep.subr.mxu0 0.0
          %1002 = vmatpush1.msra.mxu0 0.0
          %1003 = vmatprep.subr.mxu0 0.0
          %1004 = vmatpush1.msra.mxu0 0.0
          %1005 = vmatprep.subr.mxu0 0.0
          %1006 = vmatpush1.msra.mxu0 0.0
          %1007 = vmatprep.subr.mxu0 0.0
          %1008 = vmatpush1.msra.mxu0 0.0
          %1009 = vmatprep.subr.mxu0 0.0
          %1010 = vmatpush1.msra.mxu0 0.0
          %1011 = vmatprep.subr.mxu0 0.0
          %1012 = vmatpush1.msra.mxu0 0.0
          %1013 = vmatprep.subr.mxu0 0.0
          %1014 = vmatpush1.msra.mxu0 0.0
          %1015 = vmatprep.subr.mxu0 0.0
          %1016 = vmatpush1.msra.mxu0 0.0
          %1017 = vmatprep.subr.mxu0 0.0
          %1018 = vmatpush1.msra.mxu0 0.0
          %1019 = vmatprep.subr.mxu0 0.0
          %1020 = vmatpush1.msra.mxu0 0.0
          %1021 = vmatprep.subr.mxu0 0.0
          %1022 = vmatpush1.msra.mxu0 0.0
          %1023 = vmatprep.subr.mxu0 0.0
          %1024 = vmatpush1.msra.mxu0 0.0
          %1025 = vmatprep.subr.mxu0 0.0
          %1026 = vmatpush1.msra.mxu0 0.0
          %1027 = vmatprep.subr.mxu0 0.0
          %1028 = vmatpush1.msra.mxu0 0.0
          %1029 = vmatprep.subr.mxu0 0.0
          %1030 = vmatpush1.msra.mxu0 0.0
          %1031 = vmatprep.subr.mxu0 0.0
          %1032 = vmatpush1.msra.mxu0 0.0
          %1033 = vmatprep.subr.mxu0 0.0
          %1034 = vmatpush1.msra.mxu0 0.0
          %1035 = vmatprep.subr.mxu0 0.0
          %1036 = vmatpush1.msra.mxu0 0.0
          %1037 = vmatprep.subr.mxu0 0.0
          %1038 = vmatpush1.msra.mxu0 0.0
          %1039 = vmatprep.subr.mxu0 0.0
          %1040 = vmatpush1.msra.mxu0 0.0
          %1041 = vmatprep.subr.mxu0 0.0
          %1042 = vmatpush1.msra.mxu0 0.0
          %1043 = vmatprep.subr.mxu0 0.0
          %1044 = vmatpush1.msra.mxu0 0.0
          %1045 = vmatprep.subr.mxu0 0.0
          %1046 = vmatpush1.msra.mxu0 0.0
          %1047 = vmatprep.mubr.f32.mxu0 0.0
          %1048 = vmatmul.mubr.f32.gmra.mrb[0].mxu0 %v974
          %v1049 = vpop.f32.mrb[0].mxu0
          %v1050 = vadd.f32 0.0, %v1049
          %v1051 = vpop.f32.mrb[0].mxu0
          %1052 = vmatprep.mubr.f32.mxu0 0.0
          %1053 = vmatmul.mubr.f32.gmra.mrb[0].mxu0 %v977
          %v1054 = vpop.f32.mrb[0].mxu0
          %v1055 = vadd.f32 0.0, %v1054
          %v1056 = vpop.f32.mrb[0].mxu0
          %1057 = vdwg.mxu0
          %v1059 = vsel %vm972, %v324, 0
          %v1062 = vsel %vm972, %v325, 0
          %1064 = vmatprep.subr.mxu0 0.0
          %1065 = vmatpush1.msra.mxu0 %v968
          %1066 = vmatprep.subr.mxu0 0.0
          %1067 = vmatpush1.msra.mxu0 %v969
          %1068 = vmatprep.subr.mxu0 0.0
          %1069 = vmatpush1.msra.mxu0 %v970
          %1070 = vmatprep.subr.mxu0 0.0
          %1071 = vmatpush1.msra.mxu0 %v981
          %1072 = vmatprep.subr.mxu0 0.0
          %1073 = vmatpush1.msra.mxu0 0.0
          %1074 = vmatprep.subr.mxu0 0.0
          %1075 = vmatpush1.msra.mxu0 0.0
          %1076 = vmatprep.subr.mxu0 0.0
          %1077 = vmatpush1.msra.mxu0 0.0
          %1078 = vmatprep.subr.mxu0 0.0
          %1079 = vmatpush1.msra.mxu0 0.0
          %1080 = vmatprep.subr.mxu0 0.0
          %1081 = vmatpush1.msra.mxu0 0.0
          %1082 = vmatprep.subr.mxu0 0.0
          %1083 = vmatpush1.msra.mxu0 0.0
          %1084 = vmatprep.subr.mxu0 0.0
          %1085 = vmatpush1.msra.mxu0 0.0
          %1086 = vmatprep.subr.mxu0 0.0
          %1087 = vmatpush1.msra.mxu0 0.0
          %1088 = vmatprep.subr.mxu0 0.0
          %1089 = vmatpush1.msra.mxu0 0.0
          %1090 = vmatprep.subr.mxu0 0.0
          %1091 = vmatpush1.msra.mxu0 0.0
          %1092 = vmatprep.subr.mxu0 0.0
          %1093 = vmatpush1.msra.mxu0 0.0
          %1094 = vmatprep.subr.mxu0 0.0
          %1095 = vmatpush1.msra.mxu0 0.0
          %1096 = vmatprep.subr.mxu0 0.0
          %1097 = vmatpush1.msra.mxu0 0.0
          %1098 = vmatprep.subr.mxu0 0.0
          %1099 = vmatpush1.msra.mxu0 0.0
          %1100 = vmatprep.subr.mxu0 0.0
          %1101 = vmatpush1.msra.mxu0 0.0
          %1102 = vmatprep.subr.mxu0 0.0
          %1103 = vmatpush1.msra.mxu0 0.0
          %1104 = vmatprep.subr.mxu0 0.0
          %1105 = vmatpush1.msra.mxu0 0.0
          %1106 = vmatprep.subr.mxu0 0.0
          %1107 = vmatpush1.msra.mxu0 0.0
          %1108 = vmatprep.subr.mxu0 0.0
          %1109 = vmatpush1.msra.mxu0 0.0
          %1110 = vmatprep.subr.mxu0 0.0
          %1111 = vmatpush1.msra.mxu0 0.0
          %1112 = vmatprep.subr.mxu0 0.0
          %1113 = vmatpush1.msra.mxu0 0.0
          %1114 = vmatprep.subr.mxu0 0.0
          %1115 = vmatpush1.msra.mxu0 0.0
          %1116 = vmatprep.subr.mxu0 0.0
          %1117 = vmatpush1.msra.mxu0 0.0
          %1118 = vmatprep.subr.mxu0 0.0
          %1119 = vmatpush1.msra.mxu0 0.0
          %1120 = vmatprep.subr.mxu0 0.0
          %1121 = vmatpush1.msra.mxu0 0.0
          %1122 = vmatprep.subr.mxu0 0.0
          %1123 = vmatpush1.msra.mxu0 0.0
          %1124 = vmatprep.subr.mxu0 0.0
          %1125 = vmatpush1.msra.mxu0 0.0
          %1126 = vmatprep.subr.mxu0 0.0
          %1127 = vmatpush1.msra.mxu0 0.0
          %1128 = vmatprep.mubr.f32.mxu0 0.0
          %1129 = vmatmul.mubr.f32.gmra.mrb[0].mxu0 %v1059
          %v1130 = vpop.f32.mrb[0].mxu0
          %v1131 = vadd.f32 0.0, %v1130
          %v1132 = vpop.f32.mrb[0].mxu0
          %1133 = vmatprep.mubr.f32.mxu0 0.0
          %1134 = vmatmul.mubr.f32.gmra.mrb[0].mxu0 %v1062
          %v1135 = vpop.f32.mrb[0].mxu0
          %v1136 = vadd.f32 0.0, %v1135
          %v1137 = vpop.f32.mrb[0].mxu0
          %1138 = vdwg.mxu0
          %v1139 = vmax.f32 %v1050, %v1131
          %v1140 = vmax.f32 %v1055, %v1136
          %v1142 = vsel %vm972, %v1139, 0
          %v1145 = vsel %vm972, %v1140, 0
          %v1148 = vsel %vm979, %v296, 0
          %1150 = vmatprep.subr.mxu0 0.0
          %1151 = vmatpush1.msra.mxu0 %v293
          %1152 = vmatprep.subr.mxu0 0.0
          %1153 = vmatpush1.msra.mxu0 %v294
          %1154 = vmatprep.subr.mxu0 0.0
          %1155 = vmatpush1.msra.mxu0 %v295
          %1156 = vmatprep.subr.mxu0 0.0
          %1157 = vmatpush1.msra.mxu0 %v1148
          %1158 = vmatprep.subr.mxu0 0.0
          %1159 = vmatpush1.msra.mxu0 0.0
          %1160 = vmatprep.subr.mxu0 0.0
          %1161 = vmatpush1.msra.mxu0 0.0
          %1162 = vmatprep.subr.mxu0 0.0
          %1163 = vmatpush1.msra.mxu0 0.0
          %1164 = vmatprep.subr.mxu0 0.0
          %1165 = vmatpush1.msra.mxu0 0.0
          %1166 = vmatprep.subr.mxu0 0.0
          %1167 = vmatpush1.msra.mxu0 0.0
          %1168 = vmatprep.subr.mxu0 0.0
          %1169 = vmatpush1.msra.mxu0 0.0
          %1170 = vmatprep.subr.mxu0 0.0
          %1171 = vmatpush1.msra.mxu0 0.0
          %1172 = vmatprep.subr.mxu0 0.0
          %1173 = vmatpush1.msra.mxu0 0.0
          %1174 = vmatprep.subr.mxu0 0.0
          %1175 = vmatpush1.msra.mxu0 0.0
          %1176 = vmatprep.subr.mxu0 0.0
          %1177 = vmatpush1.msra.mxu0 0.0
          %1178 = vmatprep.subr.mxu0 0.0
          %1179 = vmatpush1.msra.mxu0 0.0
          %1180 = vmatprep.subr.mxu0 0.0
          %1181 = vmatpush1.msra.mxu0 0.0
          %1182 = vmatprep.subr.mxu0 0.0
          %1183 = vmatpush1.msra.mxu0 0.0
          %1184 = vmatprep.subr.mxu0 0.0
          %1185 = vmatpush1.msra.mxu0 0.0
          %1186 = vmatprep.subr.mxu0 0.0
          %1187 = vmatpush1.msra.mxu0 0.0
          %1188 = vmatprep.subr.mxu0 0.0
          %1189 = vmatpush1.msra.mxu0 0.0
          %1190 = vmatprep.subr.mxu0 0.0
          %1191 = vmatpush1.msra.mxu0 0.0
          %1192 = vmatprep.subr.mxu0 0.0
          %1193 = vmatpush1.msra.mxu0 0.0
          %1194 = vmatprep.subr.mxu0 0.0
          %1195 = vmatpush1.msra.mxu0 0.0
          %1196 = vmatprep.subr.mxu0 0.0
          %1197 = vmatpush1.msra.mxu0 0.0
          %1198 = vmatprep.subr.mxu0 0.0
          %1199 = vmatpush1.msra.mxu0 0.0
          %1200 = vmatprep.subr.mxu0 0.0
          %1201 = vmatpush1.msra.mxu0 0.0
          %1202 = vmatprep.subr.mxu0 0.0
          %1203 = vmatpush1.msra.mxu0 0.0
          %1204 = vmatprep.subr.mxu0 0.0
          %1205 = vmatpush1.msra.mxu0 0.0
          %1206 = vmatprep.subr.mxu0 0.0
          %1207 = vmatpush1.msra.mxu0 0.0
          %1208 = vmatprep.subr.mxu0 0.0
          %1209 = vmatpush1.msra.mxu0 0.0
          %1210 = vmatprep.subr.mxu0 0.0
          %1211 = vmatpush1.msra.mxu0 0.0
          %1212 = vmatprep.subr.mxu0 0.0
          %1213 = vmatpush1.msra.mxu0 0.0
          %1214 = vmatprep.mubr.f32.mxu0 0.0
          %1215 = vmatmul.mubr.f32.gmra.mrb[0].mxu0 %v1142
          %v1216 = vpop.f32.mrb[0].mxu0
          %v1217 = vadd.f32 0.0, %v1216
          %v1218 = vpop.f32.mrb[0].mxu0
          %1219 = vmatprep.mubr.f32.mxu0 0.0
          %1220 = vmatmul.mubr.f32.gmra.mrb[0].mxu0 %v1145
          %v1221 = vpop.f32.mrb[0].mxu0
          %v1222 = vadd.f32 0.0, %v1221
          %v1223 = vpop.f32.mrb[0].mxu0
          %1224 = vdwg.mxu0
          %v1226 = vsel %vm979, %v309, 0
          %1228 = vmatprep.subr.mxu0 0.0
          %1229 = vmatpush1.msra.mxu0 %v306
          %1230 = vmatprep.subr.mxu0 0.0
          %1231 = vmatpush1.msra.mxu0 %v307
          %1232 = vmatprep.subr.mxu0 0.0
          %1233 = vmatpush1.msra.mxu0 %v308
          %1234 = vmatprep.subr.mxu0 0.0
          %1235 = vmatpush1.msra.mxu0 %v1226
          %1236 = vmatprep.subr.mxu0 0.0
          %1237 = vmatpush1.msra.mxu0 0.0
          %1238 = vmatprep.subr.mxu0 0.0
          %1239 = vmatpush1.msra.mxu0 0.0
          %1240 = vmatprep.subr.mxu0 0.0
          %1241 = vmatpush1.msra.mxu0 0.0
          %1242 = vmatprep.subr.mxu0 0.0
          %1243 = vmatpush1.msra.mxu0 0.0
          %1244 = vmatprep.subr.mxu0 0.0
          %1245 = vmatpush1.msra.mxu0 0.0
          %1246 = vmatprep.subr.mxu0 0.0
          %1247 = vmatpush1.msra.mxu0 0.0
          %1248 = vmatprep.subr.mxu0 0.0
          %1249 = vmatpush1.msra.mxu0 0.0
          %1250 = vmatprep.subr.mxu0 0.0
          %1251 = vmatpush1.msra.mxu0 0.0
          %1252 = vmatprep.subr.mxu0 0.0
          %1253 = vmatpush1.msra.mxu0 0.0
          %1254 = vmatprep.subr.mxu0 0.0
          %1255 = vmatpush1.msra.mxu0 0.0
          %1256 = vmatprep.subr.mxu0 0.0
          %1257 = vmatpush1.msra.mxu0 0.0
          %1258 = vmatprep.subr.mxu0 0.0
          %1259 = vmatpush1.msra.mxu0 0.0
          %1260 = vmatprep.subr.mxu0 0.0
          %1261 = vmatpush1.msra.mxu0 0.0
          %1262 = vmatprep.subr.mxu0 0.0
          %1263 = vmatpush1.msra.mxu0 0.0
          %1264 = vmatprep.subr.mxu0 0.0
          %1265 = vmatpush1.msra.mxu0 0.0
          %1266 = vmatprep.subr.mxu0 0.0
          %1267 = vmatpush1.msra.mxu0 0.0
          %1268 = vmatprep.subr.mxu0 0.0
          %1269 = vmatpush1.msra.mxu0 0.0
          %1270 = vmatprep.subr.mxu0 0.0
          %1271 = vmatpush1.msra.mxu0 0.0
          %1272 = vmatprep.subr.mxu0 0.0
          %1273 = vmatpush1.msra.mxu0 0.0
          %1274 = vmatprep.subr.mxu0 0.0
          %1275 = vmatpush1.msra.mxu0 0.0
          %1276 = vmatprep.subr.mxu0 0.0
          %1277 = vmatpush1.msra.mxu0 0.0
          %1278 = vmatprep.subr.mxu0 0.0
          %1279 = vmatpush1.msra.mxu0 0.0
          %1280 = vmatprep.subr.mxu0 0.0
          %1281 = vmatpush1.msra.mxu0 0.0
          %1282 = vmatprep.subr.mxu0 0.0
          %1283 = vmatpush1.msra.mxu0 0.0
          %1284 = vmatprep.subr.mxu0 0.0
          %1285 = vmatpush1.msra.mxu0 0.0
          %1286 = vmatprep.subr.mxu0 0.0
          %1287 = vmatpush1.msra.mxu0 0.0
          %1288 = vmatprep.subr.mxu0 0.0
          %1289 = vmatpush1.msra.mxu0 0.0
          %1290 = vmatprep.subr.mxu0 0.0
          %1291 = vmatpush1.msra.mxu0 0.0
          %1292 = vmatprep.mubr.f32.mxu0 0.0
          %1293 = vmatmul.mubr.f32.gmra.mrb[0].mxu0 %v1142
          %v1294 = vpop.f32.mrb[0].mxu0
          %v1295 = vadd.f32 0.0, %v1294
          %v1296 = vpop.f32.mrb[0].mxu0
          %1297 = vmatprep.mubr.f32.mxu0 0.0
          %1298 = vmatmul.mubr.f32.gmra.mrb[0].mxu0 %v1145
          %v1299 = vpop.f32.mrb[0].mxu0
          %v1300 = vadd.f32 0.0, %v1299
          %v1301 = vpop.f32.mrb[0].mxu0
          %1302 = vdwg.mxu0
          %v1303 = vmax.f32 %v1217, %v1295
          %v1304 = vmax.f32 %v1222, %v1300
          %s1305 = sld [smem:[#allocation5 + %s344]]
          %v1306 = vstv %s1305
          %v1307 = vadd.f32 %v1303, %v1306
          %v1308 = vadd.f32 %v1304, %v1306
          %v1309 = vmax.f32 %v1307, 0.0
          %v1310 = vmax.f32 %v1308, 0.0
          %1313 = vrot.lane.b32.xlu0 %v1309, 1
          %v1314 = vpop.permute.xlu0 %1313
          %1315 = vrot.lane.b32.xlu0 %v1310, 1
          %v1316 = vpop.permute.xlu0 %1315
          %s1319 = smul.u32 %s344, 16
          %s1320 = scalar_lea.vmem [#allocation2], %s1319
          %vm1321 = vcmask 121864
          %1322 = vst.msk [vmem:[%s1320 + $0x1] sm:$0xff] %vm1321, %v1314
          %vm1323 = vcmask 119816
          %1324 = vst.msk [vmem:[%s1320 + $0x9] sm:$0x3f] %vm1323, %v1316
        $region61: #{mnist_conv_forward.2} parent=39 // loop_footer
          %s348 = sadd.s32 1, %s344
        $region62: #{mnist_conv_forward.2} parent=39 // loop_footer_branch
          %343 = sbr.rel target = $region58
        $region63: #{mnist_conv_forward.2} parent=39 // loop_exit
          _
        loop: start=0, step=1, limit=8
        $region64: #{mnist_conv_forward.2} parent=39 // loop_pre_header
          _
        $region65: #{mnist_conv_forward.2} parent=39 // loop_header
          %s1326 = sphi 0, %s1330
          %p1327 = scmp.ge.s32.totalorder %s1326, 8
        $region66: #{mnist_conv_forward.2} parent=39 // loop_header_branch
          %1329 = sbr.rel (%p1327) target = $region70
        $region67: #{mnist_conv_forward.2} parent=39 // loop_body
          %s1331 = smul.u32 %s1326, 72
          %s1332 = sld [smem:[#allocation7 + %s1331]]
          %v1333 = vld [vmem:[#allocation2] sm:$0xff]
          %v1334 = vld [vmem:[#allocation2 + $0x8] sm:$0x3f]
          %v1335 = vstv %s1332
          %v1336 = vmul.f32 %v1335, %v1333
          %v1337 = vmul.f32 %v1335, %v1334
          %v1338 = vadd.f32 %v1336, 0.0
          %v1339 = vadd.f32 %v1337, 0.0
          %s1340 = sadd.s32 %s1331, 1
          %s1341 = sld [smem:[#allocation7 + %s1340]]
          %v1342 = vstv %s1341
          %v1343 = vmul.f32 %v1342, %v1333
          %v1344 = vmul.f32 %v1342, %v1334
          %1347 = vrot.lane.b32.xlu0 %v1343, 127
          %v1348 = vpop.permute.xlu0 %1347
          %1349 = vrot.lane.b32.xlu0 %v1344, 127
          %v1350 = vpop.permute.xlu0 %1349
          %v1353 = vadd.f32 %v1338, %v1348
          %v1354 = vadd.f32 %v1339, %v1350
          %s1355 = sadd.s32 %s1331, 2
          %s1356 = sld [smem:[#allocation7 + %s1355]]
          %v1357 = vstv %s1356
          %v1358 = vmul.f32 %v1357, %v1333
          %v1359 = vmul.f32 %v1357, %v1334
          %1362 = vrot.lane.b32.xlu0 %v1358, 126
          %v1363 = vpop.permute.xlu0 %1362
          %1364 = vrot.lane.b32.xlu0 %v1359, 126
          %v1365 = vpop.permute.xlu0 %1364
          %v1368 = vadd.f32 %v1353, %v1363
          %v1369 = vadd.f32 %v1354, %v1365
          %s1370 = sadd.s32 %s1331, 3
          %s1371 = sld [smem:[#allocation7 + %s1370]]
          %v1372 = vld [vmem:[#allocation2 + $0x1] sm:$0xff]
          %v1373 = vld [vmem:[#allocation2 + $0x9] sm:$0x3f]
          %v1374 = vstv %s1371
          %v1375 = vmul.f32 %v1374, %v1372
          %v1376 = vmul.f32 %v1374, %v1373
          %v1377 = vadd.f32 %v1368, %v1375
          %v1378 = vadd.f32 %v1369, %v1376
          %s1379 = sadd.s32 %s1331, 4
          %s1380 = sld [smem:[#allocation7 + %s1379]]
          %v1381 = vstv %s1380
          %v1382 = vmul.f32 %v1381, %v1372
          %v1383 = vmul.f32 %v1381, %v1373
          %1386 = vrot.lane.b32.xlu0 %v1382, 127
          %v1387 = vpop.permute.xlu0 %1386
          %1388 = vrot.lane.b32.xlu0 %v1383, 127
          %v1389 = vpop.permute.xlu0 %1388
          %v1392 = vadd.f32 %v1377, %v1387
          %v1393 = vadd.f32 %v1378, %v1389
          %s1394 = sadd.s32 %s1331, 5
          %s1395 = sld [smem:[#allocation7 + %s1394]]
          %v1396 = vstv %s1395
          %v1397 = vmul.f32 %v1396, %v1372
          %v1398 = vmul.f32 %v1396, %v1373
          %1401 = vrot.lane.b32.xlu0 %v1397, 126
          %v1402 = vpop.permute.xlu0 %1401
          %1403 = vrot.lane.b32.xlu0 %v1398, 126
          %v1404 = vpop.permute.xlu0 %1403
          %v1407 = vadd.f32 %v1392, %v1402
          %v1408 = vadd.f32 %v1393, %v1404
          %s1409 = sadd.s32 %s1331, 6
          %s1410 = sld [smem:[#allocation7 + %s1409]]
          %v1411 = vld [vmem:[#allocation2 + $0x2] sm:$0xff]
          %v1412 = vld [vmem:[#allocation2 + $0xa] sm:$0x3f]
          %v1413 = vstv %s1410
          %v1414 = vmul.f32 %v1413, %v1411
          %v1415 = vmul.f32 %v1413, %v1412
          %v1416 = vadd.f32 %v1407, %v1414
          %v1417 = vadd.f32 %v1408, %v1415
          %s1418 = sadd.s32 %s1331, 7
          %s1419 = sld [smem:[#allocation7 + %s1418]]
          %v1420 = vstv %s1419
          %v1421 = vmul.f32 %v1420, %v1411
          %v1422 = vmul.f32 %v1420, %v1412
          %1425 = vrot.lane.b32.xlu0 %v1421, 127
          %v1426 = vpop.permute.xlu0 %1425
          %1427 = vrot.lane.b32.xlu0 %v1422, 127
          %v1428 = vpop.permute.xlu0 %1427
          %v1431 = vadd.f32 %v1416, %v1426
          %v1432 = vadd.f32 %v1417, %v1428
          %s1433 = sadd.s32 %s1331, 8
          %s1434 = sld [smem:[#allocation7 + %s1433]]
          %v1435 = vstv %s1434
          %v1436 = vmul.f32 %v1435, %v1411
          %v1437 = vmul.f32 %v1435, %v1412
          %1440 = vrot.lane.b32.xlu0 %v1436, 126
          %v1441 = vpop.permute.xlu0 %1440
          %1442 = vrot.lane.b32.xlu0 %v1437, 126
          %v1443 = vpop.permute.xlu0 %1442
          %v1446 = vadd.f32 %v1431, %v1441
          %v1447 = vadd.f32 %v1432, %v1443
          %s1448 = sadd.s32 %s1331, 9
          %s1449 = sld [smem:[#allocation7 + %s1448]]
          %s1450 = scalar_lea.vmem [#allocation2], 16
          %v1451 = vld [vmem:[%s1450] sm:$0xff]
          %v1452 = vld [vmem:[%s1450 + $0x8] sm:$0x3f]
          %v1453 = vstv %s1449
          %v1454 = vmul.f32 %v1453, %v1451
          %v1455 = vmul.f32 %v1453, %v1452
          %v1456 = vadd.f32 %v1446, %v1454
          %v1457 = vadd.f32 %v1447, %v1455
          %s1458 = sadd.s32 %s1331, 10
          %s1459 = sld [smem:[#allocation7 + %s1458]]
          %v1460 = vstv %s1459
          %v1461 = vmul.f32 %v1460, %v1451
          %v1462 = vmul.f32 %v1460, %v1452
          %1465 = vrot.lane.b32.xlu0 %v1461, 127
          %v1466 = vpop.permute.xlu0 %1465
          %1467 = vrot.lane.b32.xlu0 %v1462, 127
          %v1468 = vpop.permute.xlu0 %1467
          %v1471 = vadd.f32 %v1456, %v1466
          %v1472 = vadd.f32 %v1457, %v1468
          %s1473 = sadd.s32 %s1331, 11
          %s1474 = sld [smem:[#allocation7 + %s1473]]
          %v1475 = vstv %s1474
          %v1476 = vmul.f32 %v1475, %v1451
          %v1477 = vmul.f32 %v1475, %v1452
          %1480 = vrot.lane.b32.xlu0 %v1476, 126
          %v1481 = vpop.permute.xlu0 %1480
          %1482 = vrot.lane.b32.xlu0 %v1477, 126
          %v1483 = vpop.permute.xlu0 %1482
          %v1486 = vadd.f32 %v1471, %v1481
          %v1487 = vadd.f32 %v1472, %v1483
          %s1488 = sadd.s32 %s1331, 12
          %s1489 = sld [smem:[#allocation7 + %s1488]]
          %v1490 = vld [vmem:[%s1450 + $0x1] sm:$0xff]
          %v1491 = vld [vmem:[%s1450 + $0x9] sm:$0x3f]
          %v1492 = vstv %s1489
          %v1493 = vmul.f32 %v1492, %v1490
          %v1494 = vmul.f32 %v1492, %v1491
          %v1495 = vadd.f32 %v1486, %v1493
          %v1496 = vadd.f32 %v1487, %v1494
          %s1497 = sadd.s32 %s1331, 13
          %s1498 = sld [smem:[#allocation7 + %s1497]]
          %v1499 = vstv %s1498
          %v1500 = vmul.f32 %v1499, %v1490
          %v1501 = vmul.f32 %v1499, %v1491
          %1504 = vrot.lane.b32.xlu0 %v1500, 127
          %v1505 = vpop.permute.xlu0 %1504
          %1506 = vrot.lane.b32.xlu0 %v1501, 127
          %v1507 = vpop.permute.xlu0 %1506
          %v1510 = vadd.f32 %v1495, %v1505
          %v1511 = vadd.f32 %v1496, %v1507
          %s1512 = sadd.s32 %s1331, 14
          %s1513 = sld [smem:[#allocation7 + %s1512]]
          %v1514 = vstv %s1513
          %v1515 = vmul.f32 %v1514, %v1490
          %v1516 = vmul.f32 %v1514, %v1491
          %1519 = vrot.lane.b32.xlu0 %v1515, 126
          %v1520 = vpop.permute.xlu0 %1519
          %1521 = vrot.lane.b32.xlu0 %v1516, 126
          %v1522 = vpop.permute.xlu0 %1521
          %v1525 = vadd.f32 %v1510, %v1520
          %v1526 = vadd.f32 %v1511, %v1522
          %s1527 = sadd.s32 %s1331, 15
          %s1528 = sld [smem:[#allocation7 + %s1527]]
          %v1529 = vld [vmem:[%s1450 + $0x2] sm:$0xff]
          %v1530 = vld [vmem:[%s1450 + $0xa] sm:$0x3f]
          %v1531 = vstv %s1528
          %v1532 = vmul.f32 %v1531, %v1529
          %v1533 = vmul.f32 %v1531, %v1530
          %v1534 = vadd.f32 %v1525, %v1532
          %v1535 = vadd.f32 %v1526, %v1533
          %s1536 = sadd.s32 %s1331, 16
          %s1537 = sld [smem:[#allocation7 + %s1536]]
          %v1538 = vstv %s1537
          %v1539 = vmul.f32 %v1538, %v1529
          %v1540 = vmul.f32 %v1538, %v1530
          %1543 = vrot.lane.b32.xlu0 %v1539, 127
          %v1544 = vpop.permute.xlu0 %1543
          %1545 = vrot.lane.b32.xlu0 %v1540, 127
          %v1546 = vpop.permute.xlu0 %1545
          %v1549 = vadd.f32 %v1534, %v1544
          %v1550 = vadd.f32 %v1535, %v1546
          %s1551 = sadd.s32 %s1331, 17
          %s1552 = sld [smem:[#allocation7 + %s1551]]
          %v1553 = vstv %s1552
          %v1554 = vmul.f32 %v1553, %v1529
          %v1555 = vmul.f32 %v1553, %v1530
          %1558 = vrot.lane.b32.xlu0 %v1554, 126
          %v1559 = vpop.permute.xlu0 %1558
          %1560 = vrot.lane.b32.xlu0 %v1555, 126
          %v1561 = vpop.permute.xlu0 %1560
          %v1564 = vadd.f32 %v1549, %v1559
          %v1565 = vadd.f32 %v1550, %v1561
          %s1566 = sadd.s32 %s1331, 18
          %s1567 = sld [smem:[#allocation7 + %s1566]]
          %s1568 = scalar_lea.vmem [#allocation2], 32
          %v1569 = vld [vmem:[%s1568] sm:$0xff]
          %v1570 = vld [vmem:[%s1568 + $0x8] sm:$0x3f]
          %v1571 = vstv %s1567
          %v1572 = vmul.f32 %v1571, %v1569
          %v1573 = vmul.f32 %v1571, %v1570
          %v1574 = vadd.f32 %v1564, %v1572
          %v1575 = vadd.f32 %v1565, %v1573
          %s1576 = sadd.s32 %s1331, 19
          %s1577 = sld [smem:[#allocation7 + %s1576]]
          %v1578 = vstv %s1577
          %v1579 = vmul.f32 %v1578, %v1569
          %v1580 = vmul.f32 %v1578, %v1570
          %1583 = vrot.lane.b32.xlu0 %v1579, 127
          %v1584 = vpop.permute.xlu0 %1583
          %1585 = vrot.lane.b32.xlu0 %v1580, 127
          %v1586 = vpop.permute.xlu0 %1585
          %v1589 = vadd.f32 %v1574, %v1584
          %v1590 = vadd.f32 %v1575, %v1586
          %s1591 = sadd.s32 %s1331, 20
          %s1592 = sld [smem:[#allocation7 + %s1591]]
          %v1593 = vstv %s1592
          %v1594 = vmul.f32 %v1593, %v1569
          %v1595 = vmul.f32 %v1593, %v1570
          %1598 = vrot.lane.b32.xlu0 %v1594, 126
          %v1599 = vpop.permute.xlu0 %1598
          %1600 = vrot.lane.b32.xlu0 %v1595, 126
          %v1601 = vpop.permute.xlu0 %1600
          %v1604 = vadd.f32 %v1589, %v1599
          %v1605 = vadd.f32 %v1590, %v1601
          %s1606 = sadd.s32 %s1331, 21
          %s1607 = sld [smem:[#allocation7 + %s1606]]
          %v1608 = vld [vmem:[%s1568 + $0x1] sm:$0xff]
          %v1609 = vld [vmem:[%s1568 + $0x9] sm:$0x3f]
          %v1610 = vstv %s1607
          %v1611 = vmul.f32 %v1610, %v1608
          %v1612 = vmul.f32 %v1610, %v1609
          %v1613 = vadd.f32 %v1604, %v1611
          %v1614 = vadd.f32 %v1605, %v1612
          %s1615 = sadd.s32 %s1331, 22
          %s1616 = sld [smem:[#allocation7 + %s1615]]
          %v1617 = vstv %s1616
          %v1618 = vmul.f32 %v1617, %v1608
          %v1619 = vmul.f32 %v1617, %v1609
          %1622 = vrot.lane.b32.xlu0 %v1618, 127
          %v1623 = vpop.permute.xlu0 %1622
          %1624 = vrot.lane.b32.xlu0 %v1619, 127
          %v1625 = vpop.permute.xlu0 %1624
          %v1628 = vadd.f32 %v1613, %v1623
          %v1629 = vadd.f32 %v1614, %v1625
          %s1630 = sadd.s32 %s1331, 23
          %s1631 = sld [smem:[#allocation7 + %s1630]]
          %v1632 = vstv %s1631
          %v1633 = vmul.f32 %v1632, %v1608
          %v1634 = vmul.f32 %v1632, %v1609
          %1637 = vrot.lane.b32.xlu0 %v1633, 126
          %v1638 = vpop.permute.xlu0 %1637
          %1639 = vrot.lane.b32.xlu0 %v1634, 126
          %v1640 = vpop.permute.xlu0 %1639
          %v1643 = vadd.f32 %v1628, %v1638
          %v1644 = vadd.f32 %v1629, %v1640
          %s1645 = sadd.s32 %s1331, 24
          %s1646 = sld [smem:[#allocation7 + %s1645]]
          %v1647 = vld [vmem:[%s1568 + $0x2] sm:$0xff]
          %v1648 = vld [vmem:[%s1568 + $0xa] sm:$0x3f]
          %v1649 = vstv %s1646
          %v1650 = vmul.f32 %v1649, %v1647
          %v1651 = vmul.f32 %v1649, %v1648
          %v1652 = vadd.f32 %v1643, %v1650
          %v1653 = vadd.f32 %v1644, %v1651
          %s1654 = sadd.s32 %s1331, 25
          %s1655 = sld [smem:[#allocation7 + %s1654]]
          %v1656 = vstv %s1655
          %v1657 = vmul.f32 %v1656, %v1647
          %v1658 = vmul.f32 %v1656, %v1648
          %1661 = vrot.lane.b32.xlu0 %v1657, 127
          %v1662 = vpop.permute.xlu0 %1661
          %1663 = vrot.lane.b32.xlu0 %v1658, 127
          %v1664 = vpop.permute.xlu0 %1663
          %v1667 = vadd.f32 %v1652, %v1662
          %v1668 = vadd.f32 %v1653, %v1664
          %s1669 = sadd.s32 %s1331, 26
          %s1670 = sld [smem:[#allocation7 + %s1669]]
          %v1671 = vstv %s1670
          %v1672 = vmul.f32 %v1671, %v1647
          %v1673 = vmul.f32 %v1671, %v1648
          %1676 = vrot.lane.b32.xlu0 %v1672, 126
          %v1677 = vpop.permute.xlu0 %1676
          %1678 = vrot.lane.b32.xlu0 %v1673, 126
          %v1679 = vpop.permute.xlu0 %1678
          %v1682 = vadd.f32 %v1667, %v1677
          %v1683 = vadd.f32 %v1668, %v1679
          %s1684 = sadd.s32 %s1331, 27
          %s1685 = sld [smem:[#allocation7 + %s1684]]
          %s1686 = scalar_lea.vmem [#allocation2], 48
          %v1687 = vld [vmem:[%s1686] sm:$0xff]
          %v1688 = vld [vmem:[%s1686 + $0x8] sm:$0x3f]
          %v1689 = vstv %s1685
          %v1690 = vmul.f32 %v1689, %v1687
          %v1691 = vmul.f32 %v1689, %v1688
          %v1692 = vadd.f32 %v1682, %v1690
          %v1693 = vadd.f32 %v1683, %v1691
          %s1694 = sadd.s32 %s1331, 28
          %s1695 = sld [smem:[#allocation7 + %s1694]]
          %v1696 = vstv %s1695
          %v1697 = vmul.f32 %v1696, %v1687
          %v1698 = vmul.f32 %v1696, %v1688
          %1701 = vrot.lane.b32.xlu0 %v1697, 127
          %v1702 = vpop.permute.xlu0 %1701
          %1703 = vrot.lane.b32.xlu0 %v1698, 127
          %v1704 = vpop.permute.xlu0 %1703
          %v1707 = vadd.f32 %v1692, %v1702
          %v1708 = vadd.f32 %v1693, %v1704
          %s1709 = sadd.s32 %s1331, 29
          %s1710 = sld [smem:[#allocation7 + %s1709]]
          %v1711 = vstv %s1710
          %v1712 = vmul.f32 %v1711, %v1687
          %v1713 = vmul.f32 %v1711, %v1688
          %1716 = vrot.lane.b32.xlu0 %v1712, 126
          %v1717 = vpop.permute.xlu0 %1716
          %1718 = vrot.lane.b32.xlu0 %v1713, 126
          %v1719 = vpop.permute.xlu0 %1718
          %v1722 = vadd.f32 %v1707, %v1717
          %v1723 = vadd.f32 %v1708, %v1719
          %s1724 = sadd.s32 %s1331, 30
          %s1725 = sld [smem:[#allocation7 + %s1724]]
          %v1726 = vld [vmem:[%s1686 + $0x1] sm:$0xff]
          %v1727 = vld [vmem:[%s1686 + $0x9] sm:$0x3f]
          %v1728 = vstv %s1725
          %v1729 = vmul.f32 %v1728, %v1726
          %v1730 = vmul.f32 %v1728, %v1727
          %v1731 = vadd.f32 %v1722, %v1729
          %v1732 = vadd.f32 %v1723, %v1730
          %s1733 = sadd.s32 %s1331, 31
          %s1734 = sld [smem:[#allocation7 + %s1733]]
          %v1735 = vstv %s1734
          %v1736 = vmul.f32 %v1735, %v1726
          %v1737 = vmul.f32 %v1735, %v1727
          %1740 = vrot.lane.b32.xlu0 %v1736, 127
          %v1741 = vpop.permute.xlu0 %1740
          %1742 = vrot.lane.b32.xlu0 %v1737, 127
          %v1743 = vpop.permute.xlu0 %1742
          %v1746 = vadd.f32 %v1731, %v1741
          %v1747 = vadd.f32 %v1732, %v1743
          %s1748 = sadd.s32 %s1331, 32
          %s1749 = sld [smem:[#allocation7 + %s1748]]
          %v1750 = vstv %s1749
          %v1751 = vmul.f32 %v1750, %v1726
          %v1752 = vmul.f32 %v1750, %v1727
          %1755 = vrot.lane.b32.xlu0 %v1751, 126
          %v1756 = vpop.permute.xlu0 %1755
          %1757 = vrot.lane.b32.xlu0 %v1752, 126
          %v1758 = vpop.permute.xlu0 %1757
          %v1761 = vadd.f32 %v1746, %v1756
          %v1762 = vadd.f32 %v1747, %v1758
          %s1763 = sadd.s32 %s1331, 33
          %s1764 = sld [smem:[#allocation7 + %s1763]]
          %v1765 = vld [vmem:[%s1686 + $0x2] sm:$0xff]
          %v1766 = vld [vmem:[%s1686 + $0xa] sm:$0x3f]
          %v1767 = vstv %s1764
          %v1768 = vmul.f32 %v1767, %v1765
          %v1769 = vmul.f32 %v1767, %v1766
          %v1770 = vadd.f32 %v1761, %v1768
          %v1771 = vadd.f32 %v1762, %v1769
          %s1772 = sadd.s32 %s1331, 34
          %s1773 = sld [smem:[#allocation7 + %s1772]]
          %v1774 = vstv %s1773
          %v1775 = vmul.f32 %v1774, %v1765
          %v1776 = vmul.f32 %v1774, %v1766
          %1779 = vrot.lane.b32.xlu0 %v1775, 127
          %v1780 = vpop.permute.xlu0 %1779
          %1781 = vrot.lane.b32.xlu0 %v1776, 127
          %v1782 = vpop.permute.xlu0 %1781
          %v1785 = vadd.f32 %v1770, %v1780
          %v1786 = vadd.f32 %v1771, %v1782
          %s1787 = sadd.s32 %s1331, 35
          %s1788 = sld [smem:[#allocation7 + %s1787]]
          %v1789 = vstv %s1788
          %v1790 = vmul.f32 %v1789, %v1765
          %v1791 = vmul.f32 %v1789, %v1766
          %1794 = vrot.lane.b32.xlu0 %v1790, 126
          %v1795 = vpop.permute.xlu0 %1794
          %1796 = vrot.lane.b32.xlu0 %v1791, 126
          %v1797 = vpop.permute.xlu0 %1796
          %v1800 = vadd.f32 %v1785, %v1795
          %v1801 = vadd.f32 %v1786, %v1797
          %s1802 = sadd.s32 %s1331, 36
          %s1803 = sld [smem:[#allocation7 + %s1802]]
          %s1804 = scalar_lea.vmem [#allocation2], 64
          %v1805 = vld [vmem:[%s1804] sm:$0xff]
          %v1806 = vld [vmem:[%s1804 + $0x8] sm:$0x3f]
          %v1807 = vstv %s1803
          %v1808 = vmul.f32 %v1807, %v1805
          %v1809 = vmul.f32 %v1807, %v1806
          %v1810 = vadd.f32 %v1800, %v1808
          %v1811 = vadd.f32 %v1801, %v1809
          %s1812 = sadd.s32 %s1331, 37
          %s1813 = sld [smem:[#allocation7 + %s1812]]
          %v1814 = vstv %s1813
          %v1815 = vmul.f32 %v1814, %v1805
          %v1816 = vmul.f32 %v1814, %v1806
          %1819 = vrot.lane.b32.xlu0 %v1815, 127
          %v1820 = vpop.permute.xlu0 %1819
          %1821 = vrot.lane.b32.xlu0 %v1816, 127
          %v1822 = vpop.permute.xlu0 %1821
          %v1825 = vadd.f32 %v1810, %v1820
          %v1826 = vadd.f32 %v1811, %v1822
          %s1827 = sadd.s32 %s1331, 38
          %s1828 = sld [smem:[#allocation7 + %s1827]]
          %v1829 = vstv %s1828
          %v1830 = vmul.f32 %v1829, %v1805
          %v1831 = vmul.f32 %v1829, %v1806
          %1834 = vrot.lane.b32.xlu0 %v1830, 126
          %v1835 = vpop.permute.xlu0 %1834
          %1836 = vrot.lane.b32.xlu0 %v1831, 126
          %v1837 = vpop.permute.xlu0 %1836
          %v1840 = vadd.f32 %v1825, %v1835
          %v1841 = vadd.f32 %v1826, %v1837
          %s1842 = sadd.s32 %s1331, 39
          %s1843 = sld [smem:[#allocation7 + %s1842]]
          %v1844 = vld [vmem:[%s1804 + $0x1] sm:$0xff]
          %v1845 = vld [vmem:[%s1804 + $0x9] sm:$0x3f]
          %v1846 = vstv %s1843
          %v1847 = vmul.f32 %v1846, %v1844
          %v1848 = vmul.f32 %v1846, %v1845
          %v1849 = vadd.f32 %v1840, %v1847
          %v1850 = vadd.f32 %v1841, %v1848
          %s1851 = sadd.s32 %s1331, 40
          %s1852 = sld [smem:[#allocation7 + %s1851]]
          %v1853 = vstv %s1852
          %v1854 = vmul.f32 %v1853, %v1844
          %v1855 = vmul.f32 %v1853, %v1845
          %1858 = vrot.lane.b32.xlu0 %v1854, 127
          %v1859 = vpop.permute.xlu0 %1858
          %1860 = vrot.lane.b32.xlu0 %v1855, 127
          %v1861 = vpop.permute.xlu0 %1860
          %v1864 = vadd.f32 %v1849, %v1859
          %v1865 = vadd.f32 %v1850, %v1861
          %s1866 = sadd.s32 %s1331, 41
          %s1867 = sld [smem:[#allocation7 + %s1866]]
          %v1868 = vstv %s1867
          %v1869 = vmul.f32 %v1868, %v1844
          %v1870 = vmul.f32 %v1868, %v1845
          %1873 = vrot.lane.b32.xlu0 %v1869, 126
          %v1874 = vpop.permute.xlu0 %1873
          %1875 = vrot.lane.b32.xlu0 %v1870, 126
          %v1876 = vpop.permute.xlu0 %1875
          %v1879 = vadd.f32 %v1864, %v1874
          %v1880 = vadd.f32 %v1865, %v1876
          %s1881 = sadd.s32 %s1331, 42
          %s1882 = sld [smem:[#allocation7 + %s1881]]
          %v1883 = vld [vmem:[%s1804 + $0x2] sm:$0xff]
          %v1884 = vld [vmem:[%s1804 + $0xa] sm:$0x3f]
          %v1885 = vstv %s1882
          %v1886 = vmul.f32 %v1885, %v1883
          %v1887 = vmul.f32 %v1885, %v1884
          %v1888 = vadd.f32 %v1879, %v1886
          %v1889 = vadd.f32 %v1880, %v1887
          %s1890 = sadd.s32 %s1331, 43
          %s1891 = sld [smem:[#allocation7 + %s1890]]
          %v1892 = vstv %s1891
          %v1893 = vmul.f32 %v1892, %v1883
          %v1894 = vmul.f32 %v1892, %v1884
          %1897 = vrot.lane.b32.xlu0 %v1893, 127
          %v1898 = vpop.permute.xlu0 %1897
          %1899 = vrot.lane.b32.xlu0 %v1894, 127
          %v1900 = vpop.permute.xlu0 %1899
          %v1903 = vadd.f32 %v1888, %v1898
          %v1904 = vadd.f32 %v1889, %v1900
          %s1905 = sadd.s32 %s1331, 44
          %s1906 = sld [smem:[#allocation7 + %s1905]]
          %v1907 = vstv %s1906
          %v1908 = vmul.f32 %v1907, %v1883
          %v1909 = vmul.f32 %v1907, %v1884
          %1912 = vrot.lane.b32.xlu0 %v1908, 126
          %v1913 = vpop.permute.xlu0 %1912
          %1914 = vrot.lane.b32.xlu0 %v1909, 126
          %v1915 = vpop.permute.xlu0 %1914
          %v1918 = vadd.f32 %v1903, %v1913
          %v1919 = vadd.f32 %v1904, %v1915
          %s1920 = sadd.s32 %s1331, 45
          %s1921 = sld [smem:[#allocation7 + %s1920]]
          %s1922 = scalar_lea.vmem [#allocation2], 80
          %v1923 = vld [vmem:[%s1922] sm:$0xff]
          %v1924 = vld [vmem:[%s1922 + $0x8] sm:$0x3f]
          %v1925 = vstv %s1921
          %v1926 = vmul.f32 %v1925, %v1923
          %v1927 = vmul.f32 %v1925, %v1924
          %v1928 = vadd.f32 %v1918, %v1926
          %v1929 = vadd.f32 %v1919, %v1927
          %s1930 = sadd.s32 %s1331, 46
          %s1931 = sld [smem:[#allocation7 + %s1930]]
          %v1932 = vstv %s1931
          %v1933 = vmul.f32 %v1932, %v1923
          %v1934 = vmul.f32 %v1932, %v1924
          %1937 = vrot.lane.b32.xlu0 %v1933, 127
          %v1938 = vpop.permute.xlu0 %1937
          %1939 = vrot.lane.b32.xlu0 %v1934, 127
          %v1940 = vpop.permute.xlu0 %1939
          %v1943 = vadd.f32 %v1928, %v1938
          %v1944 = vadd.f32 %v1929, %v1940
          %s1945 = sadd.s32 %s1331, 47
          %s1946 = sld [smem:[#allocation7 + %s1945]]
          %v1947 = vstv %s1946
          %v1948 = vmul.f32 %v1947, %v1923
          %v1949 = vmul.f32 %v1947, %v1924
          %1952 = vrot.lane.b32.xlu0 %v1948, 126
          %v1953 = vpop.permute.xlu0 %1952
          %1954 = vrot.lane.b32.xlu0 %v1949, 126
          %v1955 = vpop.permute.xlu0 %1954
          %v1958 = vadd.f32 %v1943, %v1953
          %v1959 = vadd.f32 %v1944, %v1955
          %s1960 = sadd.s32 %s1331, 48
          %s1961 = sld [smem:[#allocation7 + %s1960]]
          %v1962 = vld [vmem:[%s1922 + $0x1] sm:$0xff]
          %v1963 = vld [vmem:[%s1922 + $0x9] sm:$0x3f]
          %v1964 = vstv %s1961
          %v1965 = vmul.f32 %v1964, %v1962
          %v1966 = vmul.f32 %v1964, %v1963
          %v1967 = vadd.f32 %v1958, %v1965
          %v1968 = vadd.f32 %v1959, %v1966
          %s1969 = sadd.s32 %s1331, 49
          %s1970 = sld [smem:[#allocation7 + %s1969]]
          %v1971 = vstv %s1970
          %v1972 = vmul.f32 %v1971, %v1962
          %v1973 = vmul.f32 %v1971, %v1963
          %1976 = vrot.lane.b32.xlu0 %v1972, 127
          %v1977 = vpop.permute.xlu0 %1976
          %1978 = vrot.lane.b32.xlu0 %v1973, 127
          %v1979 = vpop.permute.xlu0 %1978
          %v1982 = vadd.f32 %v1967, %v1977
          %v1983 = vadd.f32 %v1968, %v1979
          %s1984 = sadd.s32 %s1331, 50
          %s1985 = sld [smem:[#allocation7 + %s1984]]
          %v1986 = vstv %s1985
          %v1987 = vmul.f32 %v1986, %v1962
          %v1988 = vmul.f32 %v1986, %v1963
          %1991 = vrot.lane.b32.xlu0 %v1987, 126
          %v1992 = vpop.permute.xlu0 %1991
          %1993 = vrot.lane.b32.xlu0 %v1988, 126
          %v1994 = vpop.permute.xlu0 %1993
          %v1997 = vadd.f32 %v1982, %v1992
          %v1998 = vadd.f32 %v1983, %v1994
          %s1999 = sadd.s32 %s1331, 51
          %s2000 = sld [smem:[#allocation7 + %s1999]]
          %v2001 = vld [vmem:[%s1922 + $0x2] sm:$0xff]
          %v2002 = vld [vmem:[%s1922 + $0xa] sm:$0x3f]
          %v2003 = vstv %s2000
          %v2004 = vmul.f32 %v2003, %v2001
          %v2005 = vmul.f32 %v2003, %v2002
          %v2006 = vadd.f32 %v1997, %v2004
          %v2007 = vadd.f32 %v1998, %v2005
          %s2008 = sadd.s32 %s1331, 52
          %s2009 = sld [smem:[#allocation7 + %s2008]]
          %v2010 = vstv %s2009
          %v2011 = vmul.f32 %v2010, %v2001
          %v2012 = vmul.f32 %v2010, %v2002
          %2015 = vrot.lane.b32.xlu0 %v2011, 127
          %v2016 = vpop.permute.xlu0 %2015
          %2017 = vrot.lane.b32.xlu0 %v2012, 127
          %v2018 = vpop.permute.xlu0 %2017
          %v2021 = vadd.f32 %v2006, %v2016
          %v2022 = vadd.f32 %v2007, %v2018
          %s2023 = sadd.s32 %s1331, 53
          %s2024 = sld [smem:[#allocation7 + %s2023]]
          %v2025 = vstv %s2024
          %v2026 = vmul.f32 %v2025, %v2001
          %v2027 = vmul.f32 %v2025, %v2002
          %2030 = vrot.lane.b32.xlu0 %v2026, 126
          %v2031 = vpop.permute.xlu0 %2030
          %2032 = vrot.lane.b32.xlu0 %v2027, 126
          %v2033 = vpop.permute.xlu0 %2032
          %v2036 = vadd.f32 %v2021, %v2031
          %v2037 = vadd.f32 %v2022, %v2033
          %s2038 = sadd.s32 %s1331, 54
          %s2039 = sld [smem:[#allocation7 + %s2038]]
          %s2040 = scalar_lea.vmem [#allocation2], 96
          %v2041 = vld [vmem:[%s2040] sm:$0xff]
          %v2042 = vld [vmem:[%s2040 + $0x8] sm:$0x3f]
          %v2043 = vstv %s2039
          %v2044 = vmul.f32 %v2043, %v2041
          %v2045 = vmul.f32 %v2043, %v2042
          %v2046 = vadd.f32 %v2036, %v2044
          %v2047 = vadd.f32 %v2037, %v2045
          %s2048 = sadd.s32 %s1331, 55
          %s2049 = sld [smem:[#allocation7 + %s2048]]
          %v2050 = vstv %s2049
          %v2051 = vmul.f32 %v2050, %v2041
          %v2052 = vmul.f32 %v2050, %v2042
          %2055 = vrot.lane.b32.xlu0 %v2051, 127
          %v2056 = vpop.permute.xlu0 %2055
          %2057 = vrot.lane.b32.xlu0 %v2052, 127
          %v2058 = vpop.permute.xlu0 %2057
          %v2061 = vadd.f32 %v2046, %v2056
          %v2062 = vadd.f32 %v2047, %v2058
          %s2063 = sadd.s32 %s1331, 56
          %s2064 = sld [smem:[#allocation7 + %s2063]]
          %v2065 = vstv %s2064
          %v2066 = vmul.f32 %v2065, %v2041
          %v2067 = vmul.f32 %v2065, %v2042
          %2070 = vrot.lane.b32.xlu0 %v2066, 126
          %v2071 = vpop.permute.xlu0 %2070
          %2072 = vrot.lane.b32.xlu0 %v2067, 126
          %v2073 = vpop.permute.xlu0 %2072
          %v2076 = vadd.f32 %v2061, %v2071
          %v2077 = vadd.f32 %v2062, %v2073
          %s2078 = sadd.s32 %s1331, 57
          %s2079 = sld [smem:[#allocation7 + %s2078]]
          %v2080 = vld [vmem:[%s2040 + $0x1] sm:$0xff]
          %v2081 = vld [vmem:[%s2040 + $0x9] sm:$0x3f]
          %v2082 = vstv %s2079
          %v2083 = vmul.f32 %v2082, %v2080
          %v2084 = vmul.f32 %v2082, %v2081
          %v2085 = vadd.f32 %v2076, %v2083
          %v2086 = vadd.f32 %v2077, %v2084
          %s2087 = sadd.s32 %s1331, 58
          %s2088 = sld [smem:[#allocation7 + %s2087]]
          %v2089 = vstv %s2088
          %v2090 = vmul.f32 %v2089, %v2080
          %v2091 = vmul.f32 %v2089, %v2081
          %2094 = vrot.lane.b32.xlu0 %v2090, 127
          %v2095 = vpop.permute.xlu0 %2094
          %2096 = vrot.lane.b32.xlu0 %v2091, 127
          %v2097 = vpop.permute.xlu0 %2096
          %v2100 = vadd.f32 %v2085, %v2095
          %v2101 = vadd.f32 %v2086, %v2097
          %s2102 = sadd.s32 %s1331, 59
          %s2103 = sld [smem:[#allocation7 + %s2102]]
          %v2104 = vstv %s2103
          %v2105 = vmul.f32 %v2104, %v2080
          %v2106 = vmul.f32 %v2104, %v2081
          %2109 = vrot.lane.b32.xlu0 %v2105, 126
          %v2110 = vpop.permute.xlu0 %2109
          %2111 = vrot.lane.b32.xlu0 %v2106, 126
          %v2112 = vpop.permute.xlu0 %2111
          %v2115 = vadd.f32 %v2100, %v2110
          %v2116 = vadd.f32 %v2101, %v2112
          %s2117 = sadd.s32 %s1331, 60
          %s2118 = sld [smem:[#allocation7 + %s2117]]
          %v2119 = vld [vmem:[%s2040 + $0x2] sm:$0xff]
          %v2120 = vld [vmem:[%s2040 + $0xa] sm:$0x3f]
          %v2121 = vstv %s2118
          %v2122 = vmul.f32 %v2121, %v2119
          %v2123 = vmul.f32 %v2121, %v2120
          %v2124 = vadd.f32 %v2115, %v2122
          %v2125 = vadd.f32 %v2116, %v2123
          %s2126 = sadd.s32 %s1331, 61
          %s2127 = sld [smem:[#allocation7 + %s2126]]
          %v2128 = vstv %s2127
          %v2129 = vmul.f32 %v2128, %v2119
          %v2130 = vmul.f32 %v2128, %v2120
          %2133 = vrot.lane.b32.xlu0 %v2129, 127
          %v2134 = vpop.permute.xlu0 %2133
          %2135 = vrot.lane.b32.xlu0 %v2130, 127
          %v2136 = vpop.permute.xlu0 %2135
          %v2139 = vadd.f32 %v2124, %v2134
          %v2140 = vadd.f32 %v2125, %v2136
          %s2141 = sadd.s32 %s1331, 62
          %s2142 = sld [smem:[#allocation7 + %s2141]]
          %v2143 = vstv %s2142
          %v2144 = vmul.f32 %v2143, %v2119
          %v2145 = vmul.f32 %v2143, %v2120
          %2148 = vrot.lane.b32.xlu0 %v2144, 126
          %v2149 = vpop.permute.xlu0 %2148
          %2150 = vrot.lane.b32.xlu0 %v2145, 126
          %v2151 = vpop.permute.xlu0 %2150
          %v2154 = vadd.f32 %v2139, %v2149
          %v2155 = vadd.f32 %v2140, %v2151
          %s2156 = sadd.s32 %s1331, 63
          %s2157 = sld [smem:[#allocation7 + %s2156]]
          %s2158 = scalar_lea.vmem [#allocation2], 112
          %v2159 = vld [vmem:[%s2158] sm:$0xff]
          %v2160 = vld [vmem:[%s2158 + $0x8] sm:$0x3f]
          %v2161 = vstv %s2157
          %v2162 = vmul.f32 %v2161, %v2159
          %v2163 = vmul.f32 %v2161, %v2160
          %v2164 = vadd.f32 %v2154, %v2162
          %v2165 = vadd.f32 %v2155, %v2163
          %s2166 = sadd.s32 %s1331, 64
          %s2167 = sld [smem:[#allocation7 + %s2166]]
          %v2168 = vstv %s2167
          %v2169 = vmul.f32 %v2168, %v2159
          %v2170 = vmul.f32 %v2168, %v2160
          %2173 = vrot.lane.b32.xlu0 %v2169, 127
          %v2174 = vpop.permute.xlu0 %2173
          %2175 = vrot.lane.b32.xlu0 %v2170, 127
          %v2176 = vpop.permute.xlu0 %2175
          %v2179 = vadd.f32 %v2164, %v2174
          %v2180 = vadd.f32 %v2165, %v2176
          %s2181 = sadd.s32 %s1331, 65
          %s2182 = sld [smem:[#allocation7 + %s2181]]
          %v2183 = vstv %s2182
          %v2184 = vmul.f32 %v2183, %v2159
          %v2185 = vmul.f32 %v2183, %v2160
          %2188 = vrot.lane.b32.xlu0 %v2184, 126
          %v2189 = vpop.permute.xlu0 %2188
          %2190 = vrot.lane.b32.xlu0 %v2185, 126
          %v2191 = vpop.permute.xlu0 %2190
          %v2194 = vadd.f32 %v2179, %v2189
          %v2195 = vadd.f32 %v2180, %v2191
          %s2196 = sadd.s32 %s1331, 66
          %s2197 = sld [smem:[#allocation7 + %s2196]]
          %v2198 = vld [vmem:[%s2158 + $0x1] sm:$0xff]
          %v2199 = vld [vmem:[%s2158 + $0x9] sm:$0x3f]
          %v2200 = vstv %s2197
          %v2201 = vmul.f32 %v2200, %v2198
          %v2202 = vmul.f32 %v2200, %v2199
          %v2203 = vadd.f32 %v2194, %v2201
          %v2204 = vadd.f32 %v2195, %v2202
          %s2205 = sadd.s32 %s1331, 67
          %s2206 = sld [smem:[#allocation7 + %s2205]]
          %v2207 = vstv %s2206
          %v2208 = vmul.f32 %v2207, %v2198
          %v2209 = vmul.f32 %v2207, %v2199
          %2212 = vrot.lane.b32.xlu0 %v2208, 127
          %v2213 = vpop.permute.xlu0 %2212
          %2214 = vrot.lane.b32.xlu0 %v2209, 127
          %v2215 = vpop.permute.xlu0 %2214
          %v2218 = vadd.f32 %v2203, %v2213
          %v2219 = vadd.f32 %v2204, %v2215
          %s2220 = sadd.s32 %s1331, 68
          %s2221 = sld [smem:[#allocation7 + %s2220]]
          %v2222 = vstv %s2221
          %v2223 = vmul.f32 %v2222, %v2198
          %v2224 = vmul.f32 %v2222, %v2199
          %2227 = vrot.lane.b32.xlu0 %v2223, 126
          %v2228 = vpop.permute.xlu0 %2227
          %2229 = vrot.lane.b32.xlu0 %v2224, 126
          %v2230 = vpop.permute.xlu0 %2229
          %v2233 = vadd.f32 %v2218, %v2228
          %v2234 = vadd.f32 %v2219, %v2230
          %s2235 = sadd.s32 %s1331, 69
          %s2236 = sld [smem:[#allocation7 + %s2235]]
          %v2237 = vld [vmem:[%s2158 + $0x2] sm:$0xff]
          %v2238 = vld [vmem:[%s2158 + $0xa] sm:$0x3f]
          %v2239 = vstv %s2236
          %v2240 = vmul.f32 %v2239, %v2237
          %v2241 = vmul.f32 %v2239, %v2238
          %v2242 = vadd.f32 %v2233, %v2240
          %v2243 = vadd.f32 %v2234, %v2241
          %s2244 = sadd.s32 %s1331, 70
          %s2245 = sld [smem:[#allocation7 + %s2244]]
          %v2246 = vstv %s2245
          %v2247 = vmul.f32 %v2246, %v2237
          %v2248 = vmul.f32 %v2246, %v2238
          %2251 = vrot.lane.b32.xlu0 %v2247, 127
          %v2252 = vpop.permute.xlu0 %2251
          %2253 = vrot.lane.b32.xlu0 %v2248, 127
          %v2254 = vpop.permute.xlu0 %2253
          %v2257 = vadd.f32 %v2242, %v2252
          %v2258 = vadd.f32 %v2243, %v2254
          %s2259 = sadd.s32 %s1331, 71
          %s2260 = sld [smem:[#allocation7 + %s2259]]
          %v2261 = vstv %s2260
          %v2262 = vmul.f32 %v2261, %v2237
          %v2263 = vmul.f32 %v2261, %v2238
          %2266 = vrot.lane.b32.xlu0 %v2262, 126
          %v2267 = vpop.permute.xlu0 %2266
          %2268 = vrot.lane.b32.xlu0 %v2263, 126
          %v2269 = vpop.permute.xlu0 %2268
          %v2272 = vadd.f32 %v2257, %v2267
          %v2273 = vadd.f32 %v2258, %v2269
          %vm2274 = vcmask 113664
          %v2276 = vsel %vm2274, %v316, 0
          %vm2278 = vcmask 1045504
          %v2280 = vsel %vm2278, %v2273, 0
          %2282 = vmatprep.subr.mxu0 0.0
          %2283 = vmatpush1.msra.mxu0 %v2272
          %2284 = vmatprep.subr.mxu0 0.0
          %2285 = vmatpush1.msra.mxu0 %v2280
          %2286 = vmatprep.subr.mxu0 0.0
          %2287 = vmatpush1.msra.mxu0 0.0
          %2288 = vmatprep.subr.mxu0 0.0
          %2289 = vmatpush1.msra.mxu0 0.0
          %2290 = vmatprep.subr.mxu0 0.0
          %2291 = vmatpush1.msra.mxu0 0.0
          %2292 = vmatprep.subr.mxu0 0.0
          %2293 = vmatpush1.msra.mxu0 0.0
          %2294 = vmatprep.subr.mxu0 0.0
          %2295 = vmatpush1.msra.mxu0 0.0
          %2296 = vmatprep.subr.mxu0 0.0
          %2297 = vmatpush1.msra.mxu0 0.0
          %2298 = vmatprep.subr.mxu0 0.0
          %2299 = vmatpush1.msra.mxu0 0.0
          %2300 = vmatprep.subr.mxu0 0.0
          %2301 = vmatpush1.msra.mxu0 0.0
          %2302 = vmatprep.subr.mxu0 0.0
          %2303 = vmatpush1.msra.mxu0 0.0
          %2304 = vmatprep.subr.mxu0 0.0
          %2305 = vmatpush1.msra.mxu0 0.0
          %2306 = vmatprep.subr.mxu0 0.0
          %2307 = vmatpush1.msra.mxu0 0.0
          %2308 = vmatprep.subr.mxu0 0.0
          %2309 = vmatpush1.msra.mxu0 0.0
          %2310 = vmatprep.subr.mxu0 0.0
          %2311 = vmatpush1.msra.mxu0 0.0
          %2312 = vmatprep.subr.mxu0 0.0
          %2313 = vmatpush1.msra.mxu0 0.0
          %2314 = vmatprep.subr.mxu0 0.0
          %2315 = vmatpush1.msra.mxu0 0.0
          %2316 = vmatprep.subr.mxu0 0.0
          %2317 = vmatpush1.msra.mxu0 0.0
          %2318 = vmatprep.subr.mxu0 0.0
          %2319 = vmatpush1.msra.mxu0 0.0
          %2320 = vmatprep.subr.mxu0 0.0
          %2321 = vmatpush1.msra.mxu0 0.0
          %2322 = vmatprep.subr.mxu0 0.0
          %2323 = vmatpush1.msra.mxu0 0.0
          %2324 = vmatprep.subr.mxu0 0.0
          %2325 = vmatpush1.msra.mxu0 0.0
          %2326 = vmatprep.subr.mxu0 0.0
          %2327 = vmatpush1.msra.mxu0 0.0
          %2328 = vmatprep.subr.mxu0 0.0
          %2329 = vmatpush1.msra.mxu0 0.0
          %2330 = vmatprep.subr.mxu0 0.0
          %2331 = vmatpush1.msra.mxu0 0.0
          %2332 = vmatprep.subr.mxu0 0.0
          %2333 = vmatpush1.msra.mxu0 0.0
          %2334 = vmatprep.subr.mxu0 0.0
          %2335 = vmatpush1.msra.mxu0 0.0
          %2336 = vmatprep.subr.mxu0 0.0
          %2337 = vmatpush1.msra.mxu0 0.0
          %2338 = vmatprep.subr.mxu0 0.0
          %2339 = vmatpush1.msra.mxu0 0.0
          %2340 = vmatprep.subr.mxu0 0.0
          %2341 = vmatpush1.msra.mxu0 0.0
          %2342 = vmatprep.subr.mxu0 0.0
          %2343 = vmatpush1.msra.mxu0 0.0
          %2344 = vmatprep.subr.mxu0 0.0
          %2345 = vmatpush1.msra.mxu0 0.0
          %2346 = vmatprep.mubr.f32.mxu0 0.0
          %2347 = vmatmul.mubr.f32.gmra.mrb[0].mxu0 %v2276
          %v2348 = vpop.f32.mrb[0].mxu0
          %v2349 = vadd.f32 0.0, %v2348
          %v2350 = vpop.f32.mrb[0].mxu0
          %2351 = vdwg.mxu0
          %v2353 = vsel %vm2274, %v324, 0
          %2355 = vmatprep.subr.mxu0 0.0
          %2356 = vmatpush1.msra.mxu0 %v2272
          %2357 = vmatprep.subr.mxu0 0.0
          %2358 = vmatpush1.msra.mxu0 %v2280
          %2359 = vmatprep.subr.mxu0 0.0
          %2360 = vmatpush1.msra.mxu0 0.0
          %2361 = vmatprep.subr.mxu0 0.0
          %2362 = vmatpush1.msra.mxu0 0.0
          %2363 = vmatprep.subr.mxu0 0.0
          %2364 = vmatpush1.msra.mxu0 0.0
          %2365 = vmatprep.subr.mxu0 0.0
          %2366 = vmatpush1.msra.mxu0 0.0
          %2367 = vmatprep.subr.mxu0 0.0
          %2368 = vmatpush1.msra.mxu0 0.0
          %2369 = vmatprep.subr.mxu0 0.0
          %2370 = vmatpush1.msra.mxu0 0.0
          %2371 = vmatprep.subr.mxu0 0.0
          %2372 = vmatpush1.msra.mxu0 0.0
          %2373 = vmatprep.subr.mxu0 0.0
          %2374 = vmatpush1.msra.mxu0 0.0
          %2375 = vmatprep.subr.mxu0 0.0
          %2376 = vmatpush1.msra.mxu0 0.0
          %2377 = vmatprep.subr.mxu0 0.0
          %2378 = vmatpush1.msra.mxu0 0.0
          %2379 = vmatprep.subr.mxu0 0.0
          %2380 = vmatpush1.msra.mxu0 0.0
          %2381 = vmatprep.subr.mxu0 0.0
          %2382 = vmatpush1.msra.mxu0 0.0
          %2383 = vmatprep.subr.mxu0 0.0
          %2384 = vmatpush1.msra.mxu0 0.0
          %2385 = vmatprep.subr.mxu0 0.0
          %2386 = vmatpush1.msra.mxu0 0.0
          %2387 = vmatprep.subr.mxu0 0.0
          %2388 = vmatpush1.msra.mxu0 0.0
          %2389 = vmatprep.subr.mxu0 0.0
          %2390 = vmatpush1.msra.mxu0 0.0
          %2391 = vmatprep.subr.mxu0 0.0
          %2392 = vmatpush1.msra.mxu0 0.0
          %2393 = vmatprep.subr.mxu0 0.0
          %2394 = vmatpush1.msra.mxu0 0.0
          %2395 = vmatprep.subr.mxu0 0.0
          %2396 = vmatpush1.msra.mxu0 0.0
          %2397 = vmatprep.subr.mxu0 0.0
          %2398 = vmatpush1.msra.mxu0 0.0
          %2399 = vmatprep.subr.mxu0 0.0
          %2400 = vmatpush1.msra.mxu0 0.0
          %2401 = vmatprep.subr.mxu0 0.0
          %2402 = vmatpush1.msra.mxu0 0.0
          %2403 = vmatprep.subr.mxu0 0.0
          %2404 = vmatpush1.msra.mxu0 0.0
          %2405 = vmatprep.subr.mxu0 0.0
          %2406 = vmatpush1.msra.mxu0 0.0
          %2407 = vmatprep.subr.mxu0 0.0
          %2408 = vmatpush1.msra.mxu0 0.0
          %2409 = vmatprep.subr.mxu0 0.0
          %2410 = vmatpush1.msra.mxu0 0.0
          %2411 = vmatprep.subr.mxu0 0.0
          %2412 = vmatpush1.msra.mxu0 0.0
          %2413 = vmatprep.subr.mxu0 0.0
          %2414 = vmatpush1.msra.mxu0 0.0
          %2415 = vmatprep.subr.mxu0 0.0
          %2416 = vmatpush1.msra.mxu0 0.0
          %2417 = vmatprep.subr.mxu0 0.0
          %2418 = vmatpush1.msra.mxu0 0.0
          %2419 = vmatprep.mubr.f32.mxu0 0.0
          %2420 = vmatmul.mubr.f32.gmra.mrb[0].mxu0 %v2353
          %v2421 = vpop.f32.mrb[0].mxu0
          %v2422 = vadd.f32 0.0, %v2421
          %v2423 = vpop.f32.mrb[0].mxu0
          %2424 = vdwg.mxu0
          %v2425 = vmax.f32 %v2349, %v2422
          %v2427 = vsel %vm2274, %v2425, 0
          %v2430 = vsel %vm2278, %v294, 0
          %2432 = vmatprep.subr.mxu0 0.0
          %2433 = vmatpush1.msra.mxu0 %v293
          %2434 = vmatprep.subr.mxu0 0.0
          %2435 = vmatpush1.msra.mxu0 %v2430
          %2436 = vmatprep.subr.mxu0 0.0
          %2437 = vmatpush1.msra.mxu0 0.0
          %2438 = vmatprep.subr.mxu0 0.0
          %2439 = vmatpush1.msra.mxu0 0.0
          %2440 = vmatprep.subr.mxu0 0.0
          %2441 = vmatpush1.msra.mxu0 0.0
          %2442 = vmatprep.subr.mxu0 0.0
          %2443 = vmatpush1.msra.mxu0 0.0
          %2444 = vmatprep.subr.mxu0 0.0
          %2445 = vmatpush1.msra.mxu0 0.0
          %2446 = vmatprep.subr.mxu0 0.0
          %2447 = vmatpush1.msra.mxu0 0.0
          %2448 = vmatprep.subr.mxu0 0.0
          %2449 = vmatpush1.msra.mxu0 0.0
          %2450 = vmatprep.subr.mxu0 0.0
          %2451 = vmatpush1.msra.mxu0 0.0
          %2452 = vmatprep.subr.mxu0 0.0
          %2453 = vmatpush1.msra.mxu0 0.0
          %2454 = vmatprep.subr.mxu0 0.0
          %2455 = vmatpush1.msra.mxu0 0.0
          %2456 = vmatprep.subr.mxu0 0.0
          %2457 = vmatpush1.msra.mxu0 0.0
          %2458 = vmatprep.subr.mxu0 0.0
          %2459 = vmatpush1.msra.mxu0 0.0
          %2460 = vmatprep.subr.mxu0 0.0
          %2461 = vmatpush1.msra.mxu0 0.0
          %2462 = vmatprep.subr.mxu0 0.0
          %2463 = vmatpush1.msra.mxu0 0.0
          %2464 = vmatprep.subr.mxu0 0.0
          %2465 = vmatpush1.msra.mxu0 0.0
          %2466 = vmatprep.subr.mxu0 0.0
          %2467 = vmatpush1.msra.mxu0 0.0
          %2468 = vmatprep.subr.mxu0 0.0
          %2469 = vmatpush1.msra.mxu0 0.0
          %2470 = vmatprep.subr.mxu0 0.0
          %2471 = vmatpush1.msra.mxu0 0.0
          %2472 = vmatprep.subr.mxu0 0.0
          %2473 = vmatpush1.msra.mxu0 0.0
          %2474 = vmatprep.subr.mxu0 0.0
          %2475 = vmatpush1.msra.mxu0 0.0
          %2476 = vmatprep.subr.mxu0 0.0
          %2477 = vmatpush1.msra.mxu0 0.0
          %2478 = vmatprep.subr.mxu0 0.0
          %2479 = vmatpush1.msra.mxu0 0.0
          %2480 = vmatprep.subr.mxu0 0.0
          %2481 = vmatpush1.msra.mxu0 0.0
          %2482 = vmatprep.subr.mxu0 0.0
          %2483 = vmatpush1.msra.mxu0 0.0
          %2484 = vmatprep.subr.mxu0 0.0
          %2485 = vmatpush1.msra.mxu0 0.0
          %2486 = vmatprep.subr.mxu0 0.0
          %2487 = vmatpush1.msra.mxu0 0.0
          %2488 = vmatprep.subr.mxu0 0.0
          %2489 = vmatpush1.msra.mxu0 0.0
          %2490 = vmatprep.subr.mxu0 0.0
          %2491 = vmatpush1.msra.mxu0 0.0
          %2492 = vmatprep.subr.mxu0 0.0
          %2493 = vmatpush1.msra.mxu0 0.0
          %2494 = vmatprep.subr.mxu0 0.0
          %2495 = vmatpush1.msra.mxu0 0.0
          %2496 = vmatprep.mubr.f32.mxu0 0.0
          %2497 = vmatmul.mubr.f32.gmra.mrb[0].mxu0 %v2427
          %v2498 = vpop.f32.mrb[0].mxu0
          %v2499 = vadd.f32 0.0, %v2498
          %v2500 = vpop.f32.mrb[0].mxu0
          %2501 = vdwg.mxu0
          %v2503 = vsel %vm2278, %v307, 0
          %2505 = vmatprep.subr.mxu0 0.0
          %2506 = vmatpush1.msra.mxu0 %v306
          %2507 = vmatprep.subr.mxu0 0.0
          %2508 = vmatpush1.msra.mxu0 %v2503
          %2509 = vmatprep.subr.mxu0 0.0
          %2510 = vmatpush1.msra.mxu0 0.0
          %2511 = vmatprep.subr.mxu0 0.0
          %2512 = vmatpush1.msra.mxu0 0.0
          %2513 = vmatprep.subr.mxu0 0.0
          %2514 = vmatpush1.msra.mxu0 0.0
          %2515 = vmatprep.subr.mxu0 0.0
          %2516 = vmatpush1.msra.mxu0 0.0
          %2517 = vmatprep.subr.mxu0 0.0
          %2518 = vmatpush1.msra.mxu0 0.0
          %2519 = vmatprep.subr.mxu0 0.0
          %2520 = vmatpush1.msra.mxu0 0.0
          %2521 = vmatprep.subr.mxu0 0.0
          %2522 = vmatpush1.msra.mxu0 0.0
          %2523 = vmatprep.subr.mxu0 0.0
          %2524 = vmatpush1.msra.mxu0 0.0
          %2525 = vmatprep.subr.mxu0 0.0
          %2526 = vmatpush1.msra.mxu0 0.0
          %2527 = vmatprep.subr.mxu0 0.0
          %2528 = vmatpush1.msra.mxu0 0.0
          %2529 = vmatprep.subr.mxu0 0.0
          %2530 = vmatpush1.msra.mxu0 0.0
          %2531 = vmatprep.subr.mxu0 0.0
          %2532 = vmatpush1.msra.mxu0 0.0
          %2533 = vmatprep.subr.mxu0 0.0
          %2534 = vmatpush1.msra.mxu0 0.0
          %2535 = vmatprep.subr.mxu0 0.0
          %2536 = vmatpush1.msra.mxu0 0.0
          %2537 = vmatprep.subr.mxu0 0.0
          %2538 = vmatpush1.msra.mxu0 0.0
          %2539 = vmatprep.subr.mxu0 0.0
          %2540 = vmatpush1.msra.mxu0 0.0
          %2541 = vmatprep.subr.mxu0 0.0
          %2542 = vmatpush1.msra.mxu0 0.0
          %2543 = vmatprep.subr.mxu0 0.0
          %2544 = vmatpush1.msra.mxu0 0.0
          %2545 = vmatprep.subr.mxu0 0.0
          %2546 = vmatpush1.msra.mxu0 0.0
          %2547 = vmatprep.subr.mxu0 0.0
          %2548 = vmatpush1.msra.mxu0 0.0
          %2549 = vmatprep.subr.mxu0 0.0
          %2550 = vmatpush1.msra.mxu0 0.0
          %2551 = vmatprep.subr.mxu0 0.0
          %2552 = vmatpush1.msra.mxu0 0.0
          %2553 = vmatprep.subr.mxu0 0.0
          %2554 = vmatpush1.msra.mxu0 0.0
          %2555 = vmatprep.subr.mxu0 0.0
          %2556 = vmatpush1.msra.mxu0 0.0
          %2557 = vmatprep.subr.mxu0 0.0
          %2558 = vmatpush1.msra.mxu0 0.0
          %2559 = vmatprep.subr.mxu0 0.0
          %2560 = vmatpush1.msra.mxu0 0.0
          %2561 = vmatprep.subr.mxu0 0.0
          %2562 = vmatpush1.msra.mxu0 0.0
          %2563 = vmatprep.subr.mxu0 0.0
          %2564 = vmatpush1.msra.mxu0 0.0
          %2565 = vmatprep.subr.mxu0 0.0
          %2566 = vmatpush1.msra.mxu0 0.0
          %2567 = vmatprep.subr.mxu0 0.0
          %2568 = vmatpush1.msra.mxu0 0.0
          %2569 = vmatprep.mubr.f32.mxu0 0.0
          %2570 = vmatmul.mubr.f32.gmra.mrb[0].mxu0 %v2427
          %v2571 = vpop.f32.mrb[0].mxu0
          %v2572 = vadd.f32 0.0, %v2571
          %v2573 = vpop.f32.mrb[0].mxu0
          %2574 = vdwg.mxu0
          %v2575 = vmax.f32 %v2499, %v2572
          %s2576 = sld [smem:[#allocation8 + %s1326]]
          %v2577 = vstv %s2576
          %v2578 = vadd.f32 %v2575, %v2577
          %v2579 = vmax.f32 %v2578, 0.0
          %s2580 = smul.u32 %s1326, 8
          %s2581 = scalar_lea.vmem %s276, %s2580
          %vm2582 = vcmask 55296
          %2583 = vst.msk [vmem:[%s2581] sm:$0x7f] %vm2582, %v2579
        $region68: #{mnist_conv_forward.2} parent=39 // loop_footer
          %s1330 = sadd.s32 1, %s1326
        $region69: #{mnist_conv_forward.2} parent=39 // loop_footer_branch
          %1325 = sbr.rel target = $region65
        $region70: #{mnist_conv_forward.2} parent=39 // loop_exit
          _
        %p2584 = scmp.lt.s32.totalorder %s19, 1
        %s2585 = scalar_select %p2584, %s19, 1
        %s2586 = smul.addr %s2585, 8
        %s2587 = smul.addr %s2586, 8
        %s2588 = scalar_lea.vmem %s5, %s2587
        // Predicated region
        $region71: #{mnist_conv_forward.2} parent=39 // pred_check
          %p2589 = pneg %p147
        $region72: #{mnist_conv_forward.2} parent=39 // pred_check_branch
          %2591 = sbr.rel (%p2589) target = $region74
        $region73: #{mnist_conv_forward.2} parent=39 // pred_region
          _
        $region74: #{mnist_conv_forward.2} parent=39 // pred_fallthru
          _
      $region40: #{mnist_conv_forward.2} parent=5 // pred_fallthru
        _
      %p2592 = scmp.le.s32.totalorder 2, %s14
      // Predicated region
      $region75: #{mnist_conv_forward.2} parent=5 // pred_check
        %p2593 = pneg %p2592
      $region76: #{mnist_conv_forward.2} parent=5 // pred_check_branch
        %2595 = sbr.rel (%p2593) target = $region78
      $region77: #{mnist_conv_forward.2} parent=5 // pred_region
        %s2596 = ssub.s32 %s14, 2
        // Predicated region
        $region79: #{mnist_conv_forward.2} parent=77 // pred_check
          %p2597 = pneg %p153
        $region80: #{mnist_conv_forward.2} parent=77 // pred_check_branch
          %2599 = sbr.rel (%p2597) target = $region82
        $region81: #{mnist_conv_forward.2} parent=77 // pred_region
          %p2600 = scmp.lt.s32.totalorder %s20, 1
          %s2601 = scalar_select %p2600, %s20, 1
          %s2602 = smul.addr %s2601, 8
          %s2603 = smul.addr %s2602, 8
          %s2604 = scalar_lea.vmem %s5, %s2603
        $region82: #{mnist_conv_forward.2} parent=77 // pred_fallthru
          _
      $region78: #{mnist_conv_forward.2} parent=5 // pred_fallthru
        _
    $region6: #{mnist_conv_forward.2} parent=1 // loop_footer
      %s18 = sadd.s32 1, %s14
    $region7: #{mnist_conv_forward.2} parent=1 // loop_footer_branch
      %13 = sbr.rel target = $region3
    $region8: #{mnist_conv_forward.2} parent=1 // loop_exit
      _
    %2605 = vsyncpa [#allocation4], 1
    %s2606 = scalar_lea.sflag [#allocation4], 1
    %2607 = vsyncpa %s2606, 1
    %2608 = vsyncpa [#allocation6], 1
    %2609 = vsyncpa [#allocation9], 1

</llo_original>
